<compile_context>
chip_gen: v5e
topology: v5e:2x2
jax: 0.10.0
libtpu: 0.0.40
codegen_flags: <defaults>
</compile_context>

<pallas_src>
import functools
import math

import jax
import jax.numpy as jnp
from jax.experimental import pallas as pl
from jax.experimental.pallas import tpu as pltpu


SCALING_FACTOR = 0.18215   # vae.config.scaling_factor
GAMMA = 1.0                # vae.decoder.gamma


# -----------------------------------------------------------------------------
# Pallas kernels (fused conv layers, transposed/lane-dense formulation)
# -----------------------------------------------------------------------------
def _silu(y):
    return y * jax.nn.sigmoid(y)


def _convT_kernel(aT_ref, wT_ref, b_ref, o_ref, *, activation):
    # aT: [1, K, tm]   wT: [Cout, K]   b: [Cout, 1]   out: [1, Cout, tm]
    y = jnp.dot(wT_ref[...], aT_ref[0],
                preferred_element_type=jnp.float32) + b_ref[...]
    if activation == "silu":
        y = _silu(y)
    elif activation == "clamp":
        y = jnp.clip(y, -1.0, 1.0)
    o_ref[0] = y.astype(o_ref.dtype)


def _convT_skip_kernel(aT_ref, wT_ref, b_ref, sT_ref, wsT_ref, o_ref, *, gamma):
    # Fused: silu(conv3x3) + gamma * (1x1 skip conv) — one kernel per up-block.
    y = jnp.dot(wT_ref[...], aT_ref[0],
                preferred_element_type=jnp.float32) + b_ref[...]
    y = _silu(y)
    s = jnp.dot(wsT_ref[...], sT_ref[0], preferred_element_type=jnp.float32)
    o_ref[0] = (y + gamma * s).astype(o_ref.dtype)


# -----------------------------------------------------------------------------
# Tiling / pallas_call wrapper
# -----------------------------------------------------------------------------
def _pick_tile(mp, batch):
    """Largest tile in {512,256,128} dividing mp, shrunk (>=128) until the
    total grid has >=4 parallel blocks when possible (v7x has 2 TCs/chip)."""
    tm = 128
    for cand in (512, 256, 128):
        if mp % cand == 0:
            tm = cand
            break
    while batch * (mp // tm) < 4 and tm > 128 and mp % (tm // 2) == 0:
        tm //= 2
    return tm


def _conv_mm_T(aT, wT, bias, *, activation, skip, gamma, out_dtype):
    """aT: [B, K, Mp] bf16, wT: [Cout, K] bf16, bias: [Cout] f32.
    Optional skip = (sT [B, Cs, Mp] bf16, wsT [Cout, Cs] bf16).
    Returns [B, Cout, Mp] in out_dtype."""
    B, K, Mp = aT.shape
    Cout = wT.shape[0]
    tm = _pick_tile(Mp, B)
    grid = (B, Mp // tm)
    bias2 = bias.reshape(Cout, 1).astype(jnp.float32)

    in_specs = [
        pl.BlockSpec((1, K, tm), lambda b, m: (b, 0, m)),
        # constant block index -> weight / bias stay resident across grid steps
        pl.BlockSpec((Cout, K), lambda b, m: (0, 0)),
        pl.BlockSpec((Cout, 1), lambda b, m: (0, 0)),
    ]
    args = [aT, wT, bias2]

    if skip is None:
        kern = functools.partial(_convT_kernel, activation=activation)
        Cs = 0
    else:
        sT, wsT = skip
        Cs = wsT.shape[1]
        in_specs += [
            pl.BlockSpec((1, Cs, tm), lambda b, m: (b, 0, m)),
            pl.BlockSpec((Cout, Cs), lambda b, m: (0, 0)),
        ]
        args += [sT, wsT]
        kern = functools.partial(_convT_skip_kernel, gamma=gamma)

    # Explicit VMEM budget from the chosen tiles (double-buffered inputs/outputs).
    out_bytes = jnp.dtype(out_dtype).itemsize
    vmem = (K * tm * 2) * 2 + Cout * K * 2 + Cout * 4 + (Cout * tm * out_bytes) * 2
    if Cs:
        vmem += (Cs * tm * 2) * 2 + Cout * Cs * 2
    vmem_limit = int(min(max(4 * vmem, 8 << 20), 48 << 20))

    return pl.pallas_call(
        kern,
        out_shape=jax.ShapeDtypeStruct((B, Cout, Mp), out_dtype),
        grid_spec=pltpu.PrefetchScalarGridSpec(
            num_scalar_prefetch=0,
            grid=grid,
            in_specs=in_specs,
            out_specs=pl.BlockSpec((1, Cout, tm), lambda b, m: (b, 0, m)),
        ),
        compiler_params=pltpu.CompilerParams(
            dimension_semantics=("parallel", "parallel"),
            vmem_limit_bytes=vmem_limit,
        ),
    )(*args)


# -----------------------------------------------------------------------------
# Host-side glue: transposed patch extraction (channel-major, spatial on lanes)
# -----------------------------------------------------------------------------
def _pad_lanes(aT):
    m = aT.shape[-1]
    mp = max(128, ((m + 127) // 128) * 128)
    if mp != m:
        aT = jnp.pad(aT, ((0, 0), (0, 0), (0, mp - m)))
    return aT


def _im2col_T(x):
    """3x3 / stride 1 / pad 1 patches of NCHW x -> [B, C*9, Ho*Wo(padded)]."""
    B, C, H, W = x.shape
    px = jnp.pad(x, ((0, 0), (0, 0), (1, 1), (1, 1)))
    cols = [px[:, :, i:i + H, j:j + W] for i in range(3) for j in range(3)]
    pat = jnp.stack(cols, axis=2)                 # [B, C, 9, H, W]
    aT = pat.reshape(B, C * 9, H * W)
    return _pad_lanes(aT), H, W, H * W


def _upsample_im2col_T(x):
    """2x nearest upsample fused with pad-1 3x3 patch extraction via a single
    gather (no separate jnp.repeat materialization)."""
    B, C, H, W = x.shape
    Ho, Wo = 2 * H, 2 * W
    xz = jnp.pad(x, ((0, 0), (0, 0), (1, 1), (1, 1)))          # zero border
    ry = jnp.arange(Ho + 2)
    rmap = jnp.where(ry == 0, 0, jnp.where(ry == Ho + 1, H + 1, 1 + (ry - 1) // 2))
    cx = jnp.arange(Wo + 2)
    cmap = jnp.where(cx == 0, 0, jnp.where(cx == Wo + 1, W + 1, 1 + (cx - 1) // 2))
    up_pad = jnp.take(jnp.take(xz, rmap, axis=2), cmap, axis=3)  # [B,C,Ho+2,Wo+2]
    cols = [up_pad[:, :, i:i + Ho, j:j + Wo] for i in range(3) for j in range(3)]
    pat = jnp.stack(cols, axis=2)                 # [B, C, 9, Ho, Wo]
    aT = pat.reshape(B, C * 9, Ho * Wo)
    return _pad_lanes(aT), Ho, Wo, Ho * Wo


def conv3x3_nchw(x, wT, bias, *, activation="none", upsample=False,
                 skip=None, gamma=1.0, out_dtype=jnp.bfloat16):
    """3x3/stride-1/pad-1 conv (optionally preceded by 2x nearest upsample and
    fused with a gamma * 1x1 skip-conv add), lowered to one lane-dense
    transposed MXU matmul per layer.  x: NCHW, wT: [Cout, Cin*9]."""
    B = x.shape[0]
    if upsample:
        aT, Ho, Wo, M = _upsample_im2col_T(x)
    else:
        aT, Ho, Wo, M = _im2col_T(x)
    aT = aT.astype(jnp.bfloat16)

    skip_op = None
    if skip is not None:
        s_act, wsT = skip
        sT = s_act.reshape(B, s_act.shape[1], -1)     # 1x1 conv input is just NCHW
        sT = _pad_lanes(sT).astype(jnp.bfloat16)
        skip_op = (sT, wsT.astype(jnp.bfloat16))

    y = _conv_mm_T(aT, wT.astype(jnp.bfloat16), bias, activation=activation,
                   skip=skip_op, gamma=gamma, out_dtype=out_dtype)
    Cout = wT.shape[0]
    return y[:, :, :M].reshape(B, Cout, Ho, Wo)


# -----------------------------------------------------------------------------
# Synthetic, deterministic stand-in VAE decoder parameters
# -----------------------------------------------------------------------------
def _wT(key, cout, cin, k):
    kin = cin * k * k
    w = jax.random.normal(key, (cout, kin), jnp.float32) / math.sqrt(kin)
    return w.astype(jnp.bfloat16)


def init_vae(key):
    ks = jax.random.split(key, 6)
    z = lambda n: jnp.zeros((n,), jnp.float32)
    dec_in = jax.random.normal(ks[0], (32, 4 * 9), jnp.float32) / math.sqrt(4 * 9)
    dec = {
        # x / scaling_factor folded into the first decoder conv weight
        # (conv is linear in its input) -> no standalone scale kernel.
        "dec_in_wT": (dec_in / SCALING_FACTOR).astype(jnp.bfloat16),
        "dec_in_b": z(32),
        "up1_wT": _wT(ks[1], 32, 32, 3), "up1_b": z(32),
        "skip1_wT": _wT(ks[2], 32, 32, 1),       # bias-free, like skip_conv_*
        "up2_wT": _wT(ks[3], 16, 32, 3), "up2_b": z(16),
        "skip2_wT": _wT(ks[4], 16, 16, 1),
        "out_wT": _wT(ks[5], 3, 16, 3), "out_b": z(3),
    }
    return {"decoder": dec, "current_down_blocks": None}


def vae_decode(dec, x, skips):
    """decoder(x / scaling_factor) with incoming_skip_acts, clamp(-1, 1)."""
    h0_skip, h1_skip = skips                       # encoder.current_down_blocks
    h = conv3x3_nchw(x, dec["dec_in_wT"], dec["dec_in_b"], activation="silu")
    h = conv3x3_nchw(h, dec["up1_wT"], dec["up1_b"], upsample=True,
                     skip=(h1_skip, dec["skip1_wT"]), gamma=GAMMA)
    h = conv3x3_nchw(h, dec["up2_wT"], dec["up2_b"], upsample=True,
                     skip=(h0_skip, dec["skip2_wT"]), gamma=GAMMA)
    # clamp(-1, 1) fused into the final conv kernel
    out = conv3x3_nchw(h, dec["out_wT"], dec["out_b"], activation="clamp",
                       out_dtype=jnp.float32)
    return out


class VAEDecodePallas:
    """Pallas TPU equivalent of PyTorch VAE_decode (synthetic decoder weights)."""

    def __init__(self, key):
        ka, kb = jax.random.split(key)
        self.vae = init_vae(ka)
        self.vae_b2a = init_vae(kb)

    def forward(self, x, direction):
        assert direction in ("a2b", "b2a")
        _vae = self.vae if direction == "a2b" else self.vae_b2a
        assert _vae["current_down_blocks"] is not None
        # decoder.incoming_skip_acts = encoder.current_down_blocks
        skips = _vae["current_down_blocks"]
        return vae_decode(_vae["decoder"], x, skips)


if __name__ == "__main__":
    key = jax.random.PRNGKey(0)
    k_model, k_x, k_s0, k_s1 = jax.random.split(key, 4)

    B = 2
    Hl, Wl = 16, 16                 # latent spatial
    H, W = 4 * Hl, 4 * Wl           # decoded image spatial

    x = jax.random.normal(k_x, (B, 4, Hl, Wl), jnp.float32)
    # Stand-ins for encoder.current_down_blocks recorded by VAE_encode
    # (the encoder itself is not part of this module).
    h0_skip = jax.random.normal(k_s0, (B, 16, H, W), jnp.float32) * 0.5
    h1_skip = jax.random.normal(k_s1, (B, 32, H // 2, W // 2), jnp.float32) * 0.5

    model = VAEDecodePallas(k_model)
    model.vae["current_down_blocks"] = (h0_skip, h1_skip)
    model.vae_b2a["current_down_blocks"] = (h0_skip, h1_skip)

    fwd = jax.jit(model.forward, static_argnums=(1,))
    out = fwd(x, "a2b")
    out = jax.block_until_ready(out)

    assert out.shape == (B, 3, H, W), out.shape
    assert bool(jnp.all(jnp.isfinite(out)))
    assert bool(jnp.all(out <= 1.0)) and bool(jnp.all(out >= -1.0))
    print("KERNEL_OK")
</pallas_src>

<mosaic_0001>
module attributes {stable_mosaic.version = 11 : i64} {
  func.func @_convT_kernel(%arg0: i32, %arg1: i32, %arg2: memref<1x36x128xbf16, #tpu.memory_space<vmem>>, %arg3: memref<32x36xbf16, #tpu.memory_space<vmem>>, %arg4: memref<32x1xf32, #tpu.memory_space<vmem>>, %arg5: memref<1x32x128xbf16, #tpu.memory_space<vmem>>) attributes {dimension_semantics = [#tpu.dimension_semantics<parallel>, #tpu.dimension_semantics<parallel>], iteration_bounds = array<i64: 2, 2>, scalar_prefetch = 0 : i64, scratch_operands = 0 : i64, tpu.core_type = #tpu.core_type<tc>, window_params = [{transform_indices = @transform_0, window_bounds = array<i64: 1, 36, 128>}, {pipeline_mode = #tpu.pipeline_mode<synchronous>, transform_indices = @transform_1, window_bounds = array<i64: 32, 36>}, {pipeline_mode = #tpu.pipeline_mode<synchronous>, transform_indices = @transform_2, window_bounds = array<i64: 32, 1>}, {transform_indices = @transform_3, window_bounds = array<i64: 1, 32, 128>}]} {
    %c0 = arith.constant 0 : index
    %c0_0 = arith.constant 0 : index
    %0 = vector.load %arg3[%c0, %c0_0] : memref<32x36xbf16, #tpu.memory_space<vmem>>, vector<32x36xbf16>
    %c0_1 = arith.constant 0 : index
    %c0_2 = arith.constant 0 : index
    %c0_3 = arith.constant 0 : index
    %1 = vector.load %arg2[%c0_1, %c0_2, %c0_3] : memref<1x36x128xbf16, #tpu.memory_space<vmem>>, vector<1x36x128xbf16>
    %2 = vector.shape_cast %1 : vector<1x36x128xbf16> to vector<36x128xbf16>
    %cst = arith.constant dense<0.000000e+00> : vector<32x128xf32>
    %3 = tpu.matmul %0, %2, %cst {dimension_numbers = #tpu.dot_dimension_numbers<[1], [0], [0], [1], [0, 0, 1, 1], [], []>} : vector<32x36xbf16>, vector<36x128xbf16>, vector<32x128xf32> -> vector<32x128xf32>
    %c0_4 = arith.constant 0 : index
    %c0_5 = arith.constant 0 : index
    %4 = vector.load %arg4[%c0_4, %c0_5] : memref<32x1xf32, #tpu.memory_space<vmem>>, vector<32x1xf32>
    %5 = vector.broadcast %4 : vector<32x1xf32> to vector<32x128xf32>
    %6 = arith.addf %3, %5 : vector<32x128xf32>
    %7 = arith.negf %6 : vector<32x128xf32>
    %8 = math.exp %7 : vector<32x128xf32>
    %cst_6 = arith.constant 1.000000e+00 : f32
    %9 = vector.broadcast %cst_6 : f32 to vector<32x128xf32>
    %10 = arith.addf %9, %8 : vector<32x128xf32>
    %11 = arith.divf %9, %10 : vector<32x128xf32>
    %12 = arith.mulf %6, %11 : vector<32x128xf32>
    %13 = arith.truncf %12 : vector<32x128xf32> to vector<32x128xbf16>
    %c0_7 = arith.constant 0 : index
    %c0_8 = arith.constant 0 : index
    %c0_9 = arith.constant 0 : index
    %14 = vector.load %arg5[%c0_7, %c0_8, %c0_9] : memref<1x32x128xbf16, #tpu.memory_space<vmem>>, vector<1x32x128xbf16>
    %15 = vector.shape_cast %14 : vector<1x32x128xbf16> to vector<32x128xbf16>
    %16 = vector.shape_cast %13 : vector<32x128xbf16> to vector<1x32x128xbf16>
    tpu.vector_store %arg5[%c0_7, %c0_8, %c0_9], %16 {strides = array<i32>} : memref<1x32x128xbf16, #tpu.memory_space<vmem>>, vector<1x32x128xbf16>,
    return
  }
  func.func @transform_0(%arg0: i32, %arg1: i32) -> (i32, i32, i32) {
    %c0_i32 = arith.constant 0 : i32
    %c0_i32_0 = arith.constant 0 : i32
    return %arg0, %c0_i32, %arg1 : i32, i32, i32
  }
  func.func @transform_1(%arg0: i32, %arg1: i32) -> (i32, i32) {
    %c0_i32 = arith.constant 0 : i32
    %c0_i32_0 = arith.constant 0 : i32
    %c0_i32_1 = arith.constant 0 : i32
    return %c0_i32, %c0_i32_0 : i32, i32
  }
  func.func @transform_2(%arg0: i32, %arg1: i32) -> (i32, i32) {
    %c0_i32 = arith.constant 0 : i32
    %c0_i32_0 = arith.constant 0 : i32
    %c0_i32_1 = arith.constant 0 : i32
    return %c0_i32, %c0_i32_0 : i32, i32
  }
  func.func @transform_3(%arg0: i32, %arg1: i32) -> (i32, i32, i32) {
    %c0_i32 = arith.constant 0 : i32
    %c0_i32_0 = arith.constant 0 : i32
    return %arg0, %c0_i32, %arg1 : i32, i32, i32
  }
}

module attributes {stable_mosaic.version = 11 : i64} {
  func.func @_convT_skip_kernel(%arg0: i32, %arg1: i32, %arg2: memref<1x288x512xbf16, #tpu.memory_space<vmem>>, %arg3: memref<32x288xbf16, #tpu.memory_space<vmem>>, %arg4: memref<32x1xf32, #tpu.memory_space<vmem>>, %arg5: memref<1x32x512xbf16, #tpu.memory_space<vmem>>, %arg6: memref<32x32xbf16, #tpu.memory_space<vmem>>, %arg7: memref<1x32x512xbf16, #tpu.memory_space<vmem>>) attributes {dimension_semantics = [#tpu.dimension_semantics<parallel>, #tpu.dimension_semantics<parallel>], iteration_bounds = array<i64: 2, 2>, scalar_prefetch = 0 : i64, scratch_operands = 0 : i64, tpu.core_type = #tpu.core_type<tc>, window_params = [{transform_indices = @transform_0, window_bounds = array<i64: 1, 288, 512>}, {pipeline_mode = #tpu.pipeline_mode<synchronous>, transform_indices = @transform_1, window_bounds = array<i64: 32, 288>}, {pipeline_mode = #tpu.pipeline_mode<synchronous>, transform_indices = @transform_2, window_bounds = array<i64: 32, 1>}, {transform_indices = @transform_3, window_bounds = array<i64: 1, 32, 512>}, {pipeline_mode = #tpu.pipeline_mode<synchronous>, transform_indices = @transform_4, window_bounds = array<i64: 32, 32>}, {transform_indices = @transform_5, window_bounds = array<i64: 1, 32, 512>}]} {
    %c0 = arith.constant 0 : index
    %c0_0 = arith.constant 0 : index
    %0 = vector.load %arg3[%c0, %c0_0] : memref<32x288xbf16, #tpu.memory_space<vmem>>, vector<32x288xbf16>
    %c0_1 = arith.constant 0 : index
    %c0_2 = arith.constant 0 : index
    %c0_3 = arith.constant 0 : index
    %1 = vector.load %arg2[%c0_1, %c0_2, %c0_3] : memref<1x288x512xbf16, #tpu.memory_space<vmem>>, vector<1x288x512xbf16>
    %2 = vector.shape_cast %1 : vector<1x288x512xbf16> to vector<288x512xbf16>
    %cst = arith.constant dense<0.000000e+00> : vector<32x512xf32>
    %3 = tpu.matmul %0, %2, %cst {dimension_numbers = #tpu.dot_dimension_numbers<[1], [0], [0], [1], [0, 0, 1, 1], [], []>} : vector<32x288xbf16>, vector<288x512xbf16>, vector<32x512xf32> -> vector<32x512xf32>
    %c0_4 = arith.constant 0 : index
    %c0_5 = arith.constant 0 : index
    %4 = vector.load %arg4[%c0_4, %c0_5] : memref<32x1xf32, #tpu.memory_space<vmem>>, vector<32x1xf32>
    %5 = vector.broadcast %4 : vector<32x1xf32> to vector<32x512xf32>
    %6 = arith.addf %3, %5 : vector<32x512xf32>
    %7 = arith.negf %6 : vector<32x512xf32>
    %8 = math.exp %7 : vector<32x512xf32>
    %cst_6 = arith.constant 1.000000e+00 : f32
    %9 = vector.broadcast %cst_6 : f32 to vector<32x512xf32>
    %10 = arith.addf %9, %8 : vector<32x512xf32>
    %11 = arith.divf %9, %10 : vector<32x512xf32>
    %12 = arith.mulf %6, %11 : vector<32x512xf32>
    %c0_7 = arith.constant 0 : index
    %c0_8 = arith.constant 0 : index
    %13 = vector.load %arg6[%c0_7, %c0_8] : memref<32x32xbf16, #tpu.memory_space<vmem>>, vector<32x32xbf16>
    %c0_9 = arith.constant 0 : index
    %c0_10 = arith.constant 0 : index
    %c0_11 = arith.constant 0 : index
    %14 = vector.load %arg5[%c0_9, %c0_10, %c0_11] : memref<1x32x512xbf16, #tpu.memory_space<vmem>>, vector<1x32x512xbf16>
    %15 = vector.shape_cast %14 : vector<1x32x512xbf16> to vector<32x512xbf16>
    %cst_12 = arith.constant dense<0.000000e+00> : vector<32x512xf32>
    %16 = tpu.matmul %13, %15, %cst_12 {dimension_numbers = #tpu.dot_dimension_numbers<[1], [0], [0], [1], [0, 0, 1, 1], [], []>} : vector<32x32xbf16>, vector<32x512xbf16>, vector<32x512xf32> -> vector<32x512xf32>
    %cst_13 = arith.constant 1.000000e+00 : f32
    %17 = vector.broadcast %cst_13 : f32 to vector<32x512xf32>
    %18 = arith.mulf %17, %16 : vector<32x512xf32>
    %19 = arith.addf %12, %18 : vector<32x512xf32>
    %20 = arith.truncf %19 : vector<32x512xf32> to vector<32x512xbf16>
    %c0_14 = arith.constant 0 : index
    %c0_15 = arith.constant 0 : index
    %c0_16 = arith.constant 0 : index
    %21 = vector.load %arg7[%c0_14, %c0_15, %c0_16] : memref<1x32x512xbf16, #tpu.memory_space<vmem>>, vector<1x32x512xbf16>
    %22 = vector.shape_cast %21 : vector<1x32x512xbf16> to vector<32x512xbf16>
    %23 = vector.shape_cast %20 : vector<32x512xbf16> to vector<1x32x512xbf16>
    tpu.vector_store %arg7[%c0_14, %c0_15, %c0_16], %23 {strides = array<i32>} : memref<1x32x512xbf16, #tpu.memory_space<vmem>>, vector<1x32x512xbf16>,
    return
  }
  func.func @transform_0(%arg0: i32, %arg1: i32) -> (i32, i32, i32) {
    %c0_i32 = arith.constant 0 : i32
    %c0_i32_0 = arith.constant 0 : i32
    return %arg0, %c0_i32, %arg1 : i32, i32, i32
  }
  func.func @transform_1(%arg0: i32, %arg1: i32) -> (i32, i32) {
    %c0_i32 = arith.constant 0 : i32
    %c0_i32_0 = arith.constant 0 : i32
    %c0_i32_1 = arith.constant 0 : i32
    return %c0_i32, %c0_i32_0 : i32, i32
  }
  func.func @transform_2(%arg0: i32, %arg1: i32) -> (i32, i32) {
    %c0_i32 = arith.constant 0 : i32
    %c0_i32_0 = arith.constant 0 : i32
    %c0_i32_1 = arith.constant 0 : i32
    return %c0_i32, %c0_i32_0 : i32, i32
  }
  func.func @transform_3(%arg0: i32, %arg1: i32) -> (i32, i32, i32) {
    %c0_i32 = arith.constant 0 : i32
    %c0_i32_0 = arith.constant 0 : i32
    return %arg0, %c0_i32, %arg1 : i32, i32, i32
  }
  func.func @transform_4(%arg0: i32, %arg1: i32) -> (i32, i32) {
    %c0_i32 = arith.constant 0 : i32
    %c0_i32_0 = arith.constant 0 : i32
    %c0_i32_1 = arith.constant 0 : i32
    return %c0_i32, %c0_i32_0 : i32, i32
  }
  func.func @transform_5(%arg0: i32, %arg1: i32) -> (i32, i32, i32) {
    %c0_i32 = arith.constant 0 : i32
    %c0_i32_0 = arith.constant 0 : i32
    return %arg0, %c0_i32, %arg1 : i32, i32, i32
  }
}

module attributes {stable_mosaic.version = 11 : i64} {
  func.func @_convT_skip_kernel(%arg0: i32, %arg1: i32, %arg2: memref<1x288x512xbf16, #tpu.memory_space<vmem>>, %arg3: memref<16x288xbf16, #tpu.memory_space<vmem>>, %arg4: memref<16x1xf32, #tpu.memory_space<vmem>>, %arg5: memref<1x16x512xbf16, #tpu.memory_space<vmem>>, %arg6: memref<16x16xbf16, #tpu.memory_space<vmem>>, %arg7: memref<1x16x512xbf16, #tpu.memory_space<vmem>>) attributes {dimension_semantics = [#tpu.dimension_semantics<parallel>, #tpu.dimension_semantics<parallel>], iteration_bounds = array<i64: 2, 8>, scalar_prefetch = 0 : i64, scratch_operands = 0 : i64, tpu.core_type = #tpu.core_type<tc>, window_params = [{transform_indices = @transform_0, window_bounds = array<i64: 1, 288, 512>}, {pipeline_mode = #tpu.pipeline_mode<synchronous>, transform_indices = @transform_1, window_bounds = array<i64: 16, 288>}, {pipeline_mode = #tpu.pipeline_mode<synchronous>, transform_indices = @transform_2, window_bounds = array<i64: 16, 1>}, {transform_indices = @transform_3, window_bounds = array<i64: 1, 16, 512>}, {pipeline_mode = #tpu.pipeline_mode<synchronous>, transform_indices = @transform_4, window_bounds = array<i64: 16, 16>}, {transform_indices = @transform_5, window_bounds = array<i64: 1, 16, 512>}]} {
    %c0 = arith.constant 0 : index
    %c0_0 = arith.constant 0 : index
    %0 = vector.load %arg3[%c0, %c0_0] : memref<16x288xbf16, #tpu.memory_space<vmem>>, vector<16x288xbf16>
    %c0_1 = arith.constant 0 : index
    %c0_2 = arith.constant 0 : index
    %c0_3 = arith.constant 0 : index
    %1 = vector.load %arg2[%c0_1, %c0_2, %c0_3] : memref<1x288x512xbf16, #tpu.memory_space<vmem>>, vector<1x288x512xbf16>
    %2 = vector.shape_cast %1 : vector<1x288x512xbf16> to vector<288x512xbf16>
    %cst = arith.constant dense<0.000000e+00> : vector<16x512xf32>
    %3 = tpu.matmul %0, %2, %cst {dimension_numbers = #tpu.dot_dimension_numbers<[1], [0], [0], [1], [0, 0, 1, 1], [], []>} : vector<16x288xbf16>, vector<288x512xbf16>, vector<16x512xf32> -> vector<16x512xf32>
    %c0_4 = arith.constant 0 : index
    %c0_5 = arith.constant 0 : index
    %4 = vector.load %arg4[%c0_4, %c0_5] : memref<16x1xf32, #tpu.memory_space<vmem>>, vector<16x1xf32>
    %5 = vector.broadcast %4 : vector<16x1xf32> to vector<16x512xf32>
    %6 = arith.addf %3, %5 : vector<16x512xf32>
    %7 = arith.negf %6 : vector<16x512xf32>
    %8 = math.exp %7 : vector<16x512xf32>
    %cst_6 = arith.constant 1.000000e+00 : f32
    %9 = vector.broadcast %cst_6 : f32 to vector<16x512xf32>
    %10 = arith.addf %9, %8 : vector<16x512xf32>
    %11 = arith.divf %9, %10 : vector<16x512xf32>
    %12 = arith.mulf %6, %11 : vector<16x512xf32>
    %c0_7 = arith.constant 0 : index
    %c0_8 = arith.constant 0 : index
    %13 = vector.load %arg6[%c0_7, %c0_8] : memref<16x16xbf16, #tpu.memory_space<vmem>>, vector<16x16xbf16>
    %c0_9 = arith.constant 0 : index
    %c0_10 = arith.constant 0 : index
    %c0_11 = arith.constant 0 : index
    %14 = vector.load %arg5[%c0_9, %c0_10, %c0_11] : memref<1x16x512xbf16, #tpu.memory_space<vmem>>, vector<1x16x512xbf16>
    %15 = vector.shape_cast %14 : vector<1x16x512xbf16> to vector<16x512xbf16>
    %cst_12 = arith.constant dense<0.000000e+00> : vector<16x512xf32>
    %16 = tpu.matmul %13, %15, %cst_12 {dimension_numbers = #tpu.dot_dimension_numbers<[1], [0], [0], [1], [0, 0, 1, 1], [], []>} : vector<16x16xbf16>, vector<16x512xbf16>, vector<16x512xf32> -> vector<16x512xf32>
    %cst_13 = arith.constant 1.000000e+00 : f32
    %17 = vector.broadcast %cst_13 : f32 to vector<16x512xf32>
    %18 = arith.mulf %17, %16 : vector<16x512xf32>
    %19 = arith.addf %12, %18 : vector<16x512xf32>
    %20 = arith.truncf %19 : vector<16x512xf32> to vector<16x512xbf16>
    %c0_14 = arith.constant 0 : index
    %c0_15 = arith.constant 0 : index
    %c0_16 = arith.constant 0 : index
    %21 = vector.load %arg7[%c0_14, %c0_15, %c0_16] : memref<1x16x512xbf16, #tpu.memory_space<vmem>>, vector<1x16x512xbf16>
    %22 = vector.shape_cast %21 : vector<1x16x512xbf16> to vector<16x512xbf16>
    %23 = vector.shape_cast %20 : vector<16x512xbf16> to vector<1x16x512xbf16>
    tpu.vector_store %arg7[%c0_14, %c0_15, %c0_16], %23 {strides = array<i32>} : memref<1x16x512xbf16, #tpu.memory_space<vmem>>, vector<1x16x512xbf16>,
    return
  }
  func.func @transform_0(%arg0: i32, %arg1: i32) -> (i32, i32, i32) {
    %c0_i32 = arith.constant 0 : i32
    %c0_i32_0 = arith.constant 0 : i32
    return %arg0, %c0_i32, %arg1 : i32, i32, i32
  }
  func.func @transform_1(%arg0: i32, %arg1: i32) -> (i32, i32) {
    %c0_i32 = arith.constant 0 : i32
    %c0_i32_0 = arith.constant 0 : i32
    %c0_i32_1 = arith.constant 0 : i32
    return %c0_i32, %c0_i32_0 : i32, i32
  }
  func.func @transform_2(%arg0: i32, %arg1: i32) -> (i32, i32) {
    %c0_i32 = arith.constant 0 : i32
    %c0_i32_0 = arith.constant 0 : i32
    %c0_i32_1 = arith.constant 0 : i32
    return %c0_i32, %c0_i32_0 : i32, i32
  }
  func.func @transform_3(%arg0: i32, %arg1: i32) -> (i32, i32, i32) {
    %c0_i32 = arith.constant 0 : i32
    %c0_i32_0 = arith.constant 0 : i32
    return %arg0, %c0_i32, %arg1 : i32, i32, i32
  }
  func.func @transform_4(%arg0: i32, %arg1: i32) -> (i32, i32) {
    %c0_i32 = arith.constant 0 : i32
    %c0_i32_0 = arith.constant 0 : i32
    %c0_i32_1 = arith.constant 0 : i32
    return %c0_i32, %c0_i32_0 : i32, i32
  }
  func.func @transform_5(%arg0: i32, %arg1: i32) -> (i32, i32, i32) {
    %c0_i32 = arith.constant 0 : i32
    %c0_i32_0 = arith.constant 0 : i32
    return %arg0, %c0_i32, %arg1 : i32, i32, i32
  }
}

module attributes {stable_mosaic.version = 11 : i64} {
  func.func @_convT_kernel(%arg0: i32, %arg1: i32, %arg2: memref<1x144x512xbf16, #tpu.memory_space<vmem>>, %arg3: memref<3x144xbf16, #tpu.memory_space<vmem>>, %arg4: memref<3x1xf32, #tpu.memory_space<vmem>>, %arg5: memref<1x3x512xf32, #tpu.memory_space<vmem>>) attributes {dimension_semantics = [#tpu.dimension_semantics<parallel>, #tpu.dimension_semantics<parallel>], iteration_bounds = array<i64: 2, 8>, scalar_prefetch = 0 : i64, scratch_operands = 0 : i64, tpu.core_type = #tpu.core_type<tc>, window_params = [{transform_indices = @transform_0, window_bounds = array<i64: 1, 144, 512>}, {pipeline_mode = #tpu.pipeline_mode<synchronous>, transform_indices = @transform_1, window_bounds = array<i64: 3, 144>}, {pipeline_mode = #tpu.pipeline_mode<synchronous>, transform_indices = @transform_2, window_bounds = array<i64: 3, 1>}, {transform_indices = @transform_3, window_bounds = array<i64: 1, 3, 512>}]} {
    %c0 = arith.constant 0 : index
    %c0_0 = arith.constant 0 : index
    %0 = vector.load %arg3[%c0, %c0_0] : memref<3x144xbf16, #tpu.memory_space<vmem>>, vector<3x144xbf16>
    %c0_1 = arith.constant 0 : index
    %c0_2 = arith.constant 0 : index
    %c0_3 = arith.constant 0 : index
    %1 = vector.load %arg2[%c0_1, %c0_2, %c0_3] : memref<1x144x512xbf16, #tpu.memory_space<vmem>>, vector<1x144x512xbf16>
    %2 = vector.shape_cast %1 : vector<1x144x512xbf16> to vector<144x512xbf16>
    %cst = arith.constant dense<0.000000e+00> : vector<3x512xf32>
    %3 = tpu.matmul %0, %2, %cst {dimension_numbers = #tpu.dot_dimension_numbers<[1], [0], [0], [1], [0, 0, 1, 1], [], []>} : vector<3x144xbf16>, vector<144x512xbf16>, vector<3x512xf32> -> vector<3x512xf32>
    %c0_4 = arith.constant 0 : index
    %c0_5 = arith.constant 0 : index
    %4 = vector.load %arg4[%c0_4, %c0_5] : memref<3x1xf32, #tpu.memory_space<vmem>>, vector<3x1xf32>
    %5 = vector.broadcast %4 : vector<3x1xf32> to vector<3x512xf32>
    %6 = arith.addf %3, %5 : vector<3x512xf32>
    %cst_6 = arith.constant -1.000000e+00 : f32
    %cst_7 = arith.constant 1.000000e+00 : f32
    %7 = vector.broadcast %cst_6 : f32 to vector<3x512xf32>
    %8 = arith.maximumf %7, %6 : vector<3x512xf32>
    %9 = vector.broadcast %cst_7 : f32 to vector<3x512xf32>
    %10 = arith.minimumf %9, %8 : vector<3x512xf32>
    %c0_8 = arith.constant 0 : index
    %c0_9 = arith.constant 0 : index
    %c0_10 = arith.constant 0 : index
    %11 = vector.load %arg5[%c0_8, %c0_9, %c0_10] : memref<1x3x512xf32, #tpu.memory_space<vmem>>, vector<1x3x512xf32>
    %12 = vector.shape_cast %11 : vector<1x3x512xf32> to vector<3x512xf32>
    %13 = vector.shape_cast %10 : vector<3x512xf32> to vector<1x3x512xf32>
    tpu.vector_store %arg5[%c0_8, %c0_9, %c0_10], %13 {strides = array<i32>} : memref<1x3x512xf32, #tpu.memory_space<vmem>>, vector<1x3x512xf32>,
    return
  }
  func.func @transform_0(%arg0: i32, %arg1: i32) -> (i32, i32, i32) {
    %c0_i32 = arith.constant 0 : i32
    %c0_i32_0 = arith.constant 0 : i32
    return %arg0, %c0_i32, %arg1 : i32, i32, i32
  }
  func.func @transform_1(%arg0: i32, %arg1: i32) -> (i32, i32) {
    %c0_i32 = arith.constant 0 : i32
    %c0_i32_0 = arith.constant 0 : i32
    %c0_i32_1 = arith.constant 0 : i32
    return %c0_i32, %c0_i32_0 : i32, i32
  }
  func.func @transform_2(%arg0: i32, %arg1: i32) -> (i32, i32) {
    %c0_i32 = arith.constant 0 : i32
    %c0_i32_0 = arith.constant 0 : i32
    %c0_i32_1 = arith.constant 0 : i32
    return %c0_i32, %c0_i32_0 : i32, i32
  }
  func.func @transform_3(%arg0: i32, %arg1: i32) -> (i32, i32, i32) {
    %c0_i32 = arith.constant 0 : i32
    %c0_i32_0 = arith.constant 0 : i32
    return %arg0, %c0_i32, %arg1 : i32, i32, i32
  }
}

</mosaic_0001>

<llo_original>
// kernel: forward.4
$region0: #{forward.4}
  #allocation0 [shape = 'u32[]', space=smem, size = 0x4, offset = 0x4, fixed_abs, tag = 'smem constant byte address 0x4 - core index']
  #allocation1 [shape = 'u32[72,128]{1,0:T(1,128)}', space=vmem, size = 0x9000, scoped, tag = 'internal scratch']
  %s0 = inlined_call_operand.vmem [shape: bf16[2,36,256], index: 0, kind: input, shape index: {}]
  %s1 = inlined_call_operand.hbm [shape: bf16[32,36], index: 1, kind: input, shape index: {}]
  %s2 = inlined_call_operand.vmem [shape: f32[32,1], index: 2, kind: input, shape index: {}]
  %s3 = inlined_call_operand.vmem [shape: bf16[2,32,256], index: 3, kind: output, shape index: {}]
  %s4 = sld [smem:[#allocation0]]
  $region127: #{forward.4} parent=0
    _
  %s6 = ssub.s32 1, %s4
  %s7 = scalar_select 0, %s6, %s4
  $region1: #{forward.4} parent=0
    #allocation2 [shape = 'u8[20480]{0}', space=vmem, size = 0x5000, scoped, tag = 'input window, operand 0']
    #allocation3 [shape = 'u8[8192]{0}', space=vmem, size = 0x2000, scoped, tag = 'input window, operand 1, single buffered']
    #allocation4 [shape = 's32[2]{0}', space=sflag, size = 0x8, scoped, tag = 'scoped memory for forward.4']
    #allocation5 [shape = 'u8[16384]{0}', space=vmem, size = 0x4000, scoped, tag = 'output window, operand 0']
    %8 = vsyncpa [#allocation4], 0
    loop: start=0, step=1, limit=6
    $region2: #{forward.4} parent=1 // loop_pre_header
      _
    $region3: #{forward.4} parent=1 // loop_header
      %s10 = sphi 0, %s14
      %p11 = scmp.ge.s32.totalorder %s10, 6
      %s17 = sphi 0, %s29
      %s18 = sphi 0, %s25
      %s19 = sphi 0, %s17
      %s20 = sphi 0, %s18
      %s21 = sphi 0, %s19
      %s22 = sphi 0, %s20
      %s34 = sphi 0, %s36
      %s37 = sphi 0, %s34
      %s38 = sphi 0, %s37
      %s54 = sphi 0, %s38
      %s58 = sphi 0, %s58
      %s60 = sphi 0, %s58
      %s61 = sphi 0, %s60
      %s75 = sphi 0, %s61
      %s79 = sphi 0, %s79
      %s81 = sphi 0, %s79
      %s82 = sphi 0, %s81
      %s96 = sphi 0, %s82
      %s104 = sphi 0, %s106
      %s107 = sphi 0, %s104
      %s108 = sphi 0, %s107
      %s124 = sphi 0, %s108
    $region4: #{forward.4} parent=1 // loop_header_branch
      %13 = sbr.rel (%p11) target = $region8
    $region5: #{forward.4} parent=1 // loop_body
      %s15 = ssub.s32 %s10, 1
      %s16 = ssub.s32 %s10, 2
      %s23 = sadd.s32 1, %s18
      %p24 = scmp.ge.s32.totalorder %s23, 2
      %s25 = scalar_select %p24, 0, %s23
      %s26 = sadd.s32 1, %s17
      %s27 = scalar_select %p24, %s26, %s17
      %p28 = scmp.ge.s32.totalorder %s27, 2
      %s29 = scalar_select %p28, 0, %s27
      %s30 = ssub.s32 %s17, %s29
      %s31 = ssub.s32 %s18, %s25
      %s32 = sor.u32 %s30, %s31
      %p33 = scmp.eq.s32.totalorder %s32, 0
      %s35 = sadd.s32 %s34, 1
      %s36 = scalar_select %p33, %s34, %s35
      %p39 = pneg %p33
      %p40 = scmp.eq.s32.totalorder %s10, 3
      %p41 = por %p39, %p40
      %p42 = scmp.ne.s32.totalorder %s34, %s37
      %p43 = scmp.eq.s32.totalorder %s10, 0
      %p44 = por %p42, %p43
      %p45 = scmp.ne.s32.totalorder %s34, %s37
      %p46 = scmp.eq.s32.totalorder %s15, 3
      %p47 = por %p45, %p46
      %p48 = scmp.ne.s32.totalorder %s37, %s38
      %p49 = scmp.eq.s32.totalorder %s15, 0
      %p50 = por %p48, %p49
      %p51 = scmp.ne.s32.totalorder %s37, %s38
      %p52 = scmp.eq.s32.totalorder %s16, 3
      %p53 = por %p51, %p52
      %p55 = scmp.ne.s32.totalorder %s38, %s54
      %p56 = scmp.eq.s32.totalorder %s16, 0
      %p57 = por %p55, %p56
      %s59 = sadd.s32 %s58, 1
      %p62 = scmp.eq.s32.totalorder %s10, 3
      %p63 = scmp.ne.s32.totalorder %s58, %s60
      %p64 = scmp.eq.s32.totalorder %s10, 0
      %p65 = por %p63, %p64
      %p66 = scmp.ne.s32.totalorder %s58, %s60
      %p67 = scmp.eq.s32.totalorder %s15, 3
      %p68 = por %p66, %p67
      %p69 = scmp.ne.s32.totalorder %s60, %s61
      %p70 = scmp.eq.s32.totalorder %s15, 0
      %p71 = por %p69, %p70
      %p72 = scmp.ne.s32.totalorder %s60, %s61
      %p73 = scmp.eq.s32.totalorder %s16, 3
      %p74 = por %p72, %p73
      %p76 = scmp.ne.s32.totalorder %s61, %s75
      %p77 = scmp.eq.s32.totalorder %s16, 0
      %p78 = por %p76, %p77
      %s80 = sadd.s32 %s79, 1
      %p83 = scmp.eq.s32.totalorder %s10, 3
      %p84 = scmp.ne.s32.totalorder %s79, %s81
      %p85 = scmp.eq.s32.totalorder %s10, 0
      %p86 = por %p84, %p85
      %p87 = scmp.ne.s32.totalorder %s79, %s81
      %p88 = scmp.eq.s32.totalorder %s15, 3
      %p89 = por %p87, %p88
      %p90 = scmp.ne.s32.totalorder %s81, %s82
      %p91 = scmp.eq.s32.totalorder %s15, 0
      %p92 = por %p90, %p91
      %p93 = scmp.ne.s32.totalorder %s81, %s82
      %p94 = scmp.eq.s32.totalorder %s16, 3
      %p95 = por %p93, %p94
      %p97 = scmp.ne.s32.totalorder %s82, %s96
      %p98 = scmp.eq.s32.totalorder %s16, 0
      %p99 = por %p97, %p98
      %s100 = ssub.s32 %s17, %s29
      %s101 = ssub.s32 %s18, %s25
      %s102 = sor.u32 %s100, %s101
      %p103 = scmp.eq.s32.totalorder %s102, 0
      %s105 = sadd.s32 %s104, 1
      %s106 = scalar_select %p103, %s104, %s105
      %p109 = pneg %p103
      %p110 = scmp.eq.s32.totalorder %s10, 3
      %p111 = por %p109, %p110
      %p112 = scmp.ne.s32.totalorder %s104, %s107
      %p113 = scmp.eq.s32.totalorder %s10, 0
      %p114 = por %p112, %p113
      %p115 = scmp.ne.s32.totalorder %s104, %s107
      %p116 = scmp.eq.s32.totalorder %s15, 3
      %p117 = por %p115, %p116
      %p118 = scmp.ne.s32.totalorder %s107, %s108
      %p119 = scmp.eq.s32.totalorder %s15, 0
      %p120 = por %p118, %p119
      %p121 = scmp.ne.s32.totalorder %s107, %s108
      %p122 = scmp.eq.s32.totalorder %s16, 3
      %p123 = por %p121, %p122
      %p125 = scmp.ne.s32.totalorder %s108, %s124
      %p126 = scmp.eq.s32.totalorder %s16, 0
      %p127 = por %p125, %p126
      %p128 = scmp.le.s32.totalorder 1, %s10
      %p129 = scmp.lt.s32.totalorder %s10, 5
      %p130 = pnand %p128, %p129
      %p131 = pneg %p130
      // Predicated region
      $region9: #{forward.4} parent=5 // pred_check
        _
      $region10: #{forward.4} parent=5 // pred_check_branch
        %133 = sbr.rel (%p130) target = $region12
      $region11: #{forward.4} parent=5 // pred_region
        %s134 = ssub.s32 %s10, 1
        // Predicated region
        $region13: #{forward.4} parent=11 // pred_check
          %p135 = pneg %p71
        $region14: #{forward.4} parent=11 // pred_check_branch
          %137 = sbr.rel (%p135) target = $region16
        $region15: #{forward.4} parent=11 // pred_region
          %139 = vsyncadd [#allocation4], 0
          %s140 = sshll.u32 %s1, 4
          %s141 = int_to_ptr.hbm [resolvable:$true] %s140
          %s142 = sshll.u32 [#allocation3], 4
          %s143 = int_to_ptr.vmem [resolvable:$true] %s142
          %148 = dma.hbm_to_vmem [thread:$0]  %s141, 256, %s143, [#allocation4], 64, 64, 4
        $region16: #{forward.4} parent=11 // pred_fallthru
          _
        // Predicated region
        $region17: #{forward.4} parent=11 // pred_check
          %p149 = pneg %p92
        $region18: #{forward.4} parent=11 // pred_check_branch
          %151 = sbr.rel (%p149) target = $region20
        $region19: #{forward.4} parent=11 // pred_region
          _
        $region20: #{forward.4} parent=11 // pred_fallthru
          _
      $region12: #{forward.4} parent=5 // pred_fallthru
        _
      %p152 = scmp.lt.s32.totalorder %s10, 4
      // Predicated region
      $region21: #{forward.4} parent=5 // pred_check
        %p153 = pneg %p152
      $region22: #{forward.4} parent=5 // pred_check_branch
        %155 = sbr.rel (%p153) target = $region24
      $region23: #{forward.4} parent=5 // pred_region
        // Predicated region
        $region25: #{forward.4} parent=23 // pred_check
          %p156 = pneg %p44
        $region26: #{forward.4} parent=23 // pred_check_branch
          %158 = sbr.rel (%p156) target = $region28
        $region27: #{forward.4} parent=23 // pred_region
          %s159 = sand.u32 %s34, 1
          %s160 = sand.u32 %s34, 1
          %s161 = smul.addr %s160, 20
          %s162 = scalar_lea.vmem [#allocation2], %s161
          %s163 = smul.addr %s17, 10
          %s164 = sadd.s32 %s18, %s163
          %s165 = smul.addr %s164, 4
          %s166 = scalar_lea.vmem %s0, %s165
          // Predicated region
          $region29: #{forward.4} parent=27 // pred_check
            _
          $region30: #{forward.4} parent=27 // pred_check_branch
            %168 = sbr.rel (0) target = $region32
          $region31: #{forward.4} parent=27 // pred_region
            // Predicated region
            $region33: #{forward.4} parent=31 // pred_check
              _
            $region34: #{forward.4} parent=31 // pred_check_branch
              %170 = sbr.rel target = $region36
            $region35: #{forward.4} parent=31 // pred_region
              // Predicated region
              $region48: #{forward.4} parent=35 // pred_check
                _
              $region49: #{forward.4} parent=35 // pred_check_branch
                %194 = sbr.rel (0) target = $region51
              $region50: #{forward.4} parent=35 // pred_region
                loop: start=0, step=1, limit=1
                $region52: #{forward.4} parent=50 // loop_pre_header
                  _
                $region53: #{forward.4} parent=50 // loop_header
                  %s196 = sphi 0, %s200
                  %p197 = scmp.ge.s32.totalorder %s196, 1
                  %s201 = sphi %s166, %s166
                  %s202 = sphi %s162, %s162
                $region54: #{forward.4} parent=50 // loop_header_branch
                  %199 = sbr.rel (%p197) target = $region58
                $region55: #{forward.4} parent=50 // loop_body
                  _
                $region56: #{forward.4} parent=50 // loop_footer
                  %s200 = sadd.s32 1, %s196
                $region57: #{forward.4} parent=50 // loop_footer_branch
                  %195 = sbr.rel target = $region53
                $region58: #{forward.4} parent=50 // loop_exit
                  _
                %s204 = ssub.s32 16, 1
                loop: start=0, step=1, limit=1
                $region59: #{forward.4} parent=50 // loop_pre_header
                  _
                $region60: #{forward.4} parent=50 // loop_header
                  %s206 = sphi 0, %s210
                  %p207 = scmp.ge.s32.totalorder %s206, 1
                  %s211 = sphi %s166, %s166
                  %s212 = sphi %s162, %s162
                $region61: #{forward.4} parent=50 // loop_header_branch
                  %209 = sbr.rel (%p207) target = $region65
                $region62: #{forward.4} parent=50 // loop_body
                  %v213 = vld [vmem:[%s211] sm:%s204]
                  %214 = vst [vmem:[%s212] sm:%s204] %v213
                  %v215 = vld [vmem:[%s211 + $0x8] sm:%s204]
                  %216 = vst [vmem:[%s212 + $0x4] sm:%s204] %v215
                  %v217 = vld [vmem:[%s211 + $0x10] sm:%s204]
                  %218 = vst [vmem:[%s212 + $0x8] sm:%s204] %v217
                  %v219 = vld [vmem:[%s211 + $0x18] sm:%s204]
                  %220 = vst [vmem:[%s212 + $0xc] sm:%s204] %v219
                  %v221 = vld [vmem:[%s211 + $0x20] sm:%s204]
                  %222 = vst [vmem:[%s212 + $0x10] sm:%s204] %v221
                $region63: #{forward.4} parent=50 // loop_footer
                  %s210 = sadd.s32 1, %s206
                $region64: #{forward.4} parent=50 // loop_footer_branch
                  %205 = sbr.rel target = $region60
                $region65: #{forward.4} parent=50 // loop_exit
                  _
              $region51: #{forward.4} parent=35 // pred_fallthru
                _
            $region36: #{forward.4} parent=31 // pred_fallthru
              _
            // Predicated region
            $region37: #{forward.4} parent=31 // pred_check
              _
            $region38: #{forward.4} parent=31 // pred_check_branch
              %172 = sbr.rel (0) target = $region40
            $region39: #{forward.4} parent=31 // pred_region
              %s174 = ssub.s32 16, 1
              loop: start=0, step=1, limit=1
              $region41: #{forward.4} parent=39 // loop_pre_header
                _
              $region42: #{forward.4} parent=39 // loop_header
                %s176 = sphi 0, %s180
                %p177 = scmp.ge.s32.totalorder %s176, 1
                %s181 = sphi %s166, %s166
                %s182 = sphi %s162, %s162
              $region43: #{forward.4} parent=39 // loop_header_branch
                %179 = sbr.rel (%p177) target = $region47
              $region44: #{forward.4} parent=39 // loop_body
                %v183 = vld [vmem:[%s181] sm:%s174]
                %184 = vst [vmem:[%s182] sm:%s174] %v183
                %v185 = vld [vmem:[%s181 + $0x8] sm:%s174]
                %186 = vst [vmem:[%s182 + $0x4] sm:%s174] %v185
                %v187 = vld [vmem:[%s181 + $0x10] sm:%s174]
                %188 = vst [vmem:[%s182 + $0x8] sm:%s174] %v187
                %v189 = vld [vmem:[%s181 + $0x18] sm:%s174]
                %190 = vst [vmem:[%s182 + $0xc] sm:%s174] %v189
                %v191 = vld [vmem:[%s181 + $0x20] sm:%s174]
                %192 = vst [vmem:[%s182 + $0x10] sm:%s174] %v191
              $region45: #{forward.4} parent=39 // loop_footer
                %s180 = sadd.s32 1, %s176
              $region46: #{forward.4} parent=39 // loop_footer_branch
                %175 = sbr.rel target = $region42
              $region47: #{forward.4} parent=39 // loop_exit
                _
            $region40: #{forward.4} parent=31 // pred_fallthru
              _
          $region32: #{forward.4} parent=27 // pred_fallthru
            _
          %223 = vnop
        $region28: #{forward.4} parent=23 // pred_fallthru
          _
      $region24: #{forward.4} parent=5 // pred_fallthru
        _
      %p224 = scmp.le.s32.totalorder 1, %s10
      %p225 = scmp.lt.s32.totalorder %s10, 5
      %p226 = pnand %p224, %p225
      %p227 = pneg %p226
      // Predicated region
      $region66: #{forward.4} parent=5 // pred_check
        _
      $region67: #{forward.4} parent=5 // pred_check_branch
        %229 = sbr.rel (%p226) target = $region69
      $region68: #{forward.4} parent=5 // pred_region
        %s230 = ssub.s32 %s10, 1
        %s231 = sand.u32 %s37, 1
        %s232 = sand.u32 %s37, 1
        %s233 = smul.addr %s232, 20
        %s234 = scalar_lea.vmem [#allocation2], %s233
        // Predicated region
        $region70: #{forward.4} parent=68 // pred_check
          %p235 = pneg %p50
        $region71: #{forward.4} parent=68 // pred_check_branch
          %237 = sbr.rel (%p235) target = $region73
        $region72: #{forward.4} parent=68 // pred_region
          _
        $region73: #{forward.4} parent=68 // pred_fallthru
          _
        // Predicated region
        $region74: #{forward.4} parent=68 // pred_check
          %p238 = pneg %p71
        $region75: #{forward.4} parent=68 // pred_check_branch
          %240 = sbr.rel (%p238) target = $region77
        $region76: #{forward.4} parent=68 // pred_region
          %242 = dma.done [#allocation4], 256
        $region77: #{forward.4} parent=68 // pred_fallthru
          _
        %s243 = sand.u32 %s37, 1
        %s244 = sand.u32 %s37, 1
        %s245 = smul.addr %s244, 20
        %s246 = scalar_lea.vmem [#allocation2], %s245
        %p247 = pneg %p50
        %p248 = pneg %p47
        %p249 = pneg %p71
        %p250 = pneg %p68
        %p251 = pneg %p92
        %p252 = pneg %p89
        %p253 = pneg %p120
        %p254 = pneg %p117
        %s255 = sand.u32 %s107, 1
        %s256 = sand.u32 %s107, 1
        %s257 = smul.addr %s256, 16
        %s258 = scalar_lea.vmem [#allocation5], %s257
        %v260 = vld [vmem:[#allocation3] sm:$0xf]
        %v261 = vld [vmem:[#allocation3 + $0x4] sm:$0xf]
        %v262 = vld [vmem:[#allocation3 + $0x8] sm:$0xf]
        %v263 = vld [vmem:[#allocation3 + $0xc] sm:$0xf]
        %v264 = vld [vmem:[%s234] sm:$0xf]
        %v265 = vld [vmem:[%s234 + $0x4] sm:$0xf]
        %v266 = vld [vmem:[%s234 + $0x8] sm:$0xf]
        %v267 = vld [vmem:[%s234 + $0xc] sm:$0xf]
        %v268 = vld [vmem:[%s234 + $0x10] sm:$0x3]
        %v269 = vld [vmem:[%s2] sm:$0xff]
        %v270 = vld [vmem:[%s2 + $0x8] sm:$0xff]
        %v271 = vld [vmem:[%s2 + $0x10] sm:$0xff]
        %v272 = vld [vmem:[%s2 + $0x18] sm:$0xff]
        %274 = vset.pattern.permute.xlu0 0
        %275 = vperm.xlu0 %274, %v269
        %v276 = vpop.permute.xlu0 %275
        %279 = vset.pattern.permute.xlu0 0
        %280 = vperm.xlu0 %279, %v270
        %v281 = vpop.permute.xlu0 %280
        %284 = vset.pattern.permute.xlu0 0
        %285 = vperm.xlu0 %284, %v271
        %v286 = vpop.permute.xlu0 %285
        %289 = vset.pattern.permute.xlu0 0
        %290 = vperm.xlu0 %289, %v272
        %v291 = vpop.permute.xlu0 %290
        %v297 = vunpack.c.l.b16 %v260
        %v298 = vunpack.c.l.b16 %v261
        %v299 = vunpack.c.l.b16 %v262
        %v300 = vunpack.c.l.b16 %v263
        %v301 = vpack.c.b16 %v298, %v297
        %v302 = vpack.c.b16 %v300, %v299
        %v308 = vunpack.c.l.b16 %v264
        %v309 = vunpack.c.l.b16 %v265
        %v310 = vunpack.c.l.b16 %v266
        %v311 = vunpack.c.l.b16 %v267
        %v312 = vunpack.c.l.b16 %v268
        %v313 = vpack.c.b16 %v309, %v308
        %v314 = vpack.c.b16 %v311, %v310
        %v315 = vpack.c.b16 %v312, %v312
        %vm318 = vcmask 293888
        %v320 = vsel %vm318, %v301, 0
        %v323 = vsel %vm318, %v302, 0
        %vm325 = vcmask 1041408
        %v327 = vsel %vm325, %v315, 0
        %329 = vmatpush.bf16.msra.mxu0 0
        %330 = vmatpush.bf16.msra.mxu0 0
        %331 = vmatpush.bf16.msra.mxu0 0
        %332 = vmatpush.bf16.msra.mxu0 0
        %333 = vmatpush.bf16.msra.mxu0 0
        %334 = vmatpush.bf16.msra.mxu0 %v327
        %335 = vmatpush.bf16.msra.mxu0 %v314
        %336 = vmatpush.bf16.msra.mxu0 %v313
        %337 = vmatmul.bf16.gmra.mxu0 %v320
        %v338 = vpop.f32.mrf.mxu0
        %v339 = vadd.f32 %v276, %v338
        %v340 = vpop.f32.mrf.mxu0
        %v341 = vadd.f32 %v281, %v340
        %342 = vmatmul.bf16.gmra.mxu0 %v323
        %v343 = vpop.f32.mrf.mxu0
        %v344 = vadd.f32 %v286, %v343
        %v345 = vpop.f32.mrf.mxu0
        %v346 = vadd.f32 %v291, %v345
        %347 = vdwg.mxu0
        %v348 = vxor.u32 %v339, 2147483648
        %v349 = vxor.u32 %v341, 2147483648
        %v350 = vxor.u32 %v344, 2147483648
        %v351 = vxor.u32 %v346, 2147483648
        %v352 = vmul.f32 %v348, 1.442695
        %v353 = vpow.pop %v352
        %v354 = vmul.f32 %v349, 1.442695
        %v355 = vpow.pop %v354
        %v356 = vmul.f32 %v350, 1.442695
        %v357 = vpow.pop %v356
        %v358 = vmul.f32 %v351, 1.442695
        %v359 = vpow.pop %v358
        %v360 = vadd.f32 %v353, 1.0
        %v361 = vadd.f32 %v355, 1.0
        %v362 = vadd.f32 %v357, 1.0
        %v363 = vadd.f32 %v359, 1.0
        %v364 = vrcp.pop %v360
        %v365 = vmul.f32 %v360, %v364
        %v366 = vsub.f32 1.0, %v365
        %v367 = vmul.f32 %v364, %v366
        %v368 = vadd.f32 %v364, %v367
        %vm369 = vweird.f32 %v360
        %vm370 = vweird.f32 %v364
        %vm371 = vmor %vm369, %vm370
        %v372 = vsel %vm371, %v364, %v368
        %v373 = vand.u32 2147483647, %v360
        %vm374 = vcmp.eq.f32.partialorder %v373, 8.507059e+37
        %v375 = vand.u32 %v360, 2147483648
        %v376 = vor.u32 1.1754944e-38, %v375
        %v377 = vsel %vm374, %v376, %v372
        %v378 = vmul.f32 1.0, %v377
        %v379 = vrcp.pop %v361
        %v380 = vmul.f32 %v361, %v379
        %v381 = vsub.f32 1.0, %v380
        %v382 = vmul.f32 %v379, %v381
        %v383 = vadd.f32 %v379, %v382
        %vm384 = vweird.f32 %v361
        %vm385 = vweird.f32 %v379
        %vm386 = vmor %vm384, %vm385
        %v387 = vsel %vm386, %v379, %v383
        %v388 = vand.u32 2147483647, %v361
        %vm389 = vcmp.eq.f32.partialorder %v388, 8.507059e+37
        %v390 = vand.u32 %v361, 2147483648
        %v391 = vor.u32 1.1754944e-38, %v390
        %v392 = vsel %vm389, %v391, %v387
        %v393 = vmul.f32 1.0, %v392
        %v394 = vrcp.pop %v362
        %v395 = vmul.f32 %v362, %v394
        %v396 = vsub.f32 1.0, %v395
        %v397 = vmul.f32 %v394, %v396
        %v398 = vadd.f32 %v394, %v397
        %vm399 = vweird.f32 %v362
        %vm400 = vweird.f32 %v394
        %vm401 = vmor %vm399, %vm400
        %v402 = vsel %vm401, %v394, %v398
        %v403 = vand.u32 2147483647, %v362
        %vm404 = vcmp.eq.f32.partialorder %v403, 8.507059e+37
        %v405 = vand.u32 %v362, 2147483648
        %v406 = vor.u32 1.1754944e-38, %v405
        %v407 = vsel %vm404, %v406, %v402
        %v408 = vmul.f32 1.0, %v407
        %v409 = vrcp.pop %v363
        %v410 = vmul.f32 %v363, %v409
        %v411 = vsub.f32 1.0, %v410
        %v412 = vmul.f32 %v409, %v411
        %v413 = vadd.f32 %v409, %v412
        %vm414 = vweird.f32 %v363
        %vm415 = vweird.f32 %v409
        %vm416 = vmor %vm414, %vm415
        %v417 = vsel %vm416, %v409, %v413
        %v418 = vand.u32 2147483647, %v363
        %vm419 = vcmp.eq.f32.partialorder %v418, 8.507059e+37
        %v420 = vand.u32 %v363, 2147483648
        %v421 = vor.u32 1.1754944e-38, %v420
        %v422 = vsel %vm419, %v421, %v417
        %v423 = vmul.f32 1.0, %v422
        %v424 = vmul.f32 %v339, %v378
        %v425 = vmul.f32 %v341, %v393
        %v426 = vmul.f32 %v344, %v408
        %v427 = vmul.f32 %v346, %v423
        %v428 = vpack.c.bf16 %v424, %v424
        %v429 = vpack.c.bf16 %v425, %v425
        %v430 = vpack.c.bf16 %v426, %v426
        %v431 = vpack.c.bf16 %v427, %v427
        %432 = vst [vmem:[%s258] sm:$0xf] %v428
        %433 = vst [vmem:[%s258 + $0x4] sm:$0xf] %v429
        %434 = vst [vmem:[%s258 + $0x8] sm:$0xf] %v430
        %435 = vst [vmem:[%s258 + $0xc] sm:$0xf] %v431
        %s436 = sand.u32 %s107, 1
        %s437 = sand.u32 %s107, 1
        %s438 = smul.addr %s437, 16
        %s439 = scalar_lea.vmem [#allocation5], %s438
        // Predicated region
        $region78: #{forward.4} parent=68 // pred_check
          %p440 = pneg %p117
        $region79: #{forward.4} parent=68 // pred_check_branch
          %442 = sbr.rel (%p440) target = $region81
        $region80: #{forward.4} parent=68 // pred_region
          %s443 = smul.addr %s19, 8
          %s444 = sadd.s32 %s20, %s443
          %s445 = smul.addr %s444, 4
          %s446 = scalar_lea.vmem %s3, %s445
          // Predicated region
          $region82: #{forward.4} parent=80 // pred_check
            _
          $region83: #{forward.4} parent=80 // pred_check_branch
            %448 = sbr.rel (0) target = $region85
          $region84: #{forward.4} parent=80 // pred_region
            // Predicated region
            $region86: #{forward.4} parent=84 // pred_check
              _
            $region87: #{forward.4} parent=84 // pred_check_branch
              %450 = sbr.rel target = $region89
            $region88: #{forward.4} parent=84 // pred_region
              // Predicated region
              $region101: #{forward.4} parent=88 // pred_check
                _
              $region102: #{forward.4} parent=88 // pred_check_branch
                %472 = sbr.rel (0) target = $region104
              $region103: #{forward.4} parent=88 // pred_region
                loop: start=0, step=1, limit=1
                $region105: #{forward.4} parent=103 // loop_pre_header
                  _
                $region106: #{forward.4} parent=103 // loop_header
                  %s474 = sphi 0, %s478
                  %p475 = scmp.ge.s32.totalorder %s474, 1
                  %s479 = sphi %s439, %s439
                  %s480 = sphi %s446, %s446
                $region107: #{forward.4} parent=103 // loop_header_branch
                  %477 = sbr.rel (%p475) target = $region111
                $region108: #{forward.4} parent=103 // loop_body
                  _
                $region109: #{forward.4} parent=103 // loop_footer
                  %s478 = sadd.s32 1, %s474
                $region110: #{forward.4} parent=103 // loop_footer_branch
                  %473 = sbr.rel target = $region106
                $region111: #{forward.4} parent=103 // loop_exit
                  _
                %s482 = ssub.s32 16, 1
                loop: start=0, step=1, limit=1
                $region112: #{forward.4} parent=103 // loop_pre_header
                  _
                $region113: #{forward.4} parent=103 // loop_header
                  %s484 = sphi 0, %s488
                  %p485 = scmp.ge.s32.totalorder %s484, 1
                  %s489 = sphi %s439, %s439
                  %s490 = sphi %s446, %s446
                $region114: #{forward.4} parent=103 // loop_header_branch
                  %487 = sbr.rel (%p485) target = $region118
                $region115: #{forward.4} parent=103 // loop_body
                  %v491 = vld [vmem:[%s489] sm:%s482]
                  %492 = vst [vmem:[%s490] sm:%s482] %v491
                  %v493 = vld [vmem:[%s489 + $0x4] sm:%s482]
                  %494 = vst [vmem:[%s490 + $0x8] sm:%s482] %v493
                  %v495 = vld [vmem:[%s489 + $0x8] sm:%s482]
                  %496 = vst [vmem:[%s490 + $0x10] sm:%s482] %v495
                  %v497 = vld [vmem:[%s489 + $0xc] sm:%s482]
                  %498 = vst [vmem:[%s490 + $0x18] sm:%s482] %v497
                $region116: #{forward.4} parent=103 // loop_footer
                  %s488 = sadd.s32 1, %s484
                $region117: #{forward.4} parent=103 // loop_footer_branch
                  %483 = sbr.rel target = $region113
                $region118: #{forward.4} parent=103 // loop_exit
                  _
              $region104: #{forward.4} parent=88 // pred_fallthru
                _
            $region89: #{forward.4} parent=84 // pred_fallthru
              _
            // Predicated region
            $region90: #{forward.4} parent=84 // pred_check
              _
            $region91: #{forward.4} parent=84 // pred_check_branch
              %452 = sbr.rel (0) target = $region93
            $region92: #{forward.4} parent=84 // pred_region
              %s454 = ssub.s32 16, 1
              loop: start=0, step=1, limit=1
              $region94: #{forward.4} parent=92 // loop_pre_header
                _
              $region95: #{forward.4} parent=92 // loop_header
                %s456 = sphi 0, %s460
                %p457 = scmp.ge.s32.totalorder %s456, 1
                %s461 = sphi %s439, %s439
                %s462 = sphi %s446, %s446
              $region96: #{forward.4} parent=92 // loop_header_branch
                %459 = sbr.rel (%p457) target = $region100
              $region97: #{forward.4} parent=92 // loop_body
                %v463 = vld [vmem:[%s461] sm:%s454]
                %464 = vst [vmem:[%s462] sm:%s454] %v463
                %v465 = vld [vmem:[%s461 + $0x4] sm:%s454]
                %466 = vst [vmem:[%s462 + $0x8] sm:%s454] %v465
                %v467 = vld [vmem:[%s461 + $0x8] sm:%s454]
                %468 = vst [vmem:[%s462 + $0x10] sm:%s454] %v467
                %v469 = vld [vmem:[%s461 + $0xc] sm:%s454]
                %470 = vst [vmem:[%s462 + $0x18] sm:%s454] %v469
              $region98: #{forward.4} parent=92 // loop_footer
                %s460 = sadd.s32 1, %s456
              $region99: #{forward.4} parent=92 // loop_footer_branch
                %455 = sbr.rel target = $region95
              $region100: #{forward.4} parent=92 // loop_exit
                _
            $region93: #{forward.4} parent=84 // pred_fallthru
              _
          $region85: #{forward.4} parent=80 // pred_fallthru
            _
          %499 = vnop
        $region81: #{forward.4} parent=68 // pred_fallthru
          _
      $region69: #{forward.4} parent=5 // pred_fallthru
        _
      %p500 = scmp.le.s32.totalorder 2, %s10
      // Predicated region
      $region119: #{forward.4} parent=5 // pred_check
        %p501 = pneg %p500
      $region120: #{forward.4} parent=5 // pred_check_branch
        %503 = sbr.rel (%p501) target = $region122
      $region121: #{forward.4} parent=5 // pred_region
        %s504 = ssub.s32 %s10, 2
        // Predicated region
        $region123: #{forward.4} parent=121 // pred_check
          %p505 = pneg %p123
        $region124: #{forward.4} parent=121 // pred_check_branch
          %507 = sbr.rel (%p505) target = $region126
        $region125: #{forward.4} parent=121 // pred_region
          %s508 = sand.u32 %s108, 1
          %s509 = sand.u32 %s108, 1
          %s510 = smul.addr %s509, 16
          %s511 = scalar_lea.vmem [#allocation5], %s510
        $region126: #{forward.4} parent=121 // pred_fallthru
          _
      $region122: #{forward.4} parent=5 // pred_fallthru
        _
    $region6: #{forward.4} parent=1 // loop_footer
      %s14 = sadd.s32 1, %s10
    $region7: #{forward.4} parent=1 // loop_footer_branch
      %9 = sbr.rel target = $region3
    $region8: #{forward.4} parent=1 // loop_exit
      _
    %512 = vsyncpa [#allocation4], 1
    %s513 = scalar_lea.sflag [#allocation4], 1
    %514 = vsyncpa %s513, 1

// kernel: forward.5
$region0: #{forward.5}
  #allocation0 [shape = 'u32[]', space=smem, size = 0x4, offset = 0x4, fixed_abs, tag = 'smem constant byte address 0x4 - core index']
  #allocation1 [shape = 'u32[72,128]{1,0:T(1,128)}', space=vmem, size = 0x9000, scoped, tag = 'internal scratch']
  %s0 = inlined_call_operand.vmem [shape: bf16[2,288,1024], index: 0, kind: input, shape index: {}]
  %s1 = inlined_call_operand.vmem [shape: bf16[32,288], index: 1, kind: input, shape index: {}]
  %s2 = inlined_call_operand.vmem [shape: f32[32,1], index: 2, kind: input, shape index: {}]
  %s3 = inlined_call_operand.vmem [shape: bf16[2,32,1024], index: 3, kind: input, shape index: {}]
  %s4 = inlined_call_operand.vmem [shape: bf16[32,32], index: 4, kind: input, shape index: {}]
  %s5 = inlined_call_operand.vmem [shape: bf16[2,32,1024], index: 5, kind: output, shape index: {}]
  %s6 = sld [smem:[#allocation0]]
  $region118: #{forward.5} parent=0
    _
  %s8 = ssub.s32 1, %s6
  %s9 = scalar_select 0, %s8, %s6
  $region1: #{forward.5} parent=0
    #allocation2 [shape = 'u8[589824]{0}', space=vmem, size = 0x90000, scoped, tag = 'input window, operand 0']
    #allocation3 [shape = 'u8[65536]{0}', space=vmem, size = 0x10000, scoped, tag = 'input window, operand 3']
    #allocation4 [shape = 'u8[65536]{0}', space=vmem, size = 0x10000, scoped, tag = 'output window, operand 0']
    loop: start=0, step=1, limit=6
    $region2: #{forward.5} parent=1 // loop_pre_header
      _
    $region3: #{forward.5} parent=1 // loop_header
      %s11 = sphi 0, %s15
      %p12 = scmp.ge.s32.totalorder %s11, 6
      %s18 = sphi 0, %s30
      %s19 = sphi 0, %s26
      %s20 = sphi 0, %s18
      %s21 = sphi 0, %s19
      %s22 = sphi 0, %s20
      %s23 = sphi 0, %s21
      %s35 = sphi 0, %s37
      %s38 = sphi 0, %s35
      %s39 = sphi 0, %s38
      %s55 = sphi 0, %s39
      %s59 = sphi 0, %s59
      %s61 = sphi 0, %s59
      %s62 = sphi 0, %s61
      %s76 = sphi 0, %s62
      %s80 = sphi 0, %s80
      %s82 = sphi 0, %s80
      %s83 = sphi 0, %s82
      %s97 = sphi 0, %s83
      %s105 = sphi 0, %s107
      %s108 = sphi 0, %s105
      %s109 = sphi 0, %s108
      %s125 = sphi 0, %s109
      %s129 = sphi 0, %s129
      %s131 = sphi 0, %s129
      %s132 = sphi 0, %s131
      %s146 = sphi 0, %s132
      %s154 = sphi 0, %s156
      %s157 = sphi 0, %s154
      %s158 = sphi 0, %s157
      %s174 = sphi 0, %s158
    $region4: #{forward.5} parent=1 // loop_header_branch
      %14 = sbr.rel (%p12) target = $region8
    $region5: #{forward.5} parent=1 // loop_body
      %s16 = ssub.s32 %s11, 1
      %s17 = ssub.s32 %s11, 2
      %s24 = sadd.s32 1, %s19
      %p25 = scmp.ge.s32.totalorder %s24, 2
      %s26 = scalar_select %p25, 0, %s24
      %s27 = sadd.s32 1, %s18
      %s28 = scalar_select %p25, %s27, %s18
      %p29 = scmp.ge.s32.totalorder %s28, 2
      %s30 = scalar_select %p29, 0, %s28
      %s31 = ssub.s32 %s18, %s30
      %s32 = ssub.s32 %s19, %s26
      %s33 = sor.u32 %s31, %s32
      %p34 = scmp.eq.s32.totalorder %s33, 0
      %s36 = sadd.s32 %s35, 1
      %s37 = scalar_select %p34, %s35, %s36
      %p40 = pneg %p34
      %p41 = scmp.eq.s32.totalorder %s11, 3
      %p42 = por %p40, %p41
      %p43 = scmp.ne.s32.totalorder %s35, %s38
      %p44 = scmp.eq.s32.totalorder %s11, 0
      %p45 = por %p43, %p44
      %p46 = scmp.ne.s32.totalorder %s35, %s38
      %p47 = scmp.eq.s32.totalorder %s16, 3
      %p48 = por %p46, %p47
      %p49 = scmp.ne.s32.totalorder %s38, %s39
      %p50 = scmp.eq.s32.totalorder %s16, 0
      %p51 = por %p49, %p50
      %p52 = scmp.ne.s32.totalorder %s38, %s39
      %p53 = scmp.eq.s32.totalorder %s17, 3
      %p54 = por %p52, %p53
      %p56 = scmp.ne.s32.totalorder %s39, %s55
      %p57 = scmp.eq.s32.totalorder %s17, 0
      %p58 = por %p56, %p57
      %s60 = sadd.s32 %s59, 1
      %p63 = scmp.eq.s32.totalorder %s11, 3
      %p64 = scmp.ne.s32.totalorder %s59, %s61
      %p65 = scmp.eq.s32.totalorder %s11, 0
      %p66 = por %p64, %p65
      %p67 = scmp.ne.s32.totalorder %s59, %s61
      %p68 = scmp.eq.s32.totalorder %s16, 3
      %p69 = por %p67, %p68
      %p70 = scmp.ne.s32.totalorder %s61, %s62
      %p71 = scmp.eq.s32.totalorder %s16, 0
      %p72 = por %p70, %p71
      %p73 = scmp.ne.s32.totalorder %s61, %s62
      %p74 = scmp.eq.s32.totalorder %s17, 3
      %p75 = por %p73, %p74
      %p77 = scmp.ne.s32.totalorder %s62, %s76
      %p78 = scmp.eq.s32.totalorder %s17, 0
      %p79 = por %p77, %p78
      %s81 = sadd.s32 %s80, 1
      %p84 = scmp.eq.s32.totalorder %s11, 3
      %p85 = scmp.ne.s32.totalorder %s80, %s82
      %p86 = scmp.eq.s32.totalorder %s11, 0
      %p87 = por %p85, %p86
      %p88 = scmp.ne.s32.totalorder %s80, %s82
      %p89 = scmp.eq.s32.totalorder %s16, 3
      %p90 = por %p88, %p89
      %p91 = scmp.ne.s32.totalorder %s82, %s83
      %p92 = scmp.eq.s32.totalorder %s16, 0
      %p93 = por %p91, %p92
      %p94 = scmp.ne.s32.totalorder %s82, %s83
      %p95 = scmp.eq.s32.totalorder %s17, 3
      %p96 = por %p94, %p95
      %p98 = scmp.ne.s32.totalorder %s83, %s97
      %p99 = scmp.eq.s32.totalorder %s17, 0
      %p100 = por %p98, %p99
      %s101 = ssub.s32 %s18, %s30
      %s102 = ssub.s32 %s19, %s26
      %s103 = sor.u32 %s101, %s102
      %p104 = scmp.eq.s32.totalorder %s103, 0
      %s106 = sadd.s32 %s105, 1
      %s107 = scalar_select %p104, %s105, %s106
      %p110 = pneg %p104
      %p111 = scmp.eq.s32.totalorder %s11, 3
      %p112 = por %p110, %p111
      %p113 = scmp.ne.s32.totalorder %s105, %s108
      %p114 = scmp.eq.s32.totalorder %s11, 0
      %p115 = por %p113, %p114
      %p116 = scmp.ne.s32.totalorder %s105, %s108
      %p117 = scmp.eq.s32.totalorder %s16, 3
      %p118 = por %p116, %p117
      %p119 = scmp.ne.s32.totalorder %s108, %s109
      %p120 = scmp.eq.s32.totalorder %s16, 0
      %p121 = por %p119, %p120
      %p122 = scmp.ne.s32.totalorder %s108, %s109
      %p123 = scmp.eq.s32.totalorder %s17, 3
      %p124 = por %p122, %p123
      %p126 = scmp.ne.s32.totalorder %s109, %s125
      %p127 = scmp.eq.s32.totalorder %s17, 0
      %p128 = por %p126, %p127
      %s130 = sadd.s32 %s129, 1
      %p133 = scmp.eq.s32.totalorder %s11, 3
      %p134 = scmp.ne.s32.totalorder %s129, %s131
      %p135 = scmp.eq.s32.totalorder %s11, 0
      %p136 = por %p134, %p135
      %p137 = scmp.ne.s32.totalorder %s129, %s131
      %p138 = scmp.eq.s32.totalorder %s16, 3
      %p139 = por %p137, %p138
      %p140 = scmp.ne.s32.totalorder %s131, %s132
      %p141 = scmp.eq.s32.totalorder %s16, 0
      %p142 = por %p140, %p141
      %p143 = scmp.ne.s32.totalorder %s131, %s132
      %p144 = scmp.eq.s32.totalorder %s17, 3
      %p145 = por %p143, %p144
      %p147 = scmp.ne.s32.totalorder %s132, %s146
      %p148 = scmp.eq.s32.totalorder %s17, 0
      %p149 = por %p147, %p148
      %s150 = ssub.s32 %s18, %s30
      %s151 = ssub.s32 %s19, %s26
      %s152 = sor.u32 %s150, %s151
      %p153 = scmp.eq.s32.totalorder %s152, 0
      %s155 = sadd.s32 %s154, 1
      %s156 = scalar_select %p153, %s154, %s155
      %p159 = pneg %p153
      %p160 = scmp.eq.s32.totalorder %s11, 3
      %p161 = por %p159, %p160
      %p162 = scmp.ne.s32.totalorder %s154, %s157
      %p163 = scmp.eq.s32.totalorder %s11, 0
      %p164 = por %p162, %p163
      %p165 = scmp.ne.s32.totalorder %s154, %s157
      %p166 = scmp.eq.s32.totalorder %s16, 3
      %p167 = por %p165, %p166
      %p168 = scmp.ne.s32.totalorder %s157, %s158
      %p169 = scmp.eq.s32.totalorder %s16, 0
      %p170 = por %p168, %p169
      %p171 = scmp.ne.s32.totalorder %s157, %s158
      %p172 = scmp.eq.s32.totalorder %s17, 3
      %p173 = por %p171, %p172
      %p175 = scmp.ne.s32.totalorder %s158, %s174
      %p176 = scmp.eq.s32.totalorder %s17, 0
      %p177 = por %p175, %p176
      %p178 = scmp.le.s32.totalorder 1, %s11
      %p179 = scmp.lt.s32.totalorder %s11, 5
      %p180 = pnand %p178, %p179
      %p181 = pneg %p180
      // Predicated region
      $region9: #{forward.5} parent=5 // pred_check
        _
      $region10: #{forward.5} parent=5 // pred_check_branch
        %183 = sbr.rel (%p180) target = $region12
      $region11: #{forward.5} parent=5 // pred_region
        %s184 = ssub.s32 %s11, 1
        // Predicated region
        $region13: #{forward.5} parent=11 // pred_check
          %p185 = pneg %p72
        $region14: #{forward.5} parent=11 // pred_check_branch
          %187 = sbr.rel (%p185) target = $region16
        $region15: #{forward.5} parent=11 // pred_region
          _
        $region16: #{forward.5} parent=11 // pred_fallthru
          _
        // Predicated region
        $region17: #{forward.5} parent=11 // pred_check
          %p188 = pneg %p93
        $region18: #{forward.5} parent=11 // pred_check_branch
          %190 = sbr.rel (%p188) target = $region20
        $region19: #{forward.5} parent=11 // pred_region
          _
        $region20: #{forward.5} parent=11 // pred_fallthru
          _
        // Predicated region
        $region21: #{forward.5} parent=11 // pred_check
          %p191 = pneg %p142
        $region22: #{forward.5} parent=11 // pred_check_branch
          %193 = sbr.rel (%p191) target = $region24
        $region23: #{forward.5} parent=11 // pred_region
          _
        $region24: #{forward.5} parent=11 // pred_fallthru
          _
      $region12: #{forward.5} parent=5 // pred_fallthru
        _
      %p194 = scmp.lt.s32.totalorder %s11, 4
      // Predicated region
      $region25: #{forward.5} parent=5 // pred_check
        %p195 = pneg %p194
      $region26: #{forward.5} parent=5 // pred_check_branch
        %197 = sbr.rel (%p195) target = $region28
      $region27: #{forward.5} parent=5 // pred_region
        // Predicated region
        $region29: #{forward.5} parent=27 // pred_check
          %p198 = pneg %p45
        $region30: #{forward.5} parent=27 // pred_check_branch
          %200 = sbr.rel (%p198) target = $region32
        $region31: #{forward.5} parent=27 // pred_region
          %s201 = sand.u32 %s35, 1
          %s202 = sand.u32 %s35, 1
          %s203 = smul.addr %s202, 576
          %s204 = scalar_lea.vmem [#allocation2], %s203
          %s205 = smul.u32 4, %s19
          %s206 = smul.addr %s18, 288
          %s207 = sadd.s32 %s205, %s206
          %s208 = smul.addr %s207, 4
          %s209 = scalar_lea.vmem %s0, %s208
          // Predicated region
          $region33: #{forward.5} parent=31 // pred_check
            _
          $region34: #{forward.5} parent=31 // pred_check_branch
            %211 = sbr.rel (0) target = $region36
          $region35: #{forward.5} parent=31 // pred_region
            // Predicated region
            $region37: #{forward.5} parent=35 // pred_check
              _
            $region38: #{forward.5} parent=35 // pred_check_branch
              %213 = sbr.rel (0) target = $region40
            $region39: #{forward.5} parent=35 // pred_region
              loop: start=0, step=1, limit=1
              $region41: #{forward.5} parent=39 // loop_pre_header
                _
              $region42: #{forward.5} parent=39 // loop_header
                %s215 = sphi 0, %s219
                %p216 = scmp.ge.s32.totalorder %s215, 1
                %s220 = sphi %s209, %s209
                %s221 = sphi %s204, %s204
              $region43: #{forward.5} parent=39 // loop_header_branch
                %218 = sbr.rel (%p216) target = $region47
              $region44: #{forward.5} parent=39 // loop_body
                %v222 = vld [vmem:[%s220] sm:$0xff]
                %223 = vst [vmem:[%s221] sm:$0xff] %v222
                %v224 = vld [vmem:[%s220 + $0x8] sm:$0xff]
                %225 = vst [vmem:[%s221 + $0x8] sm:$0xff] %v224
                %v226 = vld [vmem:[%s220 + $0x20] sm:$0xff]
                %227 = vst [vmem:[%s221 + $0x10] sm:$0xff] %v226
                %v228 = vld [vmem:[%s220 + $0x28] sm:$0xff]
                %229 = vst [vmem:[%s221 + $0x18] sm:$0xff] %v228
                %v230 = vld [vmem:[%s220 + $0x40] sm:$0xff]
                %231 = vst [vmem:[%s221 + $0x20] sm:$0xff] %v230
                %v232 = vld [vmem:[%s220 + $0x48] sm:$0xff]
                %233 = vst [vmem:[%s221 + $0x28] sm:$0xff] %v232
                %v234 = vld [vmem:[%s220 + $0x60] sm:$0xff]
                %235 = vst [vmem:[%s221 + $0x30] sm:$0xff] %v234
                %v236 = vld [vmem:[%s220 + $0x68] sm:$0xff]
                %237 = vst [vmem:[%s221 + $0x38] sm:$0xff] %v236
                %v238 = vld [vmem:[%s220 + $0x80] sm:$0xff]
                %239 = vst [vmem:[%s221 + $0x40] sm:$0xff] %v238
                %v240 = vld [vmem:[%s220 + $0x88] sm:$0xff]
                %241 = vst [vmem:[%s221 + $0x48] sm:$0xff] %v240
                %v242 = vld [vmem:[%s220 + $0xa0] sm:$0xff]
                %243 = vst [vmem:[%s221 + $0x50] sm:$0xff] %v242
                %v244 = vld [vmem:[%s220 + $0xa8] sm:$0xff]
                %245 = vst [vmem:[%s221 + $0x58] sm:$0xff] %v244
                %v246 = vld [vmem:[%s220 + $0xc0] sm:$0xff]
                %247 = vst [vmem:[%s221 + $0x60] sm:$0xff] %v246
                %v248 = vld [vmem:[%s220 + $0xc8] sm:$0xff]
                %249 = vst [vmem:[%s221 + $0x68] sm:$0xff] %v248
                %v250 = vld [vmem:[%s220 + $0xe0] sm:$0xff]
                %251 = vst [vmem:[%s221 + $0x70] sm:$0xff] %v250
                %v252 = vld [vmem:[%s220 + $0xe8] sm:$0xff]
                %253 = vst [vmem:[%s221 + $0x78] sm:$0xff] %v252
                %v254 = vld [vmem:[%s220 + $0x100] sm:$0xff]
                %255 = vst [vmem:[%s221 + $0x80] sm:$0xff] %v254
                %v256 = vld [vmem:[%s220 + $0x108] sm:$0xff]
                %257 = vst [vmem:[%s221 + $0x88] sm:$0xff] %v256
                %v258 = vld [vmem:[%s220 + $0x120] sm:$0xff]
                %259 = vst [vmem:[%s221 + $0x90] sm:$0xff] %v258
                %v260 = vld [vmem:[%s220 + $0x128] sm:$0xff]
                %261 = vst [vmem:[%s221 + $0x98] sm:$0xff] %v260
                %v262 = vld [vmem:[%s220 + $0x140] sm:$0xff]
                %263 = vst [vmem:[%s221 + $0xa0] sm:$0xff] %v262
                %v264 = vld [vmem:[%s220 + $0x148] sm:$0xff]
                %265 = vst [vmem:[%s221 + $0xa8] sm:$0xff] %v264
                %v266 = vld [vmem:[%s220 + $0x160] sm:$0xff]
                %267 = vst [vmem:[%s221 + $0xb0] sm:$0xff] %v266
                %v268 = vld [vmem:[%s220 + $0x168] sm:$0xff]
                %269 = vst [vmem:[%s221 + $0xb8] sm:$0xff] %v268
                %v270 = vld [vmem:[%s220 + $0x180] sm:$0xff]
                %271 = vst [vmem:[%s221 + $0xc0] sm:$0xff] %v270
                %v272 = vld [vmem:[%s220 + $0x188] sm:$0xff]
                %273 = vst [vmem:[%s221 + $0xc8] sm:$0xff] %v272
                %v274 = vld [vmem:[%s220 + $0x1a0] sm:$0xff]
                %275 = vst [vmem:[%s221 + $0xd0] sm:$0xff] %v274
                %v276 = vld [vmem:[%s220 + $0x1a8] sm:$0xff]
                %277 = vst [vmem:[%s221 + $0xd8] sm:$0xff] %v276
                %v278 = vld [vmem:[%s220 + $0x1c0] sm:$0xff]
                %279 = vst [vmem:[%s221 + $0xe0] sm:$0xff] %v278
                %v280 = vld [vmem:[%s220 + $0x1c8] sm:$0xff]
                %281 = vst [vmem:[%s221 + $0xe8] sm:$0xff] %v280
                %v282 = vld [vmem:[%s220 + $0x1e0] sm:$0xff]
                %283 = vst [vmem:[%s221 + $0xf0] sm:$0xff] %v282
                %v284 = vld [vmem:[%s220 + $0x1e8] sm:$0xff]
                %285 = vst [vmem:[%s221 + $0xf8] sm:$0xff] %v284
                %v286 = vld [vmem:[%s220 + $0x200] sm:$0xff]
                %287 = vst [vmem:[%s221 + $0x100] sm:$0xff] %v286
                %v288 = vld [vmem:[%s220 + $0x208] sm:$0xff]
                %289 = vst [vmem:[%s221 + $0x108] sm:$0xff] %v288
                %v290 = vld [vmem:[%s220 + $0x220] sm:$0xff]
                %291 = vst [vmem:[%s221 + $0x110] sm:$0xff] %v290
                %v292 = vld [vmem:[%s220 + $0x228] sm:$0xff]
                %293 = vst [vmem:[%s221 + $0x118] sm:$0xff] %v292
                %v294 = vld [vmem:[%s220 + $0x240] sm:$0xff]
                %295 = vst [vmem:[%s221 + $0x120] sm:$0xff] %v294
                %v296 = vld [vmem:[%s220 + $0x248] sm:$0xff]
                %297 = vst [vmem:[%s221 + $0x128] sm:$0xff] %v296
                %v298 = vld [vmem:[%s220 + $0x260] sm:$0xff]
                %299 = vst [vmem:[%s221 + $0x130] sm:$0xff] %v298
                %v300 = vld [vmem:[%s220 + $0x268] sm:$0xff]
                %301 = vst [vmem:[%s221 + $0x138] sm:$0xff] %v300
                %v302 = vld [vmem:[%s220 + $0x280] sm:$0xff]
                %303 = vst [vmem:[%s221 + $0x140] sm:$0xff] %v302
                %v304 = vld [vmem:[%s220 + $0x288] sm:$0xff]
                %305 = vst [vmem:[%s221 + $0x148] sm:$0xff] %v304
                %v306 = vld [vmem:[%s220 + $0x2a0] sm:$0xff]
                %307 = vst [vmem:[%s221 + $0x150] sm:$0xff] %v306
                %v308 = vld [vmem:[%s220 + $0x2a8] sm:$0xff]
                %309 = vst [vmem:[%s221 + $0x158] sm:$0xff] %v308
                %v310 = vld [vmem:[%s220 + $0x2c0] sm:$0xff]
                %311 = vst [vmem:[%s221 + $0x160] sm:$0xff] %v310
                %v312 = vld [vmem:[%s220 + $0x2c8] sm:$0xff]
                %313 = vst [vmem:[%s221 + $0x168] sm:$0xff] %v312
                %v314 = vld [vmem:[%s220 + $0x2e0] sm:$0xff]
                %315 = vst [vmem:[%s221 + $0x170] sm:$0xff] %v314
                %v316 = vld [vmem:[%s220 + $0x2e8] sm:$0xff]
                %317 = vst [vmem:[%s221 + $0x178] sm:$0xff] %v316
                %v318 = vld [vmem:[%s220 + $0x300] sm:$0xff]
                %319 = vst [vmem:[%s221 + $0x180] sm:$0xff] %v318
                %v320 = vld [vmem:[%s220 + $0x308] sm:$0xff]
                %321 = vst [vmem:[%s221 + $0x188] sm:$0xff] %v320
                %v322 = vld [vmem:[%s220 + $0x320] sm:$0xff]
                %323 = vst [vmem:[%s221 + $0x190] sm:$0xff] %v322
                %v324 = vld [vmem:[%s220 + $0x328] sm:$0xff]
                %325 = vst [vmem:[%s221 + $0x198] sm:$0xff] %v324
                %v326 = vld [vmem:[%s220 + $0x340] sm:$0xff]
                %327 = vst [vmem:[%s221 + $0x1a0] sm:$0xff] %v326
                %v328 = vld [vmem:[%s220 + $0x348] sm:$0xff]
                %329 = vst [vmem:[%s221 + $0x1a8] sm:$0xff] %v328
                %v330 = vld [vmem:[%s220 + $0x360] sm:$0xff]
                %331 = vst [vmem:[%s221 + $0x1b0] sm:$0xff] %v330
                %v332 = vld [vmem:[%s220 + $0x368] sm:$0xff]
                %333 = vst [vmem:[%s221 + $0x1b8] sm:$0xff] %v332
                %v334 = vld [vmem:[%s220 + $0x380] sm:$0xff]
                %335 = vst [vmem:[%s221 + $0x1c0] sm:$0xff] %v334
                %v336 = vld [vmem:[%s220 + $0x388] sm:$0xff]
                %337 = vst [vmem:[%s221 + $0x1c8] sm:$0xff] %v336
                %v338 = vld [vmem:[%s220 + $0x3a0] sm:$0xff]
                %339 = vst [vmem:[%s221 + $0x1d0] sm:$0xff] %v338
                %v340 = vld [vmem:[%s220 + $0x3a8] sm:$0xff]
                %341 = vst [vmem:[%s221 + $0x1d8] sm:$0xff] %v340
                %v342 = vld [vmem:[%s220 + $0x3c0] sm:$0xff]
                %343 = vst [vmem:[%s221 + $0x1e0] sm:$0xff] %v342
                %v344 = vld [vmem:[%s220 + $0x3c8] sm:$0xff]
                %345 = vst [vmem:[%s221 + $0x1e8] sm:$0xff] %v344
                %v346 = vld [vmem:[%s220 + $0x3e0] sm:$0xff]
                %347 = vst [vmem:[%s221 + $0x1f0] sm:$0xff] %v346
                %v348 = vld [vmem:[%s220 + $0x3e8] sm:$0xff]
                %349 = vst [vmem:[%s221 + $0x1f8] sm:$0xff] %v348
                %v350 = vld [vmem:[%s220 + $0x400] sm:$0xff]
                %351 = vst [vmem:[%s221 + $0x200] sm:$0xff] %v350
                %v352 = vld [vmem:[%s220 + $0x408] sm:$0xff]
                %353 = vst [vmem:[%s221 + $0x208] sm:$0xff] %v352
                %v354 = vld [vmem:[%s220 + $0x420] sm:$0xff]
                %355 = vst [vmem:[%s221 + $0x210] sm:$0xff] %v354
                %v356 = vld [vmem:[%s220 + $0x428] sm:$0xff]
                %357 = vst [vmem:[%s221 + $0x218] sm:$0xff] %v356
                %v358 = vld [vmem:[%s220 + $0x440] sm:$0xff]
                %359 = vst [vmem:[%s221 + $0x220] sm:$0xff] %v358
                %v360 = vld [vmem:[%s220 + $0x448] sm:$0xff]
                %361 = vst [vmem:[%s221 + $0x228] sm:$0xff] %v360
                %v362 = vld [vmem:[%s220 + $0x460] sm:$0xff]
                %363 = vst [vmem:[%s221 + $0x230] sm:$0xff] %v362
                %v364 = vld [vmem:[%s220 + $0x468] sm:$0xff]
                %365 = vst [vmem:[%s221 + $0x238] sm:$0xff] %v364
              $region45: #{forward.5} parent=39 // loop_footer
                %s219 = sadd.s32 1, %s215
              $region46: #{forward.5} parent=39 // loop_footer_branch
                %214 = sbr.rel target = $region42
              $region47: #{forward.5} parent=39 // loop_exit
                _
            $region40: #{forward.5} parent=35 // pred_fallthru
              _
            // Predicated region
            $region48: #{forward.5} parent=35 // pred_check
              _
            $region49: #{forward.5} parent=35 // pred_check_branch
              %367 = sbr.rel target = $region51
            $region50: #{forward.5} parent=35 // pred_region
              _
            $region51: #{forward.5} parent=35 // pred_fallthru
              _
          $region36: #{forward.5} parent=31 // pred_fallthru
            _
          %368 = vnop
        $region32: #{forward.5} parent=27 // pred_fallthru
          _
        // Predicated region
        $region52: #{forward.5} parent=27 // pred_check
          %p369 = pneg %p115
        $region53: #{forward.5} parent=27 // pred_check_branch
          %371 = sbr.rel (%p369) target = $region55
        $region54: #{forward.5} parent=27 // pred_region
          %s372 = sand.u32 %s105, 1
          %s373 = sand.u32 %s105, 1
          %s374 = smul.addr %s373, 64
          %s375 = scalar_lea.vmem [#allocation3], %s374
          %s376 = smul.u32 4, %s19
          %s377 = smul.addr %s18, 32
          %s378 = sadd.s32 %s376, %s377
          %s379 = smul.addr %s378, 4
          %s380 = scalar_lea.vmem %s3, %s379
          // Predicated region
          $region56: #{forward.5} parent=54 // pred_check
            _
          $region57: #{forward.5} parent=54 // pred_check_branch
            %382 = sbr.rel (0) target = $region59
          $region58: #{forward.5} parent=54 // pred_region
            // Predicated region
            $region60: #{forward.5} parent=58 // pred_check
              _
            $region61: #{forward.5} parent=58 // pred_check_branch
              %384 = sbr.rel (0) target = $region63
            $region62: #{forward.5} parent=58 // pred_region
              loop: start=0, step=1, limit=1
              $region64: #{forward.5} parent=62 // loop_pre_header
                _
              $region65: #{forward.5} parent=62 // loop_header
                %s386 = sphi 0, %s390
                %p387 = scmp.ge.s32.totalorder %s386, 1
                %s391 = sphi %s380, %s380
                %s392 = sphi %s375, %s375
              $region66: #{forward.5} parent=62 // loop_header_branch
                %389 = sbr.rel (%p387) target = $region70
              $region67: #{forward.5} parent=62 // loop_body
                %v393 = vld [vmem:[%s391] sm:$0xff]
                %394 = vst [vmem:[%s392] sm:$0xff] %v393
                %v395 = vld [vmem:[%s391 + $0x8] sm:$0xff]
                %396 = vst [vmem:[%s392 + $0x8] sm:$0xff] %v395
                %v397 = vld [vmem:[%s391 + $0x20] sm:$0xff]
                %398 = vst [vmem:[%s392 + $0x10] sm:$0xff] %v397
                %v399 = vld [vmem:[%s391 + $0x28] sm:$0xff]
                %400 = vst [vmem:[%s392 + $0x18] sm:$0xff] %v399
                %v401 = vld [vmem:[%s391 + $0x40] sm:$0xff]
                %402 = vst [vmem:[%s392 + $0x20] sm:$0xff] %v401
                %v403 = vld [vmem:[%s391 + $0x48] sm:$0xff]
                %404 = vst [vmem:[%s392 + $0x28] sm:$0xff] %v403
                %v405 = vld [vmem:[%s391 + $0x60] sm:$0xff]
                %406 = vst [vmem:[%s392 + $0x30] sm:$0xff] %v405
                %v407 = vld [vmem:[%s391 + $0x68] sm:$0xff]
                %408 = vst [vmem:[%s392 + $0x38] sm:$0xff] %v407
              $region68: #{forward.5} parent=62 // loop_footer
                %s390 = sadd.s32 1, %s386
              $region69: #{forward.5} parent=62 // loop_footer_branch
                %385 = sbr.rel target = $region65
              $region70: #{forward.5} parent=62 // loop_exit
                _
            $region63: #{forward.5} parent=58 // pred_fallthru
              _
            // Predicated region
            $region71: #{forward.5} parent=58 // pred_check
              _
            $region72: #{forward.5} parent=58 // pred_check_branch
              %410 = sbr.rel target = $region74
            $region73: #{forward.5} parent=58 // pred_region
              _
            $region74: #{forward.5} parent=58 // pred_fallthru
              _
          $region59: #{forward.5} parent=54 // pred_fallthru
            _
          %411 = vnop
        $region55: #{forward.5} parent=27 // pred_fallthru
          _
      $region28: #{forward.5} parent=5 // pred_fallthru
        _
      %p412 = scmp.le.s32.totalorder 1, %s11
      %p413 = scmp.lt.s32.totalorder %s11, 5
      %p414 = pnand %p412, %p413
      %p415 = pneg %p414
      // Predicated region
      $region75: #{forward.5} parent=5 // pred_check
        _
      $region76: #{forward.5} parent=5 // pred_check_branch
        %417 = sbr.rel (%p414) target = $region78
      $region77: #{forward.5} parent=5 // pred_region
        %s418 = ssub.s32 %s11, 1
        %s419 = sand.u32 %s38, 1
        %s420 = sand.u32 %s38, 1
        %s421 = smul.addr %s420, 576
        %s422 = scalar_lea.vmem [#allocation2], %s421
        // Predicated region
        $region79: #{forward.5} parent=77 // pred_check
          %p423 = pneg %p51
        $region80: #{forward.5} parent=77 // pred_check_branch
          %425 = sbr.rel (%p423) target = $region82
        $region81: #{forward.5} parent=77 // pred_region
          _
        $region82: #{forward.5} parent=77 // pred_fallthru
          _
        %s426 = sand.u32 %s108, 1
        %s427 = sand.u32 %s108, 1
        %s428 = smul.addr %s427, 64
        %s429 = scalar_lea.vmem [#allocation3], %s428
        // Predicated region
        $region83: #{forward.5} parent=77 // pred_check
          %p430 = pneg %p121
        $region84: #{forward.5} parent=77 // pred_check_branch
          %432 = sbr.rel (%p430) target = $region86
        $region85: #{forward.5} parent=77 // pred_region
          _
        $region86: #{forward.5} parent=77 // pred_fallthru
          _
        %s433 = sand.u32 %s38, 1
        %s434 = sand.u32 %s38, 1
        %s435 = smul.addr %s434, 576
        %s436 = scalar_lea.vmem [#allocation2], %s435
        %p437 = pneg %p51
        %p438 = pneg %p48
        %p439 = pneg %p72
        %p440 = pneg %p69
        %p441 = pneg %p93
        %p442 = pneg %p90
        %s443 = sand.u32 %s108, 1
        %s444 = sand.u32 %s108, 1
        %s445 = smul.addr %s444, 64
        %s446 = scalar_lea.vmem [#allocation3], %s445
        %p447 = pneg %p121
        %p448 = pneg %p118
        %p449 = pneg %p142
        %p450 = pneg %p139
        %p451 = pneg %p170
        %p452 = pneg %p167
        %s453 = sand.u32 %s157, 1
        %s454 = sand.u32 %s157, 1
        %s455 = smul.addr %s454, 64
        %s456 = scalar_lea.vmem [#allocation4], %s455
        %s457 = smul.u32 4, %s21
        %s458 = smul.u32 4, %s21
        %s459 = smul.u32 4, %s21
        %v461 = vld [vmem:[%s1] sm:$0xff]
        %v462 = vld [vmem:[%s1 + $0x8] sm:$0xf]
        %v463 = vld [vmem:[%s1 + $0xc] sm:$0xff]
        %v464 = vld [vmem:[%s1 + $0x14] sm:$0xf]
        %v465 = vld [vmem:[%s1 + $0x18] sm:$0xff]
        %v466 = vld [vmem:[%s1 + $0x20] sm:$0xf]
        %v467 = vld [vmem:[%s1 + $0x24] sm:$0xff]
        %v468 = vld [vmem:[%s1 + $0x2c] sm:$0xf]
        %v469 = vld [vmem:[%s422] sm:$0xff]
        %v470 = vld [vmem:[%s422 + $0x8] sm:$0xff]
        %v471 = vld [vmem:[%s422 + $0x10] sm:$0xff]
        %v472 = vld [vmem:[%s422 + $0x18] sm:$0xff]
        %v473 = vld [vmem:[%s422 + $0x20] sm:$0xff]
        %v474 = vld [vmem:[%s422 + $0x28] sm:$0xff]
        %v475 = vld [vmem:[%s422 + $0x30] sm:$0xff]
        %v476 = vld [vmem:[%s422 + $0x38] sm:$0xff]
        %v477 = vld [vmem:[%s422 + $0x40] sm:$0xff]
        %v478 = vld [vmem:[%s422 + $0x48] sm:$0xff]
        %v479 = vld [vmem:[%s422 + $0x50] sm:$0xff]
        %v480 = vld [vmem:[%s422 + $0x58] sm:$0xff]
        %v481 = vld [vmem:[%s422 + $0x60] sm:$0xff]
        %v482 = vld [vmem:[%s422 + $0x68] sm:$0xff]
        %v483 = vld [vmem:[%s422 + $0x70] sm:$0xff]
        %v484 = vld [vmem:[%s422 + $0x78] sm:$0xff]
        %v485 = vld [vmem:[%s422 + $0x80] sm:$0xff]
        %v486 = vld [vmem:[%s422 + $0x88] sm:$0xff]
        %v487 = vld [vmem:[%s422 + $0x90] sm:$0xff]
        %v488 = vld [vmem:[%s422 + $0x98] sm:$0xff]
        %v489 = vld [vmem:[%s422 + $0xa0] sm:$0xff]
        %v490 = vld [vmem:[%s422 + $0xa8] sm:$0xff]
        %v491 = vld [vmem:[%s422 + $0xb0] sm:$0xff]
        %v492 = vld [vmem:[%s422 + $0xb8] sm:$0xff]
        %v493 = vld [vmem:[%s422 + $0xc0] sm:$0xff]
        %v494 = vld [vmem:[%s422 + $0xc8] sm:$0xff]
        %v495 = vld [vmem:[%s422 + $0xd0] sm:$0xff]
        %v496 = vld [vmem:[%s422 + $0xd8] sm:$0xff]
        %v497 = vld [vmem:[%s422 + $0xe0] sm:$0xff]
        %v498 = vld [vmem:[%s422 + $0xe8] sm:$0xff]
        %v499 = vld [vmem:[%s422 + $0xf0] sm:$0xff]
        %v500 = vld [vmem:[%s422 + $0xf8] sm:$0xff]
        %v501 = vld [vmem:[%s422 + $0x100] sm:$0xff]
        %v502 = vld [vmem:[%s422 + $0x108] sm:$0xff]
        %v503 = vld [vmem:[%s422 + $0x110] sm:$0xff]
        %v504 = vld [vmem:[%s422 + $0x118] sm:$0xff]
        %v505 = vld [vmem:[%s422 + $0x120] sm:$0xff]
        %v506 = vld [vmem:[%s422 + $0x128] sm:$0xff]
        %v507 = vld [vmem:[%s422 + $0x130] sm:$0xff]
        %v508 = vld [vmem:[%s422 + $0x138] sm:$0xff]
        %v509 = vld [vmem:[%s422 + $0x140] sm:$0xff]
        %v510 = vld [vmem:[%s422 + $0x148] sm:$0xff]
        %v511 = vld [vmem:[%s422 + $0x150] sm:$0xff]
        %v512 = vld [vmem:[%s422 + $0x158] sm:$0xff]
        %v513 = vld [vmem:[%s422 + $0x160] sm:$0xff]
        %v514 = vld [vmem:[%s422 + $0x168] sm:$0xff]
        %v515 = vld [vmem:[%s422 + $0x170] sm:$0xff]
        %v516 = vld [vmem:[%s422 + $0x178] sm:$0xff]
        %v517 = vld [vmem:[%s422 + $0x180] sm:$0xff]
        %v518 = vld [vmem:[%s422 + $0x188] sm:$0xff]
        %v519 = vld [vmem:[%s422 + $0x190] sm:$0xff]
        %v520 = vld [vmem:[%s422 + $0x198] sm:$0xff]
        %v521 = vld [vmem:[%s422 + $0x1a0] sm:$0xff]
        %v522 = vld [vmem:[%s422 + $0x1a8] sm:$0xff]
        %v523 = vld [vmem:[%s422 + $0x1b0] sm:$0xff]
        %v524 = vld [vmem:[%s422 + $0x1b8] sm:$0xff]
        %v525 = vld [vmem:[%s422 + $0x1c0] sm:$0xff]
        %v526 = vld [vmem:[%s422 + $0x1c8] sm:$0xff]
        %v527 = vld [vmem:[%s422 + $0x1d0] sm:$0xff]
        %v528 = vld [vmem:[%s422 + $0x1d8] sm:$0xff]
        %v529 = vld [vmem:[%s422 + $0x1e0] sm:$0xff]
        %v530 = vld [vmem:[%s422 + $0x1e8] sm:$0xff]
        %v531 = vld [vmem:[%s422 + $0x1f0] sm:$0xff]
        %v532 = vld [vmem:[%s422 + $0x1f8] sm:$0xff]
        %v533 = vld [vmem:[%s422 + $0x200] sm:$0xff]
        %v534 = vld [vmem:[%s422 + $0x208] sm:$0xff]
        %v535 = vld [vmem:[%s422 + $0x210] sm:$0xff]
        %v536 = vld [vmem:[%s422 + $0x218] sm:$0xff]
        %v537 = vld [vmem:[%s422 + $0x220] sm:$0xff]
        %v538 = vld [vmem:[%s422 + $0x228] sm:$0xff]
        %v539 = vld [vmem:[%s422 + $0x230] sm:$0xff]
        %v540 = vld [vmem:[%s422 + $0x238] sm:$0xff]
        %v541 = vld [vmem:[%s2] sm:$0xff]
        %v542 = vld [vmem:[%s2 + $0x8] sm:$0xff]
        %v543 = vld [vmem:[%s2 + $0x10] sm:$0xff]
        %v544 = vld [vmem:[%s2 + $0x18] sm:$0xff]
        %546 = vset.pattern.permute.xlu0 0
        %547 = vperm.xlu0 %546, %v541
        %v548 = vpop.permute.xlu0 %547
        %551 = vset.pattern.permute.xlu0 0
        %552 = vperm.xlu0 %551, %v542
        %v553 = vpop.permute.xlu0 %552
        %556 = vset.pattern.permute.xlu0 0
        %557 = vperm.xlu0 %556, %v543
        %v558 = vpop.permute.xlu0 %557
        %561 = vset.pattern.permute.xlu0 0
        %562 = vperm.xlu0 %561, %v544
        %v563 = vpop.permute.xlu0 %562
        %v573 = vunpack.c.l.b16 %v461
        %v574 = vunpack.c.h.b16 %v461
        %v575 = vunpack.c.l.b16 %v462
        %v576 = vunpack.c.l.b16 %v463
        %v577 = vunpack.c.h.b16 %v463
        %v578 = vunpack.c.l.b16 %v464
        %v579 = vunpack.c.l.b16 %v465
        %v580 = vunpack.c.h.b16 %v465
        %v581 = vunpack.c.l.b16 %v466
        %v582 = vunpack.c.l.b16 %v467
        %v583 = vunpack.c.h.b16 %v467
        %v584 = vunpack.c.l.b16 %v468
        %v585 = vpack.c.b16 %v576, %v573
        %v586 = vpack.c.b16 %v577, %v574
        %v587 = vpack.c.b16 %v578, %v575
        %v588 = vpack.c.b16 %v582, %v579
        %v589 = vpack.c.b16 %v583, %v580
        %v590 = vpack.c.b16 %v584, %v581
        %v667 = vunpack.c.l.b16 %v469
        %v668 = vunpack.c.h.b16 %v469
        %v669 = vunpack.c.l.b16 %v470
        %v670 = vunpack.c.h.b16 %v470
        %v671 = vunpack.c.l.b16 %v471
        %v672 = vunpack.c.h.b16 %v471
        %v673 = vunpack.c.l.b16 %v472
        %v674 = vunpack.c.h.b16 %v472
        %v675 = vunpack.c.l.b16 %v473
        %v676 = vunpack.c.h.b16 %v473
        %v677 = vunpack.c.l.b16 %v474
        %v678 = vunpack.c.h.b16 %v474
        %v679 = vunpack.c.l.b16 %v475
        %v680 = vunpack.c.h.b16 %v475
        %v681 = vunpack.c.l.b16 %v476
        %v682 = vunpack.c.h.b16 %v476
        %v683 = vunpack.c.l.b16 %v477
        %v684 = vunpack.c.h.b16 %v477
        %v685 = vunpack.c.l.b16 %v478
        %v686 = vunpack.c.h.b16 %v478
        %v687 = vunpack.c.l.b16 %v479
        %v688 = vunpack.c.h.b16 %v479
        %v689 = vunpack.c.l.b16 %v480
        %v690 = vunpack.c.h.b16 %v480
        %v691 = vunpack.c.l.b16 %v481
        %v692 = vunpack.c.h.b16 %v481
        %v693 = vunpack.c.l.b16 %v482
        %v694 = vunpack.c.h.b16 %v482
        %v695 = vunpack.c.l.b16 %v483
        %v696 = vunpack.c.h.b16 %v483
        %v697 = vunpack.c.l.b16 %v484
        %v698 = vunpack.c.h.b16 %v484
        %v699 = vunpack.c.l.b16 %v485
        %v700 = vunpack.c.h.b16 %v485
        %v701 = vunpack.c.l.b16 %v486
        %v702 = vunpack.c.h.b16 %v486
        %v703 = vunpack.c.l.b16 %v487
        %v704 = vunpack.c.h.b16 %v487
        %v705 = vunpack.c.l.b16 %v488
        %v706 = vunpack.c.h.b16 %v488
        %v707 = vunpack.c.l.b16 %v489
        %v708 = vunpack.c.h.b16 %v489
        %v709 = vunpack.c.l.b16 %v490
        %v710 = vunpack.c.h.b16 %v490
        %v711 = vunpack.c.l.b16 %v491
        %v712 = vunpack.c.h.b16 %v491
        %v713 = vunpack.c.l.b16 %v492
        %v714 = vunpack.c.h.b16 %v492
        %v715 = vunpack.c.l.b16 %v493
        %v716 = vunpack.c.h.b16 %v493
        %v717 = vunpack.c.l.b16 %v494
        %v718 = vunpack.c.h.b16 %v494
        %v719 = vunpack.c.l.b16 %v495
        %v720 = vunpack.c.h.b16 %v495
        %v721 = vunpack.c.l.b16 %v496
        %v722 = vunpack.c.h.b16 %v496
        %v723 = vunpack.c.l.b16 %v497
        %v724 = vunpack.c.h.b16 %v497
        %v725 = vunpack.c.l.b16 %v498
        %v726 = vunpack.c.h.b16 %v498
        %v727 = vunpack.c.l.b16 %v499
        %v728 = vunpack.c.h.b16 %v499
        %v729 = vunpack.c.l.b16 %v500
        %v730 = vunpack.c.h.b16 %v500
        %v731 = vunpack.c.l.b16 %v501
        %v732 = vunpack.c.h.b16 %v501
        %v733 = vunpack.c.l.b16 %v502
        %v734 = vunpack.c.h.b16 %v502
        %v735 = vunpack.c.l.b16 %v503
        %v736 = vunpack.c.h.b16 %v503
        %v737 = vunpack.c.l.b16 %v504
        %v738 = vunpack.c.h.b16 %v504
        %v739 = vunpack.c.l.b16 %v505
        %v740 = vunpack.c.h.b16 %v505
        %v741 = vunpack.c.l.b16 %v506
        %v742 = vunpack.c.h.b16 %v506
        %v743 = vunpack.c.l.b16 %v507
        %v744 = vunpack.c.h.b16 %v507
        %v745 = vunpack.c.l.b16 %v508
        %v746 = vunpack.c.h.b16 %v508
        %v747 = vunpack.c.l.b16 %v509
        %v748 = vunpack.c.h.b16 %v509
        %v749 = vunpack.c.l.b16 %v510
        %v750 = vunpack.c.h.b16 %v510
        %v751 = vunpack.c.l.b16 %v511
        %v752 = vunpack.c.h.b16 %v511
        %v753 = vunpack.c.l.b16 %v512
        %v754 = vunpack.c.h.b16 %v512
        %v755 = vunpack.c.l.b16 %v513
        %v756 = vunpack.c.h.b16 %v513
        %v757 = vunpack.c.l.b16 %v514
        %v758 = vunpack.c.h.b16 %v514
        %v759 = vunpack.c.l.b16 %v515
        %v760 = vunpack.c.h.b16 %v515
        %v761 = vunpack.c.l.b16 %v516
        %v762 = vunpack.c.h.b16 %v516
        %v763 = vunpack.c.l.b16 %v517
        %v764 = vunpack.c.h.b16 %v517
        %v765 = vunpack.c.l.b16 %v518
        %v766 = vunpack.c.h.b16 %v518
        %v767 = vunpack.c.l.b16 %v519
        %v768 = vunpack.c.h.b16 %v519
        %v769 = vunpack.c.l.b16 %v520
        %v770 = vunpack.c.h.b16 %v520
        %v771 = vunpack.c.l.b16 %v521
        %v772 = vunpack.c.h.b16 %v521
        %v773 = vunpack.c.l.b16 %v522
        %v774 = vunpack.c.h.b16 %v522
        %v775 = vunpack.c.l.b16 %v523
        %v776 = vunpack.c.h.b16 %v523
        %v777 = vunpack.c.l.b16 %v524
        %v778 = vunpack.c.h.b16 %v524
        %v779 = vunpack.c.l.b16 %v525
        %v780 = vunpack.c.h.b16 %v525
        %v781 = vunpack.c.l.b16 %v526
        %v782 = vunpack.c.h.b16 %v526
        %v783 = vunpack.c.l.b16 %v527
        %v784 = vunpack.c.h.b16 %v527
        %v785 = vunpack.c.l.b16 %v528
        %v786 = vunpack.c.h.b16 %v528
        %v787 = vunpack.c.l.b16 %v529
        %v788 = vunpack.c.h.b16 %v529
        %v789 = vunpack.c.l.b16 %v530
        %v790 = vunpack.c.h.b16 %v530
        %v791 = vunpack.c.l.b16 %v531
        %v792 = vunpack.c.h.b16 %v531
        %v793 = vunpack.c.l.b16 %v532
        %v794 = vunpack.c.h.b16 %v532
        %v795 = vunpack.c.l.b16 %v533
        %v796 = vunpack.c.h.b16 %v533
        %v797 = vunpack.c.l.b16 %v534
        %v798 = vunpack.c.h.b16 %v534
        %v799 = vunpack.c.l.b16 %v535
        %v800 = vunpack.c.h.b16 %v535
        %v801 = vunpack.c.l.b16 %v536
        %v802 = vunpack.c.h.b16 %v536
        %v803 = vunpack.c.l.b16 %v537
        %v804 = vunpack.c.h.b16 %v537
        %v805 = vunpack.c.l.b16 %v538
        %v806 = vunpack.c.h.b16 %v538
        %v807 = vunpack.c.l.b16 %v539
        %v808 = vunpack.c.h.b16 %v539
        %v809 = vunpack.c.l.b16 %v540
        %v810 = vunpack.c.h.b16 %v540
        %v811 = vpack.c.b16 %v671, %v667
        %v812 = vpack.c.b16 %v672, %v668
        %v813 = vpack.c.b16 %v673, %v669
        %v814 = vpack.c.b16 %v674, %v670
        %v815 = vpack.c.b16 %v679, %v675
        %v816 = vpack.c.b16 %v680, %v676
        %v817 = vpack.c.b16 %v681, %v677
        %v818 = vpack.c.b16 %v682, %v678
        %v819 = vpack.c.b16 %v687, %v683
        %v820 = vpack.c.b16 %v688, %v684
        %v821 = vpack.c.b16 %v689, %v685
        %v822 = vpack.c.b16 %v690, %v686
        %v823 = vpack.c.b16 %v695, %v691
        %v824 = vpack.c.b16 %v696, %v692
        %v825 = vpack.c.b16 %v697, %v693
        %v826 = vpack.c.b16 %v698, %v694
        %v827 = vpack.c.b16 %v703, %v699
        %v828 = vpack.c.b16 %v704, %v700
        %v829 = vpack.c.b16 %v705, %v701
        %v830 = vpack.c.b16 %v706, %v702
        %v831 = vpack.c.b16 %v711, %v707
        %v832 = vpack.c.b16 %v712, %v708
        %v833 = vpack.c.b16 %v713, %v709
        %v834 = vpack.c.b16 %v714, %v710
        %v835 = vpack.c.b16 %v719, %v715
        %v836 = vpack.c.b16 %v720, %v716
        %v837 = vpack.c.b16 %v721, %v717
        %v838 = vpack.c.b16 %v722, %v718
        %v839 = vpack.c.b16 %v727, %v723
        %v840 = vpack.c.b16 %v728, %v724
        %v841 = vpack.c.b16 %v729, %v725
        %v842 = vpack.c.b16 %v730, %v726
        %v843 = vpack.c.b16 %v735, %v731
        %v844 = vpack.c.b16 %v736, %v732
        %v845 = vpack.c.b16 %v737, %v733
        %v846 = vpack.c.b16 %v738, %v734
        %v847 = vpack.c.b16 %v743, %v739
        %v848 = vpack.c.b16 %v744, %v740
        %v849 = vpack.c.b16 %v745, %v741
        %v850 = vpack.c.b16 %v746, %v742
        %v851 = vpack.c.b16 %v751, %v747
        %v852 = vpack.c.b16 %v752, %v748
        %v853 = vpack.c.b16 %v753, %v749
        %v854 = vpack.c.b16 %v754, %v750
        %v855 = vpack.c.b16 %v759, %v755
        %v856 = vpack.c.b16 %v760, %v756
        %v857 = vpack.c.b16 %v761, %v757
        %v858 = vpack.c.b16 %v762, %v758
        %v859 = vpack.c.b16 %v767, %v763
        %v860 = vpack.c.b16 %v768, %v764
        %v861 = vpack.c.b16 %v769, %v765
        %v862 = vpack.c.b16 %v770, %v766
        %v863 = vpack.c.b16 %v775, %v771
        %v864 = vpack.c.b16 %v776, %v772
        %v865 = vpack.c.b16 %v777, %v773
        %v866 = vpack.c.b16 %v778, %v774
        %v867 = vpack.c.b16 %v783, %v779
        %v868 = vpack.c.b16 %v784, %v780
        %v869 = vpack.c.b16 %v785, %v781
        %v870 = vpack.c.b16 %v786, %v782
        %v871 = vpack.c.b16 %v791, %v787
        %v872 = vpack.c.b16 %v792, %v788
        %v873 = vpack.c.b16 %v793, %v789
        %v874 = vpack.c.b16 %v794, %v790
        %v875 = vpack.c.b16 %v799, %v795
        %v876 = vpack.c.b16 %v800, %v796
        %v877 = vpack.c.b16 %v801, %v797
        %v878 = vpack.c.b16 %v802, %v798
        %v879 = vpack.c.b16 %v807, %v803
        %v880 = vpack.c.b16 %v808, %v804
        %v881 = vpack.c.b16 %v809, %v805
        %v882 = vpack.c.b16 %v810, %v806
        %vm955 = vcmask 261120
        %v957 = vsel %vm955, %v587, 0
        %v960 = vsel %vm955, %v590, 0
        %962 = vmatpush.bf16.msra.mxu0 %v839
        %963 = vmatpush.bf16.msra.mxu0 %v835
        %964 = vmatpush.bf16.msra.mxu0 %v831
        %965 = vmatpush.bf16.msra.mxu0 %v827
        %966 = vmatpush.bf16.msra.mxu0 %v823
        %967 = vmatpush.bf16.msra.mxu0 %v819
        %968 = vmatpush.bf16.msra.mxu0 %v815
        %969 = vmatpush.bf16.msra.mxu0 %v811
        %970 = vmatmul.bf16.gmra.mxu0 %v585
        %v971 = vpop.f32.mrf.mxu0
        %v972 = vadd.f32 %v548, %v971
        %v973 = vpop.f32.mrf.mxu0
        %v974 = vadd.f32 %v553, %v973
        %975 = vmatmul.bf16.gmra.mxu0 %v588
        %v976 = vpop.f32.mrf.mxu0
        %v977 = vadd.f32 %v558, %v976
        %v978 = vpop.f32.mrf.mxu0
        %v979 = vadd.f32 %v563, %v978
        %980 = vdwg.mxu0
        %981 = vmatpush.bf16.msra.mxu0 %v871
        %982 = vmatpush.bf16.msra.mxu0 %v867
        %983 = vmatpush.bf16.msra.mxu0 %v863
        %984 = vmatpush.bf16.msra.mxu0 %v859
        %985 = vmatpush.bf16.msra.mxu0 %v855
        %986 = vmatpush.bf16.msra.mxu0 %v851
        %987 = vmatpush.bf16.msra.mxu0 %v847
        %988 = vmatpush.bf16.msra.mxu0 %v843
        %989 = vmatmul.bf16.gmra.mxu0 %v586
        %v990 = vpop.f32.mrf.mxu0
        %v991 = vadd.f32 %v972, %v990
        %v992 = vpop.f32.mrf.mxu0
        %v993 = vadd.f32 %v974, %v992
        %994 = vmatmul.bf16.gmra.mxu0 %v589
        %v995 = vpop.f32.mrf.mxu0
        %v996 = vadd.f32 %v977, %v995
        %v997 = vpop.f32.mrf.mxu0
        %v998 = vadd.f32 %v979, %v997
        %999 = vdwg.mxu0
        %1000 = vmatpush.bf16.msra.mxu0 0
        %1001 = vmatpush.bf16.msra.mxu0 0
        %1002 = vmatpush.bf16.msra.mxu0 0
        %1003 = vmatpush.bf16.msra.mxu0 0
        %1004 = vmatpush.bf16.msra.mxu0 0
        %1005 = vmatpush.bf16.msra.mxu0 0
        %1006 = vmatpush.bf16.msra.mxu0 %v879
        %1007 = vmatpush.bf16.msra.mxu0 %v875
        %1008 = vmatmul.bf16.gmra.mxu0 %v957
        %v1009 = vpop.f32.mrf.mxu0
        %v1010 = vadd.f32 %v991, %v1009
        %v1011 = vpop.f32.mrf.mxu0
        %v1012 = vadd.f32 %v993, %v1011
        %1013 = vmatmul.bf16.gmra.mxu0 %v960
        %v1014 = vpop.f32.mrf.mxu0
        %v1015 = vadd.f32 %v996, %v1014
        %v1016 = vpop.f32.mrf.mxu0
        %v1017 = vadd.f32 %v998, %v1016
        %1018 = vdwg.mxu0
        %1019 = vmatpush.bf16.msra.mxu0 %v840
        %1020 = vmatpush.bf16.msra.mxu0 %v836
        %1021 = vmatpush.bf16.msra.mxu0 %v832
        %1022 = vmatpush.bf16.msra.mxu0 %v828
        %1023 = vmatpush.bf16.msra.mxu0 %v824
        %1024 = vmatpush.bf16.msra.mxu0 %v820
        %1025 = vmatpush.bf16.msra.mxu0 %v816
        %1026 = vmatpush.bf16.msra.mxu0 %v812
        %1027 = vmatmul.bf16.gmra.mxu0 %v585
        %v1028 = vpop.f32.mrf.mxu0
        %v1029 = vadd.f32 %v548, %v1028
        %v1030 = vpop.f32.mrf.mxu0
        %v1031 = vadd.f32 %v553, %v1030
        %1032 = vmatmul.bf16.gmra.mxu0 %v588
        %v1033 = vpop.f32.mrf.mxu0
        %v1034 = vadd.f32 %v558, %v1033
        %v1035 = vpop.f32.mrf.mxu0
        %v1036 = vadd.f32 %v563, %v1035
        %1037 = vdwg.mxu0
        %1038 = vmatpush.bf16.msra.mxu0 %v872
        %1039 = vmatpush.bf16.msra.mxu0 %v868
        %1040 = vmatpush.bf16.msra.mxu0 %v864
        %1041 = vmatpush.bf16.msra.mxu0 %v860
        %1042 = vmatpush.bf16.msra.mxu0 %v856
        %1043 = vmatpush.bf16.msra.mxu0 %v852
        %1044 = vmatpush.bf16.msra.mxu0 %v848
        %1045 = vmatpush.bf16.msra.mxu0 %v844
        %1046 = vmatmul.bf16.gmra.mxu0 %v586
        %v1047 = vpop.f32.mrf.mxu0
        %v1048 = vadd.f32 %v1029, %v1047
        %v1049 = vpop.f32.mrf.mxu0
        %v1050 = vadd.f32 %v1031, %v1049
        %1051 = vmatmul.bf16.gmra.mxu0 %v589
        %v1052 = vpop.f32.mrf.mxu0
        %v1053 = vadd.f32 %v1034, %v1052
        %v1054 = vpop.f32.mrf.mxu0
        %v1055 = vadd.f32 %v1036, %v1054
        %1056 = vdwg.mxu0
        %1057 = vmatpush.bf16.msra.mxu0 0
        %1058 = vmatpush.bf16.msra.mxu0 0
        %1059 = vmatpush.bf16.msra.mxu0 0
        %1060 = vmatpush.bf16.msra.mxu0 0
        %1061 = vmatpush.bf16.msra.mxu0 0
        %1062 = vmatpush.bf16.msra.mxu0 0
        %1063 = vmatpush.bf16.msra.mxu0 %v880
        %1064 = vmatpush.bf16.msra.mxu0 %v876
        %1065 = vmatmul.bf16.gmra.mxu0 %v957
        %v1066 = vpop.f32.mrf.mxu0
        %v1067 = vadd.f32 %v1048, %v1066
        %v1068 = vpop.f32.mrf.mxu0
        %v1069 = vadd.f32 %v1050, %v1068
        %1070 = vmatmul.bf16.gmra.mxu0 %v960
        %v1071 = vpop.f32.mrf.mxu0
        %v1072 = vadd.f32 %v1053, %v1071
        %v1073 = vpop.f32.mrf.mxu0
        %v1074 = vadd.f32 %v1055, %v1073
        %1075 = vdwg.mxu0
        %1076 = vmatpush.bf16.msra.mxu0 %v841
        %1077 = vmatpush.bf16.msra.mxu0 %v837
        %1078 = vmatpush.bf16.msra.mxu0 %v833
        %1079 = vmatpush.bf16.msra.mxu0 %v829
        %1080 = vmatpush.bf16.msra.mxu0 %v825
        %1081 = vmatpush.bf16.msra.mxu0 %v821
        %1082 = vmatpush.bf16.msra.mxu0 %v817
        %1083 = vmatpush.bf16.msra.mxu0 %v813
        %1084 = vmatmul.bf16.gmra.mxu0 %v585
        %v1085 = vpop.f32.mrf.mxu0
        %v1086 = vadd.f32 %v548, %v1085
        %v1087 = vpop.f32.mrf.mxu0
        %v1088 = vadd.f32 %v553, %v1087
        %1089 = vmatmul.bf16.gmra.mxu0 %v588
        %v1090 = vpop.f32.mrf.mxu0
        %v1091 = vadd.f32 %v558, %v1090
        %v1092 = vpop.f32.mrf.mxu0
        %v1093 = vadd.f32 %v563, %v1092
        %1094 = vdwg.mxu0
        %1095 = vmatpush.bf16.msra.mxu0 %v873
        %1096 = vmatpush.bf16.msra.mxu0 %v869
        %1097 = vmatpush.bf16.msra.mxu0 %v865
        %1098 = vmatpush.bf16.msra.mxu0 %v861
        %1099 = vmatpush.bf16.msra.mxu0 %v857
        %1100 = vmatpush.bf16.msra.mxu0 %v853
        %1101 = vmatpush.bf16.msra.mxu0 %v849
        %1102 = vmatpush.bf16.msra.mxu0 %v845
        %1103 = vmatmul.bf16.gmra.mxu0 %v586
        %v1104 = vpop.f32.mrf.mxu0
        %v1105 = vadd.f32 %v1086, %v1104
        %v1106 = vpop.f32.mrf.mxu0
        %v1107 = vadd.f32 %v1088, %v1106
        %1108 = vmatmul.bf16.gmra.mxu0 %v589
        %v1109 = vpop.f32.mrf.mxu0
        %v1110 = vadd.f32 %v1091, %v1109
        %v1111 = vpop.f32.mrf.mxu0
        %v1112 = vadd.f32 %v1093, %v1111
        %1113 = vdwg.mxu0
        %1114 = vmatpush.bf16.msra.mxu0 0
        %1115 = vmatpush.bf16.msra.mxu0 0
        %1116 = vmatpush.bf16.msra.mxu0 0
        %1117 = vmatpush.bf16.msra.mxu0 0
        %1118 = vmatpush.bf16.msra.mxu0 0
        %1119 = vmatpush.bf16.msra.mxu0 0
        %1120 = vmatpush.bf16.msra.mxu0 %v881
        %1121 = vmatpush.bf16.msra.mxu0 %v877
        %1122 = vmatmul.bf16.gmra.mxu0 %v957
        %v1123 = vpop.f32.mrf.mxu0
        %v1124 = vadd.f32 %v1105, %v1123
        %v1125 = vpop.f32.mrf.mxu0
        %v1126 = vadd.f32 %v1107, %v1125
        %1127 = vmatmul.bf16.gmra.mxu0 %v960
        %v1128 = vpop.f32.mrf.mxu0
        %v1129 = vadd.f32 %v1110, %v1128
        %v1130 = vpop.f32.mrf.mxu0
        %v1131 = vadd.f32 %v1112, %v1130
        %1132 = vdwg.mxu0
        %1133 = vmatpush.bf16.msra.mxu0 %v842
        %1134 = vmatpush.bf16.msra.mxu0 %v838
        %1135 = vmatpush.bf16.msra.mxu0 %v834
        %1136 = vmatpush.bf16.msra.mxu0 %v830
        %1137 = vmatpush.bf16.msra.mxu0 %v826
        %1138 = vmatpush.bf16.msra.mxu0 %v822
        %1139 = vmatpush.bf16.msra.mxu0 %v818
        %1140 = vmatpush.bf16.msra.mxu0 %v814
        %1141 = vmatmul.bf16.gmra.mxu0 %v585
        %v1142 = vpop.f32.mrf.mxu0
        %v1143 = vadd.f32 %v548, %v1142
        %v1144 = vpop.f32.mrf.mxu0
        %v1145 = vadd.f32 %v553, %v1144
        %1146 = vmatmul.bf16.gmra.mxu0 %v588
        %v1147 = vpop.f32.mrf.mxu0
        %v1148 = vadd.f32 %v558, %v1147
        %v1149 = vpop.f32.mrf.mxu0
        %v1150 = vadd.f32 %v563, %v1149
        %1151 = vdwg.mxu0
        %1152 = vmatpush.bf16.msra.mxu0 %v874
        %1153 = vmatpush.bf16.msra.mxu0 %v870
        %1154 = vmatpush.bf16.msra.mxu0 %v866
        %1155 = vmatpush.bf16.msra.mxu0 %v862
        %1156 = vmatpush.bf16.msra.mxu0 %v858
        %1157 = vmatpush.bf16.msra.mxu0 %v854
        %1158 = vmatpush.bf16.msra.mxu0 %v850
        %1159 = vmatpush.bf16.msra.mxu0 %v846
        %1160 = vmatmul.bf16.gmra.mxu0 %v586
        %v1161 = vpop.f32.mrf.mxu0
        %v1162 = vadd.f32 %v1143, %v1161
        %v1163 = vpop.f32.mrf.mxu0
        %v1164 = vadd.f32 %v1145, %v1163
        %1165 = vmatmul.bf16.gmra.mxu0 %v589
        %v1166 = vpop.f32.mrf.mxu0
        %v1167 = vadd.f32 %v1148, %v1166
        %v1168 = vpop.f32.mrf.mxu0
        %v1169 = vadd.f32 %v1150, %v1168
        %1170 = vdwg.mxu0
        %1171 = vmatpush.bf16.msra.mxu0 0
        %1172 = vmatpush.bf16.msra.mxu0 0
        %1173 = vmatpush.bf16.msra.mxu0 0
        %1174 = vmatpush.bf16.msra.mxu0 0
        %1175 = vmatpush.bf16.msra.mxu0 0
        %1176 = vmatpush.bf16.msra.mxu0 0
        %1177 = vmatpush.bf16.msra.mxu0 %v882
        %1178 = vmatpush.bf16.msra.mxu0 %v878
        %1179 = vmatmul.bf16.gmra.mxu0 %v957
        %v1180 = vpop.f32.mrf.mxu0
        %v1181 = vadd.f32 %v1162, %v1180
        %v1182 = vpop.f32.mrf.mxu0
        %v1183 = vadd.f32 %v1164, %v1182
        %1184 = vmatmul.bf16.gmra.mxu0 %v960
        %v1185 = vpop.f32.mrf.mxu0
        %v1186 = vadd.f32 %v1167, %v1185
        %v1187 = vpop.f32.mrf.mxu0
        %v1188 = vadd.f32 %v1169, %v1187
        %1189 = vdwg.mxu0
        %v1190 = vxor.u32 %v1010, 2147483648
        %v1191 = vxor.u32 %v1067, 2147483648
        %v1192 = vxor.u32 %v1124, 2147483648
        %v1193 = vxor.u32 %v1181, 2147483648
        %v1194 = vxor.u32 %v1012, 2147483648
        %v1195 = vxor.u32 %v1069, 2147483648
        %v1196 = vxor.u32 %v1126, 2147483648
        %v1197 = vxor.u32 %v1183, 2147483648
        %v1198 = vxor.u32 %v1015, 2147483648
        %v1199 = vxor.u32 %v1072, 2147483648
        %v1200 = vxor.u32 %v1129, 2147483648
        %v1201 = vxor.u32 %v1186, 2147483648
        %v1202 = vxor.u32 %v1017, 2147483648
        %v1203 = vxor.u32 %v1074, 2147483648
        %v1204 = vxor.u32 %v1131, 2147483648
        %v1205 = vxor.u32 %v1188, 2147483648
        %v1206 = vmul.f32 %v1190, 1.442695
        %v1207 = vpow.pop %v1206
        %v1208 = vmul.f32 %v1191, 1.442695
        %v1209 = vpow.pop %v1208
        %v1210 = vmul.f32 %v1192, 1.442695
        %v1211 = vpow.pop %v1210
        %v1212 = vmul.f32 %v1193, 1.442695
        %v1213 = vpow.pop %v1212
        %v1214 = vmul.f32 %v1194, 1.442695
        %v1215 = vpow.pop %v1214
        %v1216 = vmul.f32 %v1195, 1.442695
        %v1217 = vpow.pop %v1216
        %v1218 = vmul.f32 %v1196, 1.442695
        %v1219 = vpow.pop %v1218
        %v1220 = vmul.f32 %v1197, 1.442695
        %v1221 = vpow.pop %v1220
        %v1222 = vmul.f32 %v1198, 1.442695
        %v1223 = vpow.pop %v1222
        %v1224 = vmul.f32 %v1199, 1.442695
        %v1225 = vpow.pop %v1224
        %v1226 = vmul.f32 %v1200, 1.442695
        %v1227 = vpow.pop %v1226
        %v1228 = vmul.f32 %v1201, 1.442695
        %v1229 = vpow.pop %v1228
        %v1230 = vmul.f32 %v1202, 1.442695
        %v1231 = vpow.pop %v1230
        %v1232 = vmul.f32 %v1203, 1.442695
        %v1233 = vpow.pop %v1232
        %v1234 = vmul.f32 %v1204, 1.442695
        %v1235 = vpow.pop %v1234
        %v1236 = vmul.f32 %v1205, 1.442695
        %v1237 = vpow.pop %v1236
        %v1238 = vadd.f32 %v1207, 1.0
        %v1239 = vadd.f32 %v1209, 1.0
        %v1240 = vadd.f32 %v1211, 1.0
        %v1241 = vadd.f32 %v1213, 1.0
        %v1242 = vadd.f32 %v1215, 1.0
        %v1243 = vadd.f32 %v1217, 1.0
        %v1244 = vadd.f32 %v1219, 1.0
        %v1245 = vadd.f32 %v1221, 1.0
        %v1246 = vadd.f32 %v1223, 1.0
        %v1247 = vadd.f32 %v1225, 1.0
        %v1248 = vadd.f32 %v1227, 1.0
        %v1249 = vadd.f32 %v1229, 1.0
        %v1250 = vadd.f32 %v1231, 1.0
        %v1251 = vadd.f32 %v1233, 1.0
        %v1252 = vadd.f32 %v1235, 1.0
        %v1253 = vadd.f32 %v1237, 1.0
        %v1254 = vrcp.pop %v1238
        %v1255 = vmul.f32 %v1238, %v1254
        %v1256 = vsub.f32 1.0, %v1255
        %v1257 = vmul.f32 %v1254, %v1256
        %v1258 = vadd.f32 %v1254, %v1257
        %vm1259 = vweird.f32 %v1238
        %vm1260 = vweird.f32 %v1254
        %vm1261 = vmor %vm1259, %vm1260
        %v1262 = vsel %vm1261, %v1254, %v1258
        %v1263 = vand.u32 2147483647, %v1238
        %vm1264 = vcmp.eq.f32.partialorder %v1263, 8.507059e+37
        %v1265 = vand.u32 %v1238, 2147483648
        %v1266 = vor.u32 1.1754944e-38, %v1265
        %v1267 = vsel %vm1264, %v1266, %v1262
        %v1268 = vmul.f32 1.0, %v1267
        %v1269 = vrcp.pop %v1239
        %v1270 = vmul.f32 %v1239, %v1269
        %v1271 = vsub.f32 1.0, %v1270
        %v1272 = vmul.f32 %v1269, %v1271
        %v1273 = vadd.f32 %v1269, %v1272
        %vm1274 = vweird.f32 %v1239
        %vm1275 = vweird.f32 %v1269
        %vm1276 = vmor %vm1274, %vm1275
        %v1277 = vsel %vm1276, %v1269, %v1273
        %v1278 = vand.u32 2147483647, %v1239
        %vm1279 = vcmp.eq.f32.partialorder %v1278, 8.507059e+37
        %v1280 = vand.u32 %v1239, 2147483648
        %v1281 = vor.u32 1.1754944e-38, %v1280
        %v1282 = vsel %vm1279, %v1281, %v1277
        %v1283 = vmul.f32 1.0, %v1282
        %v1284 = vrcp.pop %v1240
        %v1285 = vmul.f32 %v1240, %v1284
        %v1286 = vsub.f32 1.0, %v1285
        %v1287 = vmul.f32 %v1284, %v1286
        %v1288 = vadd.f32 %v1284, %v1287
        %vm1289 = vweird.f32 %v1240
        %vm1290 = vweird.f32 %v1284
        %vm1291 = vmor %vm1289, %vm1290
        %v1292 = vsel %vm1291, %v1284, %v1288
        %v1293 = vand.u32 2147483647, %v1240
        %vm1294 = vcmp.eq.f32.partialorder %v1293, 8.507059e+37
        %v1295 = vand.u32 %v1240, 2147483648
        %v1296 = vor.u32 1.1754944e-38, %v1295
        %v1297 = vsel %vm1294, %v1296, %v1292
        %v1298 = vmul.f32 1.0, %v1297
        %v1299 = vrcp.pop %v1241
        %v1300 = vmul.f32 %v1241, %v1299
        %v1301 = vsub.f32 1.0, %v1300
        %v1302 = vmul.f32 %v1299, %v1301
        %v1303 = vadd.f32 %v1299, %v1302
        %vm1304 = vweird.f32 %v1241
        %vm1305 = vweird.f32 %v1299
        %vm1306 = vmor %vm1304, %vm1305
        %v1307 = vsel %vm1306, %v1299, %v1303
        %v1308 = vand.u32 2147483647, %v1241
        %vm1309 = vcmp.eq.f32.partialorder %v1308, 8.507059e+37
        %v1310 = vand.u32 %v1241, 2147483648
        %v1311 = vor.u32 1.1754944e-38, %v1310
        %v1312 = vsel %vm1309, %v1311, %v1307
        %v1313 = vmul.f32 1.0, %v1312
        %v1314 = vrcp.pop %v1242
        %v1315 = vmul.f32 %v1242, %v1314
        %v1316 = vsub.f32 1.0, %v1315
        %v1317 = vmul.f32 %v1314, %v1316
        %v1318 = vadd.f32 %v1314, %v1317
        %vm1319 = vweird.f32 %v1242
        %vm1320 = vweird.f32 %v1314
        %vm1321 = vmor %vm1319, %vm1320
        %v1322 = vsel %vm1321, %v1314, %v1318
        %v1323 = vand.u32 2147483647, %v1242
        %vm1324 = vcmp.eq.f32.partialorder %v1323, 8.507059e+37
        %v1325 = vand.u32 %v1242, 2147483648
        %v1326 = vor.u32 1.1754944e-38, %v1325
        %v1327 = vsel %vm1324, %v1326, %v1322
        %v1328 = vmul.f32 1.0, %v1327
        %v1329 = vrcp.pop %v1243
        %v1330 = vmul.f32 %v1243, %v1329
        %v1331 = vsub.f32 1.0, %v1330
        %v1332 = vmul.f32 %v1329, %v1331
        %v1333 = vadd.f32 %v1329, %v1332
        %vm1334 = vweird.f32 %v1243
        %vm1335 = vweird.f32 %v1329
        %vm1336 = vmor %vm1334, %vm1335
        %v1337 = vsel %vm1336, %v1329, %v1333
        %v1338 = vand.u32 2147483647, %v1243
        %vm1339 = vcmp.eq.f32.partialorder %v1338, 8.507059e+37
        %v1340 = vand.u32 %v1243, 2147483648
        %v1341 = vor.u32 1.1754944e-38, %v1340
        %v1342 = vsel %vm1339, %v1341, %v1337
        %v1343 = vmul.f32 1.0, %v1342
        %v1344 = vrcp.pop %v1244
        %v1345 = vmul.f32 %v1244, %v1344
        %v1346 = vsub.f32 1.0, %v1345
        %v1347 = vmul.f32 %v1344, %v1346
        %v1348 = vadd.f32 %v1344, %v1347
        %vm1349 = vweird.f32 %v1244
        %vm1350 = vweird.f32 %v1344
        %vm1351 = vmor %vm1349, %vm1350
        %v1352 = vsel %vm1351, %v1344, %v1348
        %v1353 = vand.u32 2147483647, %v1244
        %vm1354 = vcmp.eq.f32.partialorder %v1353, 8.507059e+37
        %v1355 = vand.u32 %v1244, 2147483648
        %v1356 = vor.u32 1.1754944e-38, %v1355
        %v1357 = vsel %vm1354, %v1356, %v1352
        %v1358 = vmul.f32 1.0, %v1357
        %v1359 = vrcp.pop %v1245
        %v1360 = vmul.f32 %v1245, %v1359
        %v1361 = vsub.f32 1.0, %v1360
        %v1362 = vmul.f32 %v1359, %v1361
        %v1363 = vadd.f32 %v1359, %v1362
        %vm1364 = vweird.f32 %v1245
        %vm1365 = vweird.f32 %v1359
        %vm1366 = vmor %vm1364, %vm1365
        %v1367 = vsel %vm1366, %v1359, %v1363
        %v1368 = vand.u32 2147483647, %v1245
        %vm1369 = vcmp.eq.f32.partialorder %v1368, 8.507059e+37
        %v1370 = vand.u32 %v1245, 2147483648
        %v1371 = vor.u32 1.1754944e-38, %v1370
        %v1372 = vsel %vm1369, %v1371, %v1367
        %v1373 = vmul.f32 1.0, %v1372
        %v1374 = vrcp.pop %v1246
        %v1375 = vmul.f32 %v1246, %v1374
        %v1376 = vsub.f32 1.0, %v1375
        %v1377 = vmul.f32 %v1374, %v1376
        %v1378 = vadd.f32 %v1374, %v1377
        %vm1379 = vweird.f32 %v1246
        %vm1380 = vweird.f32 %v1374
        %vm1381 = vmor %vm1379, %vm1380
        %v1382 = vsel %vm1381, %v1374, %v1378
        %v1383 = vand.u32 2147483647, %v1246
        %vm1384 = vcmp.eq.f32.partialorder %v1383, 8.507059e+37
        %v1385 = vand.u32 %v1246, 2147483648
        %v1386 = vor.u32 1.1754944e-38, %v1385
        %v1387 = vsel %vm1384, %v1386, %v1382
        %v1388 = vmul.f32 1.0, %v1387
        %v1389 = vrcp.pop %v1247
        %v1390 = vmul.f32 %v1247, %v1389
        %v1391 = vsub.f32 1.0, %v1390
        %v1392 = vmul.f32 %v1389, %v1391
        %v1393 = vadd.f32 %v1389, %v1392
        %vm1394 = vweird.f32 %v1247
        %vm1395 = vweird.f32 %v1389
        %vm1396 = vmor %vm1394, %vm1395
        %v1397 = vsel %vm1396, %v1389, %v1393
        %v1398 = vand.u32 2147483647, %v1247
        %vm1399 = vcmp.eq.f32.partialorder %v1398, 8.507059e+37
        %v1400 = vand.u32 %v1247, 2147483648
        %v1401 = vor.u32 1.1754944e-38, %v1400
        %v1402 = vsel %vm1399, %v1401, %v1397
        %v1403 = vmul.f32 1.0, %v1402
        %v1404 = vrcp.pop %v1248
        %v1405 = vmul.f32 %v1248, %v1404
        %v1406 = vsub.f32 1.0, %v1405
        %v1407 = vmul.f32 %v1404, %v1406
        %v1408 = vadd.f32 %v1404, %v1407
        %vm1409 = vweird.f32 %v1248
        %vm1410 = vweird.f32 %v1404
        %vm1411 = vmor %vm1409, %vm1410
        %v1412 = vsel %vm1411, %v1404, %v1408
        %v1413 = vand.u32 2147483647, %v1248
        %vm1414 = vcmp.eq.f32.partialorder %v1413, 8.507059e+37
        %v1415 = vand.u32 %v1248, 2147483648
        %v1416 = vor.u32 1.1754944e-38, %v1415
        %v1417 = vsel %vm1414, %v1416, %v1412
        %v1418 = vmul.f32 1.0, %v1417
        %v1419 = vrcp.pop %v1249
        %v1420 = vmul.f32 %v1249, %v1419
        %v1421 = vsub.f32 1.0, %v1420
        %v1422 = vmul.f32 %v1419, %v1421
        %v1423 = vadd.f32 %v1419, %v1422
        %vm1424 = vweird.f32 %v1249
        %vm1425 = vweird.f32 %v1419
        %vm1426 = vmor %vm1424, %vm1425
        %v1427 = vsel %vm1426, %v1419, %v1423
        %v1428 = vand.u32 2147483647, %v1249
        %vm1429 = vcmp.eq.f32.partialorder %v1428, 8.507059e+37
        %v1430 = vand.u32 %v1249, 2147483648
        %v1431 = vor.u32 1.1754944e-38, %v1430
        %v1432 = vsel %vm1429, %v1431, %v1427
        %v1433 = vmul.f32 1.0, %v1432
        %v1434 = vrcp.pop %v1250
        %v1435 = vmul.f32 %v1250, %v1434
        %v1436 = vsub.f32 1.0, %v1435
        %v1437 = vmul.f32 %v1434, %v1436
        %v1438 = vadd.f32 %v1434, %v1437
        %vm1439 = vweird.f32 %v1250
        %vm1440 = vweird.f32 %v1434
        %vm1441 = vmor %vm1439, %vm1440
        %v1442 = vsel %vm1441, %v1434, %v1438
        %v1443 = vand.u32 2147483647, %v1250
        %vm1444 = vcmp.eq.f32.partialorder %v1443, 8.507059e+37
        %v1445 = vand.u32 %v1250, 2147483648
        %v1446 = vor.u32 1.1754944e-38, %v1445
        %v1447 = vsel %vm1444, %v1446, %v1442
        %v1448 = vmul.f32 1.0, %v1447
        %v1449 = vrcp.pop %v1251
        %v1450 = vmul.f32 %v1251, %v1449
        %v1451 = vsub.f32 1.0, %v1450
        %v1452 = vmul.f32 %v1449, %v1451
        %v1453 = vadd.f32 %v1449, %v1452
        %vm1454 = vweird.f32 %v1251
        %vm1455 = vweird.f32 %v1449
        %vm1456 = vmor %vm1454, %vm1455
        %v1457 = vsel %vm1456, %v1449, %v1453
        %v1458 = vand.u32 2147483647, %v1251
        %vm1459 = vcmp.eq.f32.partialorder %v1458, 8.507059e+37
        %v1460 = vand.u32 %v1251, 2147483648
        %v1461 = vor.u32 1.1754944e-38, %v1460
        %v1462 = vsel %vm1459, %v1461, %v1457
        %v1463 = vmul.f32 1.0, %v1462
        %v1464 = vrcp.pop %v1252
        %v1465 = vmul.f32 %v1252, %v1464
        %v1466 = vsub.f32 1.0, %v1465
        %v1467 = vmul.f32 %v1464, %v1466
        %v1468 = vadd.f32 %v1464, %v1467
        %vm1469 = vweird.f32 %v1252
        %vm1470 = vweird.f32 %v1464
        %vm1471 = vmor %vm1469, %vm1470
        %v1472 = vsel %vm1471, %v1464, %v1468
        %v1473 = vand.u32 2147483647, %v1252
        %vm1474 = vcmp.eq.f32.partialorder %v1473, 8.507059e+37
        %v1475 = vand.u32 %v1252, 2147483648
        %v1476 = vor.u32 1.1754944e-38, %v1475
        %v1477 = vsel %vm1474, %v1476, %v1472
        %v1478 = vmul.f32 1.0, %v1477
        %v1479 = vrcp.pop %v1253
        %v1480 = vmul.f32 %v1253, %v1479
        %v1481 = vsub.f32 1.0, %v1480
        %v1482 = vmul.f32 %v1479, %v1481
        %v1483 = vadd.f32 %v1479, %v1482
        %vm1484 = vweird.f32 %v1253
        %vm1485 = vweird.f32 %v1479
        %vm1486 = vmor %vm1484, %vm1485
        %v1487 = vsel %vm1486, %v1479, %v1483
        %v1488 = vand.u32 2147483647, %v1253
        %vm1489 = vcmp.eq.f32.partialorder %v1488, 8.507059e+37
        %v1490 = vand.u32 %v1253, 2147483648
        %v1491 = vor.u32 1.1754944e-38, %v1490
        %v1492 = vsel %vm1489, %v1491, %v1487
        %v1493 = vmul.f32 1.0, %v1492
        %v1494 = vmul.f32 %v1010, %v1268
        %v1495 = vmul.f32 %v1067, %v1283
        %v1496 = vmul.f32 %v1124, %v1298
        %v1497 = vmul.f32 %v1181, %v1313
        %v1498 = vmul.f32 %v1012, %v1328
        %v1499 = vmul.f32 %v1069, %v1343
        %v1500 = vmul.f32 %v1126, %v1358
        %v1501 = vmul.f32 %v1183, %v1373
        %v1502 = vmul.f32 %v1015, %v1388
        %v1503 = vmul.f32 %v1072, %v1403
        %v1504 = vmul.f32 %v1129, %v1418
        %v1505 = vmul.f32 %v1186, %v1433
        %v1506 = vmul.f32 %v1017, %v1448
        %v1507 = vmul.f32 %v1074, %v1463
        %v1508 = vmul.f32 %v1131, %v1478
        %v1509 = vmul.f32 %v1188, %v1493
        %v1510 = vld [vmem:[%s4] sm:$0xf]
        %v1511 = vld [vmem:[%s4 + $0x4] sm:$0xf]
        %v1512 = vld [vmem:[%s4 + $0x8] sm:$0xf]
        %v1513 = vld [vmem:[%s4 + $0xc] sm:$0xf]
        %v1514 = vld [vmem:[%s429] sm:$0xff]
        %v1515 = vld [vmem:[%s429 + $0x8] sm:$0xff]
        %v1516 = vld [vmem:[%s429 + $0x10] sm:$0xff]
        %v1517 = vld [vmem:[%s429 + $0x18] sm:$0xff]
        %v1518 = vld [vmem:[%s429 + $0x20] sm:$0xff]
        %v1519 = vld [vmem:[%s429 + $0x28] sm:$0xff]
        %v1520 = vld [vmem:[%s429 + $0x30] sm:$0xff]
        %v1521 = vld [vmem:[%s429 + $0x38] sm:$0xff]
        %v1526 = vunpack.c.l.b16 %v1510
        %v1527 = vunpack.c.l.b16 %v1511
        %v1528 = vunpack.c.l.b16 %v1512
        %v1529 = vunpack.c.l.b16 %v1513
        %v1530 = vpack.c.b16 %v1527, %v1526
        %v1531 = vpack.c.b16 %v1529, %v1528
        %v1540 = vunpack.c.l.b16 %v1514
        %v1541 = vunpack.c.h.b16 %v1514
        %v1542 = vunpack.c.l.b16 %v1515
        %v1543 = vunpack.c.h.b16 %v1515
        %v1544 = vunpack.c.l.b16 %v1516
        %v1545 = vunpack.c.h.b16 %v1516
        %v1546 = vunpack.c.l.b16 %v1517
        %v1547 = vunpack.c.h.b16 %v1517
        %v1548 = vunpack.c.l.b16 %v1518
        %v1549 = vunpack.c.h.b16 %v1518
        %v1550 = vunpack.c.l.b16 %v1519
        %v1551 = vunpack.c.h.b16 %v1519
        %v1552 = vunpack.c.l.b16 %v1520
        %v1553 = vunpack.c.h.b16 %v1520
        %v1554 = vunpack.c.l.b16 %v1521
        %v1555 = vunpack.c.h.b16 %v1521
        %v1556 = vpack.c.b16 %v1544, %v1540
        %v1557 = vpack.c.b16 %v1545, %v1541
        %v1558 = vpack.c.b16 %v1546, %v1542
        %v1559 = vpack.c.b16 %v1547, %v1543
        %v1560 = vpack.c.b16 %v1552, %v1548
        %v1561 = vpack.c.b16 %v1553, %v1549
        %v1562 = vpack.c.b16 %v1554, %v1550
        %v1563 = vpack.c.b16 %v1555, %v1551
        %v1573 = vsel %vm955, %v1530, 0
        %v1576 = vsel %vm955, %v1531, 0
        %1578 = vmatpush.bf16.msra.mxu0 0
        %1579 = vmatpush.bf16.msra.mxu0 0
        %1580 = vmatpush.bf16.msra.mxu0 0
        %1581 = vmatpush.bf16.msra.mxu0 0
        %1582 = vmatpush.bf16.msra.mxu0 0
        %1583 = vmatpush.bf16.msra.mxu0 0
        %1584 = vmatpush.bf16.msra.mxu0 %v1560
        %1585 = vmatpush.bf16.msra.mxu0 %v1556
        %1586 = vmatmul.bf16.gmra.mxu0 %v1573
        %v1587 = vpop.f32.mrf.mxu0
        %v1588 = vadd.f32 0.0, %v1587
        %v1589 = vpop.f32.mrf.mxu0
        %v1590 = vadd.f32 0.0, %v1589
        %1591 = vmatmul.bf16.gmra.mxu0 %v1576
        %v1592 = vpop.f32.mrf.mxu0
        %v1593 = vadd.f32 0.0, %v1592
        %v1594 = vpop.f32.mrf.mxu0
        %v1595 = vadd.f32 0.0, %v1594
        %1596 = vdwg.mxu0
        %1597 = vmatpush.bf16.msra.mxu0 0
        %1598 = vmatpush.bf16.msra.mxu0 0
        %1599 = vmatpush.bf16.msra.mxu0 0
        %1600 = vmatpush.bf16.msra.mxu0 0
        %1601 = vmatpush.bf16.msra.mxu0 0
        %1602 = vmatpush.bf16.msra.mxu0 0
        %1603 = vmatpush.bf16.msra.mxu0 %v1561
        %1604 = vmatpush.bf16.msra.mxu0 %v1557
        %1605 = vmatmul.bf16.gmra.mxu0 %v1573
        %v1606 = vpop.f32.mrf.mxu0
        %v1607 = vadd.f32 0.0, %v1606
        %v1608 = vpop.f32.mrf.mxu0
        %v1609 = vadd.f32 0.0, %v1608
        %1610 = vmatmul.bf16.gmra.mxu0 %v1576
        %v1611 = vpop.f32.mrf.mxu0
        %v1612 = vadd.f32 0.0, %v1611
        %v1613 = vpop.f32.mrf.mxu0
        %v1614 = vadd.f32 0.0, %v1613
        %1615 = vdwg.mxu0
        %1616 = vmatpush.bf16.msra.mxu0 0
        %1617 = vmatpush.bf16.msra.mxu0 0
        %1618 = vmatpush.bf16.msra.mxu0 0
        %1619 = vmatpush.bf16.msra.mxu0 0
        %1620 = vmatpush.bf16.msra.mxu0 0
        %1621 = vmatpush.bf16.msra.mxu0 0
        %1622 = vmatpush.bf16.msra.mxu0 %v1562
        %1623 = vmatpush.bf16.msra.mxu0 %v1558
        %1624 = vmatmul.bf16.gmra.mxu0 %v1573
        %v1625 = vpop.f32.mrf.mxu0
        %v1626 = vadd.f32 0.0, %v1625
        %v1627 = vpop.f32.mrf.mxu0
        %v1628 = vadd.f32 0.0, %v1627
        %1629 = vmatmul.bf16.gmra.mxu0 %v1576
        %v1630 = vpop.f32.mrf.mxu0
        %v1631 = vadd.f32 0.0, %v1630
        %v1632 = vpop.f32.mrf.mxu0
        %v1633 = vadd.f32 0.0, %v1632
        %1634 = vdwg.mxu0
        %1635 = vmatpush.bf16.msra.mxu0 0
        %1636 = vmatpush.bf16.msra.mxu0 0
        %1637 = vmatpush.bf16.msra.mxu0 0
        %1638 = vmatpush.bf16.msra.mxu0 0
        %1639 = vmatpush.bf16.msra.mxu0 0
        %1640 = vmatpush.bf16.msra.mxu0 0
        %1641 = vmatpush.bf16.msra.mxu0 %v1563
        %1642 = vmatpush.bf16.msra.mxu0 %v1559
        %1643 = vmatmul.bf16.gmra.mxu0 %v1573
        %v1644 = vpop.f32.mrf.mxu0
        %v1645 = vadd.f32 0.0, %v1644
        %v1646 = vpop.f32.mrf.mxu0
        %v1647 = vadd.f32 0.0, %v1646
        %1648 = vmatmul.bf16.gmra.mxu0 %v1576
        %v1649 = vpop.f32.mrf.mxu0
        %v1650 = vadd.f32 0.0, %v1649
        %v1651 = vpop.f32.mrf.mxu0
        %v1652 = vadd.f32 0.0, %v1651
        %1653 = vdwg.mxu0
        %v1654 = vadd.f32 %v1494, %v1588
        %v1655 = vadd.f32 %v1495, %v1607
        %v1656 = vadd.f32 %v1496, %v1626
        %v1657 = vadd.f32 %v1497, %v1645
        %v1658 = vadd.f32 %v1498, %v1590
        %v1659 = vadd.f32 %v1499, %v1609
        %v1660 = vadd.f32 %v1500, %v1628
        %v1661 = vadd.f32 %v1501, %v1647
        %v1662 = vadd.f32 %v1502, %v1593
        %v1663 = vadd.f32 %v1503, %v1612
        %v1664 = vadd.f32 %v1504, %v1631
        %v1665 = vadd.f32 %v1505, %v1650
        %v1666 = vadd.f32 %v1506, %v1595
        %v1667 = vadd.f32 %v1507, %v1614
        %v1668 = vadd.f32 %v1508, %v1633
        %v1669 = vadd.f32 %v1509, %v1652
        %v1670 = vpack.c.bf16 %v1655, %v1654
        %v1671 = vpack.c.bf16 %v1657, %v1656
        %v1672 = vpack.c.bf16 %v1659, %v1658
        %v1673 = vpack.c.bf16 %v1661, %v1660
        %v1674 = vpack.c.bf16 %v1663, %v1662
        %v1675 = vpack.c.bf16 %v1665, %v1664
        %v1676 = vpack.c.bf16 %v1667, %v1666
        %v1677 = vpack.c.bf16 %v1669, %v1668
        %1678 = vst [vmem:[%s456] sm:$0xff] %v1670
        %1679 = vst [vmem:[%s456 + $0x8] sm:$0xff] %v1671
        %1680 = vst [vmem:[%s456 + $0x10] sm:$0xff] %v1672
        %1681 = vst [vmem:[%s456 + $0x18] sm:$0xff] %v1673
        %1682 = vst [vmem:[%s456 + $0x20] sm:$0xff] %v1674
        %1683 = vst [vmem:[%s456 + $0x28] sm:$0xff] %v1675
        %1684 = vst [vmem:[%s456 + $0x30] sm:$0xff] %v1676
        %1685 = vst [vmem:[%s456 + $0x38] sm:$0xff] %v1677
        %s1686 = sand.u32 %s157, 1
        %s1687 = sand.u32 %s157, 1
        %s1688 = smul.addr %s1687, 64
        %s1689 = scalar_lea.vmem [#allocation4], %s1688
        // Predicated region
        $region87: #{forward.5} parent=77 // pred_check
          %p1690 = pneg %p167
        $region88: #{forward.5} parent=77 // pred_check_branch
          %1692 = sbr.rel (%p1690) target = $region90
        $region89: #{forward.5} parent=77 // pred_region
          %s1693 = smul.u32 4, %s21
          %s1694 = smul.addr %s20, 32
          %s1695 = sadd.s32 %s1693, %s1694
          %s1696 = smul.addr %s1695, 4
          %s1697 = scalar_lea.vmem %s5, %s1696
          // Predicated region
          $region91: #{forward.5} parent=89 // pred_check
            _
          $region92: #{forward.5} parent=89 // pred_check_branch
            %1699 = sbr.rel (0) target = $region94
          $region93: #{forward.5} parent=89 // pred_region
            // Predicated region
            $region95: #{forward.5} parent=93 // pred_check
              _
            $region96: #{forward.5} parent=93 // pred_check_branch
              %1701 = sbr.rel (0) target = $region98
            $region97: #{forward.5} parent=93 // pred_region
              loop: start=0, step=1, limit=1
              $region99: #{forward.5} parent=97 // loop_pre_header
                _
              $region100: #{forward.5} parent=97 // loop_header
                %s1703 = sphi 0, %s1707
                %p1704 = scmp.ge.s32.totalorder %s1703, 1
                %s1708 = sphi %s1689, %s1689
                %s1709 = sphi %s1697, %s1697
              $region101: #{forward.5} parent=97 // loop_header_branch
                %1706 = sbr.rel (%p1704) target = $region105
              $region102: #{forward.5} parent=97 // loop_body
                %v1710 = vld [vmem:[%s1708] sm:$0xff]
                %1711 = vst [vmem:[%s1709] sm:$0xff] %v1710
                %v1712 = vld [vmem:[%s1708 + $0x8] sm:$0xff]
                %1713 = vst [vmem:[%s1709 + $0x8] sm:$0xff] %v1712
                %v1714 = vld [vmem:[%s1708 + $0x10] sm:$0xff]
                %1715 = vst [vmem:[%s1709 + $0x20] sm:$0xff] %v1714
                %v1716 = vld [vmem:[%s1708 + $0x18] sm:$0xff]
                %1717 = vst [vmem:[%s1709 + $0x28] sm:$0xff] %v1716
                %v1718 = vld [vmem:[%s1708 + $0x20] sm:$0xff]
                %1719 = vst [vmem:[%s1709 + $0x40] sm:$0xff] %v1718
                %v1720 = vld [vmem:[%s1708 + $0x28] sm:$0xff]
                %1721 = vst [vmem:[%s1709 + $0x48] sm:$0xff] %v1720
                %v1722 = vld [vmem:[%s1708 + $0x30] sm:$0xff]
                %1723 = vst [vmem:[%s1709 + $0x60] sm:$0xff] %v1722
                %v1724 = vld [vmem:[%s1708 + $0x38] sm:$0xff]
                %1725 = vst [vmem:[%s1709 + $0x68] sm:$0xff] %v1724
              $region103: #{forward.5} parent=97 // loop_footer
                %s1707 = sadd.s32 1, %s1703
              $region104: #{forward.5} parent=97 // loop_footer_branch
                %1702 = sbr.rel target = $region100
              $region105: #{forward.5} parent=97 // loop_exit
                _
            $region98: #{forward.5} parent=93 // pred_fallthru
              _
            // Predicated region
            $region106: #{forward.5} parent=93 // pred_check
              _
            $region107: #{forward.5} parent=93 // pred_check_branch
              %1727 = sbr.rel target = $region109
            $region108: #{forward.5} parent=93 // pred_region
              _
            $region109: #{forward.5} parent=93 // pred_fallthru
              _
          $region94: #{forward.5} parent=89 // pred_fallthru
            _
          %1728 = vnop
        $region90: #{forward.5} parent=77 // pred_fallthru
          _
      $region78: #{forward.5} parent=5 // pred_fallthru
        _
      %p1729 = scmp.le.s32.totalorder 2, %s11
      // Predicated region
      $region110: #{forward.5} parent=5 // pred_check
        %p1730 = pneg %p1729
      $region111: #{forward.5} parent=5 // pred_check_branch
        %1732 = sbr.rel (%p1730) target = $region113
      $region112: #{forward.5} parent=5 // pred_region
        %s1733 = ssub.s32 %s11, 2
        // Predicated region
        $region114: #{forward.5} parent=112 // pred_check
          %p1734 = pneg %p173
        $region115: #{forward.5} parent=112 // pred_check_branch
          %1736 = sbr.rel (%p1734) target = $region117
        $region116: #{forward.5} parent=112 // pred_region
          %s1737 = sand.u32 %s158, 1
          %s1738 = sand.u32 %s158, 1
          %s1739 = smul.addr %s1738, 64
          %s1740 = scalar_lea.vmem [#allocation4], %s1739
        $region117: #{forward.5} parent=112 // pred_fallthru
          _
      $region113: #{forward.5} parent=5 // pred_fallthru
        _
    $region6: #{forward.5} parent=1 // loop_footer
      %s15 = sadd.s32 1, %s11
    $region7: #{forward.5} parent=1 // loop_footer_branch
      %10 = sbr.rel target = $region3
    $region8: #{forward.5} parent=1 // loop_exit
      _

// kernel: forward.6
$region0: #{forward.6}
  #allocation0 [shape = 'u32[]', space=smem, size = 0x4, offset = 0x4, fixed_abs, tag = 'smem constant byte address 0x4 - core index']
  #allocation1 [shape = 'u32[72,128]{1,0:T(1,128)}', space=vmem, size = 0x9000, scoped, tag = 'internal scratch']
  %s0 = inlined_call_operand.vmem [shape: bf16[2,288,4096], index: 0, kind: input, shape index: {}]
  %s1 = inlined_call_operand.vmem [shape: bf16[16,288], index: 1, kind: input, shape index: {}]
  %s2 = inlined_call_operand.vmem [shape: f32[16,1], index: 2, kind: input, shape index: {}]
  %s3 = inlined_call_operand.vmem [shape: bf16[2,16,4096], index: 3, kind: input, shape index: {}]
  %s4 = inlined_call_operand.vmem [shape: bf16[16,16], index: 4, kind: input, shape index: {}]
  %s5 = inlined_call_operand.vmem [shape: bf16[2,16,4096], index: 5, kind: output, shape index: {}]
  %s6 = sld [smem:[#allocation0]]
  $region118: #{forward.6} parent=0
    _
  %s8 = ssub.s32 1, %s6
  %s9 = scalar_select 0, %s8, %s6
  $region1: #{forward.6} parent=0
    #allocation2 [shape = 'u8[589824]{0}', space=vmem, size = 0x90000, scoped, tag = 'input window, operand 0']
    #allocation3 [shape = 'u8[32768]{0}', space=vmem, size = 0x8000, scoped, tag = 'input window, operand 3']
    #allocation4 [shape = 'u8[32768]{0}', space=vmem, size = 0x8000, scoped, tag = 'output window, operand 0']
    loop: start=0, step=1, limit=18
    $region2: #{forward.6} parent=1 // loop_pre_header
      _
    $region3: #{forward.6} parent=1 // loop_header
      %s11 = sphi 0, %s15
      %p12 = scmp.ge.s32.totalorder %s11, 18
      %s18 = sphi 0, %s30
      %s19 = sphi 0, %s26
      %s20 = sphi 0, %s18
      %s21 = sphi 0, %s19
      %s22 = sphi 0, %s20
      %s23 = sphi 0, %s21
      %s35 = sphi 0, %s37
      %s38 = sphi 0, %s35
      %s39 = sphi 0, %s38
      %s55 = sphi 0, %s39
      %s59 = sphi 0, %s59
      %s61 = sphi 0, %s59
      %s62 = sphi 0, %s61
      %s76 = sphi 0, %s62
      %s80 = sphi 0, %s80
      %s82 = sphi 0, %s80
      %s83 = sphi 0, %s82
      %s97 = sphi 0, %s83
      %s105 = sphi 0, %s107
      %s108 = sphi 0, %s105
      %s109 = sphi 0, %s108
      %s125 = sphi 0, %s109
      %s129 = sphi 0, %s129
      %s131 = sphi 0, %s129
      %s132 = sphi 0, %s131
      %s146 = sphi 0, %s132
      %s154 = sphi 0, %s156
      %s157 = sphi 0, %s154
      %s158 = sphi 0, %s157
      %s174 = sphi 0, %s158
    $region4: #{forward.6} parent=1 // loop_header_branch
      %14 = sbr.rel (%p12) target = $region8
    $region5: #{forward.6} parent=1 // loop_body
      %s16 = ssub.s32 %s11, 1
      %s17 = ssub.s32 %s11, 2
      %s24 = sadd.s32 1, %s19
      %p25 = scmp.ge.s32.totalorder %s24, 8
      %s26 = scalar_select %p25, 0, %s24
      %s27 = sadd.s32 1, %s18
      %s28 = scalar_select %p25, %s27, %s18
      %p29 = scmp.ge.s32.totalorder %s28, 2
      %s30 = scalar_select %p29, 0, %s28
      %s31 = ssub.s32 %s18, %s30
      %s32 = ssub.s32 %s19, %s26
      %s33 = sor.u32 %s31, %s32
      %p34 = scmp.eq.s32.totalorder %s33, 0
      %s36 = sadd.s32 %s35, 1
      %s37 = scalar_select %p34, %s35, %s36
      %p40 = pneg %p34
      %p41 = scmp.eq.s32.totalorder %s11, 15
      %p42 = por %p40, %p41
      %p43 = scmp.ne.s32.totalorder %s35, %s38
      %p44 = scmp.eq.s32.totalorder %s11, 0
      %p45 = por %p43, %p44
      %p46 = scmp.ne.s32.totalorder %s35, %s38
      %p47 = scmp.eq.s32.totalorder %s16, 15
      %p48 = por %p46, %p47
      %p49 = scmp.ne.s32.totalorder %s38, %s39
      %p50 = scmp.eq.s32.totalorder %s16, 0
      %p51 = por %p49, %p50
      %p52 = scmp.ne.s32.totalorder %s38, %s39
      %p53 = scmp.eq.s32.totalorder %s17, 15
      %p54 = por %p52, %p53
      %p56 = scmp.ne.s32.totalorder %s39, %s55
      %p57 = scmp.eq.s32.totalorder %s17, 0
      %p58 = por %p56, %p57
      %s60 = sadd.s32 %s59, 1
      %p63 = scmp.eq.s32.totalorder %s11, 15
      %p64 = scmp.ne.s32.totalorder %s59, %s61
      %p65 = scmp.eq.s32.totalorder %s11, 0
      %p66 = por %p64, %p65
      %p67 = scmp.ne.s32.totalorder %s59, %s61
      %p68 = scmp.eq.s32.totalorder %s16, 15
      %p69 = por %p67, %p68
      %p70 = scmp.ne.s32.totalorder %s61, %s62
      %p71 = scmp.eq.s32.totalorder %s16, 0
      %p72 = por %p70, %p71
      %p73 = scmp.ne.s32.totalorder %s61, %s62
      %p74 = scmp.eq.s32.totalorder %s17, 15
      %p75 = por %p73, %p74
      %p77 = scmp.ne.s32.totalorder %s62, %s76
      %p78 = scmp.eq.s32.totalorder %s17, 0
      %p79 = por %p77, %p78
      %s81 = sadd.s32 %s80, 1
      %p84 = scmp.eq.s32.totalorder %s11, 15
      %p85 = scmp.ne.s32.totalorder %s80, %s82
      %p86 = scmp.eq.s32.totalorder %s11, 0
      %p87 = por %p85, %p86
      %p88 = scmp.ne.s32.totalorder %s80, %s82
      %p89 = scmp.eq.s32.totalorder %s16, 15
      %p90 = por %p88, %p89
      %p91 = scmp.ne.s32.totalorder %s82, %s83
      %p92 = scmp.eq.s32.totalorder %s16, 0
      %p93 = por %p91, %p92
      %p94 = scmp.ne.s32.totalorder %s82, %s83
      %p95 = scmp.eq.s32.totalorder %s17, 15
      %p96 = por %p94, %p95
      %p98 = scmp.ne.s32.totalorder %s83, %s97
      %p99 = scmp.eq.s32.totalorder %s17, 0
      %p100 = por %p98, %p99
      %s101 = ssub.s32 %s18, %s30
      %s102 = ssub.s32 %s19, %s26
      %s103 = sor.u32 %s101, %s102
      %p104 = scmp.eq.s32.totalorder %s103, 0
      %s106 = sadd.s32 %s105, 1
      %s107 = scalar_select %p104, %s105, %s106
      %p110 = pneg %p104
      %p111 = scmp.eq.s32.totalorder %s11, 15
      %p112 = por %p110, %p111
      %p113 = scmp.ne.s32.totalorder %s105, %s108
      %p114 = scmp.eq.s32.totalorder %s11, 0
      %p115 = por %p113, %p114
      %p116 = scmp.ne.s32.totalorder %s105, %s108
      %p117 = scmp.eq.s32.totalorder %s16, 15
      %p118 = por %p116, %p117
      %p119 = scmp.ne.s32.totalorder %s108, %s109
      %p120 = scmp.eq.s32.totalorder %s16, 0
      %p121 = por %p119, %p120
      %p122 = scmp.ne.s32.totalorder %s108, %s109
      %p123 = scmp.eq.s32.totalorder %s17, 15
      %p124 = por %p122, %p123
      %p126 = scmp.ne.s32.totalorder %s109, %s125
      %p127 = scmp.eq.s32.totalorder %s17, 0
      %p128 = por %p126, %p127
      %s130 = sadd.s32 %s129, 1
      %p133 = scmp.eq.s32.totalorder %s11, 15
      %p134 = scmp.ne.s32.totalorder %s129, %s131
      %p135 = scmp.eq.s32.totalorder %s11, 0
      %p136 = por %p134, %p135
      %p137 = scmp.ne.s32.totalorder %s129, %s131
      %p138 = scmp.eq.s32.totalorder %s16, 15
      %p139 = por %p137, %p138
      %p140 = scmp.ne.s32.totalorder %s131, %s132
      %p141 = scmp.eq.s32.totalorder %s16, 0
      %p142 = por %p140, %p141
      %p143 = scmp.ne.s32.totalorder %s131, %s132
      %p144 = scmp.eq.s32.totalorder %s17, 15
      %p145 = por %p143, %p144
      %p147 = scmp.ne.s32.totalorder %s132, %s146
      %p148 = scmp.eq.s32.totalorder %s17, 0
      %p149 = por %p147, %p148
      %s150 = ssub.s32 %s18, %s30
      %s151 = ssub.s32 %s19, %s26
      %s152 = sor.u32 %s150, %s151
      %p153 = scmp.eq.s32.totalorder %s152, 0
      %s155 = sadd.s32 %s154, 1
      %s156 = scalar_select %p153, %s154, %s155
      %p159 = pneg %p153
      %p160 = scmp.eq.s32.totalorder %s11, 15
      %p161 = por %p159, %p160
      %p162 = scmp.ne.s32.totalorder %s154, %s157
      %p163 = scmp.eq.s32.totalorder %s11, 0
      %p164 = por %p162, %p163
      %p165 = scmp.ne.s32.totalorder %s154, %s157
      %p166 = scmp.eq.s32.totalorder %s16, 15
      %p167 = por %p165, %p166
      %p168 = scmp.ne.s32.totalorder %s157, %s158
      %p169 = scmp.eq.s32.totalorder %s16, 0
      %p170 = por %p168, %p169
      %p171 = scmp.ne.s32.totalorder %s157, %s158
      %p172 = scmp.eq.s32.totalorder %s17, 15
      %p173 = por %p171, %p172
      %p175 = scmp.ne.s32.totalorder %s158, %s174
      %p176 = scmp.eq.s32.totalorder %s17, 0
      %p177 = por %p175, %p176
      %p178 = scmp.le.s32.totalorder 1, %s11
      %p179 = scmp.lt.s32.totalorder %s11, 17
      %p180 = pnand %p178, %p179
      %p181 = pneg %p180
      // Predicated region
      $region9: #{forward.6} parent=5 // pred_check
        _
      $region10: #{forward.6} parent=5 // pred_check_branch
        %183 = sbr.rel (%p180) target = $region12
      $region11: #{forward.6} parent=5 // pred_region
        %s184 = ssub.s32 %s11, 1
        // Predicated region
        $region13: #{forward.6} parent=11 // pred_check
          %p185 = pneg %p72
        $region14: #{forward.6} parent=11 // pred_check_branch
          %187 = sbr.rel (%p185) target = $region16
        $region15: #{forward.6} parent=11 // pred_region
          _
        $region16: #{forward.6} parent=11 // pred_fallthru
          _
        // Predicated region
        $region17: #{forward.6} parent=11 // pred_check
          %p188 = pneg %p93
        $region18: #{forward.6} parent=11 // pred_check_branch
          %190 = sbr.rel (%p188) target = $region20
        $region19: #{forward.6} parent=11 // pred_region
          _
        $region20: #{forward.6} parent=11 // pred_fallthru
          _
        // Predicated region
        $region21: #{forward.6} parent=11 // pred_check
          %p191 = pneg %p142
        $region22: #{forward.6} parent=11 // pred_check_branch
          %193 = sbr.rel (%p191) target = $region24
        $region23: #{forward.6} parent=11 // pred_region
          _
        $region24: #{forward.6} parent=11 // pred_fallthru
          _
      $region12: #{forward.6} parent=5 // pred_fallthru
        _
      %p194 = scmp.lt.s32.totalorder %s11, 16
      // Predicated region
      $region25: #{forward.6} parent=5 // pred_check
        %p195 = pneg %p194
      $region26: #{forward.6} parent=5 // pred_check_branch
        %197 = sbr.rel (%p195) target = $region28
      $region27: #{forward.6} parent=5 // pred_region
        // Predicated region
        $region29: #{forward.6} parent=27 // pred_check
          %p198 = pneg %p45
        $region30: #{forward.6} parent=27 // pred_check_branch
          %200 = sbr.rel (%p198) target = $region32
        $region31: #{forward.6} parent=27 // pred_region
          %s201 = sand.u32 %s35, 1
          %s202 = sand.u32 %s35, 1
          %s203 = smul.addr %s202, 576
          %s204 = scalar_lea.vmem [#allocation2], %s203
          %s205 = smul.u32 4, %s19
          %s206 = smul.addr %s18, 1152
          %s207 = sadd.s32 %s205, %s206
          %s208 = smul.addr %s207, 4
          %s209 = scalar_lea.vmem %s0, %s208
          // Predicated region
          $region33: #{forward.6} parent=31 // pred_check
            _
          $region34: #{forward.6} parent=31 // pred_check_branch
            %211 = sbr.rel (0) target = $region36
          $region35: #{forward.6} parent=31 // pred_region
            // Predicated region
            $region37: #{forward.6} parent=35 // pred_check
              _
            $region38: #{forward.6} parent=35 // pred_check_branch
              %213 = sbr.rel (0) target = $region40
            $region39: #{forward.6} parent=35 // pred_region
              loop: start=0, step=1, limit=1
              $region41: #{forward.6} parent=39 // loop_pre_header
                _
              $region42: #{forward.6} parent=39 // loop_header
                %s215 = sphi 0, %s219
                %p216 = scmp.ge.s32.totalorder %s215, 1
                %s220 = sphi %s209, %s209
                %s221 = sphi %s204, %s204
              $region43: #{forward.6} parent=39 // loop_header_branch
                %218 = sbr.rel (%p216) target = $region47
              $region44: #{forward.6} parent=39 // loop_body
                %v222 = vld [vmem:[%s220] sm:$0xff]
                %223 = vst [vmem:[%s221] sm:$0xff] %v222
                %v224 = vld [vmem:[%s220 + $0x8] sm:$0xff]
                %225 = vst [vmem:[%s221 + $0x8] sm:$0xff] %v224
                %v226 = vld [vmem:[%s220 + $0x80] sm:$0xff]
                %227 = vst [vmem:[%s221 + $0x10] sm:$0xff] %v226
                %v228 = vld [vmem:[%s220 + $0x88] sm:$0xff]
                %229 = vst [vmem:[%s221 + $0x18] sm:$0xff] %v228
                %v230 = vld [vmem:[%s220 + $0x100] sm:$0xff]
                %231 = vst [vmem:[%s221 + $0x20] sm:$0xff] %v230
                %v232 = vld [vmem:[%s220 + $0x108] sm:$0xff]
                %233 = vst [vmem:[%s221 + $0x28] sm:$0xff] %v232
                %v234 = vld [vmem:[%s220 + $0x180] sm:$0xff]
                %235 = vst [vmem:[%s221 + $0x30] sm:$0xff] %v234
                %v236 = vld [vmem:[%s220 + $0x188] sm:$0xff]
                %237 = vst [vmem:[%s221 + $0x38] sm:$0xff] %v236
                %v238 = vld [vmem:[%s220 + $0x200] sm:$0xff]
                %239 = vst [vmem:[%s221 + $0x40] sm:$0xff] %v238
                %v240 = vld [vmem:[%s220 + $0x208] sm:$0xff]
                %241 = vst [vmem:[%s221 + $0x48] sm:$0xff] %v240
                %v242 = vld [vmem:[%s220 + $0x280] sm:$0xff]
                %243 = vst [vmem:[%s221 + $0x50] sm:$0xff] %v242
                %v244 = vld [vmem:[%s220 + $0x288] sm:$0xff]
                %245 = vst [vmem:[%s221 + $0x58] sm:$0xff] %v244
                %v246 = vld [vmem:[%s220 + $0x300] sm:$0xff]
                %247 = vst [vmem:[%s221 + $0x60] sm:$0xff] %v246
                %v248 = vld [vmem:[%s220 + $0x308] sm:$0xff]
                %249 = vst [vmem:[%s221 + $0x68] sm:$0xff] %v248
                %v250 = vld [vmem:[%s220 + $0x380] sm:$0xff]
                %251 = vst [vmem:[%s221 + $0x70] sm:$0xff] %v250
                %v252 = vld [vmem:[%s220 + $0x388] sm:$0xff]
                %253 = vst [vmem:[%s221 + $0x78] sm:$0xff] %v252
                %v254 = vld [vmem:[%s220 + $0x400] sm:$0xff]
                %255 = vst [vmem:[%s221 + $0x80] sm:$0xff] %v254
                %v256 = vld [vmem:[%s220 + $0x408] sm:$0xff]
                %257 = vst [vmem:[%s221 + $0x88] sm:$0xff] %v256
                %v258 = vld [vmem:[%s220 + $0x480] sm:$0xff]
                %259 = vst [vmem:[%s221 + $0x90] sm:$0xff] %v258
                %v260 = vld [vmem:[%s220 + $0x488] sm:$0xff]
                %261 = vst [vmem:[%s221 + $0x98] sm:$0xff] %v260
                %v262 = vld [vmem:[%s220 + $0x500] sm:$0xff]
                %263 = vst [vmem:[%s221 + $0xa0] sm:$0xff] %v262
                %v264 = vld [vmem:[%s220 + $0x508] sm:$0xff]
                %265 = vst [vmem:[%s221 + $0xa8] sm:$0xff] %v264
                %v266 = vld [vmem:[%s220 + $0x580] sm:$0xff]
                %267 = vst [vmem:[%s221 + $0xb0] sm:$0xff] %v266
                %v268 = vld [vmem:[%s220 + $0x588] sm:$0xff]
                %269 = vst [vmem:[%s221 + $0xb8] sm:$0xff] %v268
                %v270 = vld [vmem:[%s220 + $0x600] sm:$0xff]
                %271 = vst [vmem:[%s221 + $0xc0] sm:$0xff] %v270
                %v272 = vld [vmem:[%s220 + $0x608] sm:$0xff]
                %273 = vst [vmem:[%s221 + $0xc8] sm:$0xff] %v272
                %v274 = vld [vmem:[%s220 + $0x680] sm:$0xff]
                %275 = vst [vmem:[%s221 + $0xd0] sm:$0xff] %v274
                %v276 = vld [vmem:[%s220 + $0x688] sm:$0xff]
                %277 = vst [vmem:[%s221 + $0xd8] sm:$0xff] %v276
                %v278 = vld [vmem:[%s220 + $0x700] sm:$0xff]
                %279 = vst [vmem:[%s221 + $0xe0] sm:$0xff] %v278
                %v280 = vld [vmem:[%s220 + $0x708] sm:$0xff]
                %281 = vst [vmem:[%s221 + $0xe8] sm:$0xff] %v280
                %v282 = vld [vmem:[%s220 + $0x780] sm:$0xff]
                %283 = vst [vmem:[%s221 + $0xf0] sm:$0xff] %v282
                %v284 = vld [vmem:[%s220 + $0x788] sm:$0xff]
                %285 = vst [vmem:[%s221 + $0xf8] sm:$0xff] %v284
                %v286 = vld [vmem:[%s220 + $0x800] sm:$0xff]
                %287 = vst [vmem:[%s221 + $0x100] sm:$0xff] %v286
                %v288 = vld [vmem:[%s220 + $0x808] sm:$0xff]
                %289 = vst [vmem:[%s221 + $0x108] sm:$0xff] %v288
                %v290 = vld [vmem:[%s220 + $0x880] sm:$0xff]
                %291 = vst [vmem:[%s221 + $0x110] sm:$0xff] %v290
                %v292 = vld [vmem:[%s220 + $0x888] sm:$0xff]
                %293 = vst [vmem:[%s221 + $0x118] sm:$0xff] %v292
                %v294 = vld [vmem:[%s220 + $0x900] sm:$0xff]
                %295 = vst [vmem:[%s221 + $0x120] sm:$0xff] %v294
                %v296 = vld [vmem:[%s220 + $0x908] sm:$0xff]
                %297 = vst [vmem:[%s221 + $0x128] sm:$0xff] %v296
                %v298 = vld [vmem:[%s220 + $0x980] sm:$0xff]
                %299 = vst [vmem:[%s221 + $0x130] sm:$0xff] %v298
                %v300 = vld [vmem:[%s220 + $0x988] sm:$0xff]
                %301 = vst [vmem:[%s221 + $0x138] sm:$0xff] %v300
                %v302 = vld [vmem:[%s220 + $0xa00] sm:$0xff]
                %303 = vst [vmem:[%s221 + $0x140] sm:$0xff] %v302
                %v304 = vld [vmem:[%s220 + $0xa08] sm:$0xff]
                %305 = vst [vmem:[%s221 + $0x148] sm:$0xff] %v304
                %v306 = vld [vmem:[%s220 + $0xa80] sm:$0xff]
                %307 = vst [vmem:[%s221 + $0x150] sm:$0xff] %v306
                %v308 = vld [vmem:[%s220 + $0xa88] sm:$0xff]
                %309 = vst [vmem:[%s221 + $0x158] sm:$0xff] %v308
                %v310 = vld [vmem:[%s220 + $0xb00] sm:$0xff]
                %311 = vst [vmem:[%s221 + $0x160] sm:$0xff] %v310
                %v312 = vld [vmem:[%s220 + $0xb08] sm:$0xff]
                %313 = vst [vmem:[%s221 + $0x168] sm:$0xff] %v312
                %v314 = vld [vmem:[%s220 + $0xb80] sm:$0xff]
                %315 = vst [vmem:[%s221 + $0x170] sm:$0xff] %v314
                %v316 = vld [vmem:[%s220 + $0xb88] sm:$0xff]
                %317 = vst [vmem:[%s221 + $0x178] sm:$0xff] %v316
                %v318 = vld [vmem:[%s220 + $0xc00] sm:$0xff]
                %319 = vst [vmem:[%s221 + $0x180] sm:$0xff] %v318
                %v320 = vld [vmem:[%s220 + $0xc08] sm:$0xff]
                %321 = vst [vmem:[%s221 + $0x188] sm:$0xff] %v320
                %v322 = vld [vmem:[%s220 + $0xc80] sm:$0xff]
                %323 = vst [vmem:[%s221 + $0x190] sm:$0xff] %v322
                %v324 = vld [vmem:[%s220 + $0xc88] sm:$0xff]
                %325 = vst [vmem:[%s221 + $0x198] sm:$0xff] %v324
                %v326 = vld [vmem:[%s220 + $0xd00] sm:$0xff]
                %327 = vst [vmem:[%s221 + $0x1a0] sm:$0xff] %v326
                %v328 = vld [vmem:[%s220 + $0xd08] sm:$0xff]
                %329 = vst [vmem:[%s221 + $0x1a8] sm:$0xff] %v328
                %v330 = vld [vmem:[%s220 + $0xd80] sm:$0xff]
                %331 = vst [vmem:[%s221 + $0x1b0] sm:$0xff] %v330
                %v332 = vld [vmem:[%s220 + $0xd88] sm:$0xff]
                %333 = vst [vmem:[%s221 + $0x1b8] sm:$0xff] %v332
                %v334 = vld [vmem:[%s220 + $0xe00] sm:$0xff]
                %335 = vst [vmem:[%s221 + $0x1c0] sm:$0xff] %v334
                %v336 = vld [vmem:[%s220 + $0xe08] sm:$0xff]
                %337 = vst [vmem:[%s221 + $0x1c8] sm:$0xff] %v336
                %v338 = vld [vmem:[%s220 + $0xe80] sm:$0xff]
                %339 = vst [vmem:[%s221 + $0x1d0] sm:$0xff] %v338
                %v340 = vld [vmem:[%s220 + $0xe88] sm:$0xff]
                %341 = vst [vmem:[%s221 + $0x1d8] sm:$0xff] %v340
                %v342 = vld [vmem:[%s220 + $0xf00] sm:$0xff]
                %343 = vst [vmem:[%s221 + $0x1e0] sm:$0xff] %v342
                %v344 = vld [vmem:[%s220 + $0xf08] sm:$0xff]
                %345 = vst [vmem:[%s221 + $0x1e8] sm:$0xff] %v344
                %v346 = vld [vmem:[%s220 + $0xf80] sm:$0xff]
                %347 = vst [vmem:[%s221 + $0x1f0] sm:$0xff] %v346
                %v348 = vld [vmem:[%s220 + $0xf88] sm:$0xff]
                %349 = vst [vmem:[%s221 + $0x1f8] sm:$0xff] %v348
                %v350 = vld [vmem:[%s220 + $0x1000] sm:$0xff]
                %351 = vst [vmem:[%s221 + $0x200] sm:$0xff] %v350
                %v352 = vld [vmem:[%s220 + $0x1008] sm:$0xff]
                %353 = vst [vmem:[%s221 + $0x208] sm:$0xff] %v352
                %v354 = vld [vmem:[%s220 + $0x1080] sm:$0xff]
                %355 = vst [vmem:[%s221 + $0x210] sm:$0xff] %v354
                %v356 = vld [vmem:[%s220 + $0x1088] sm:$0xff]
                %357 = vst [vmem:[%s221 + $0x218] sm:$0xff] %v356
                %v358 = vld [vmem:[%s220 + $0x1100] sm:$0xff]
                %359 = vst [vmem:[%s221 + $0x220] sm:$0xff] %v358
                %v360 = vld [vmem:[%s220 + $0x1108] sm:$0xff]
                %361 = vst [vmem:[%s221 + $0x228] sm:$0xff] %v360
                %v362 = vld [vmem:[%s220 + $0x1180] sm:$0xff]
                %363 = vst [vmem:[%s221 + $0x230] sm:$0xff] %v362
                %v364 = vld [vmem:[%s220 + $0x1188] sm:$0xff]
                %365 = vst [vmem:[%s221 + $0x238] sm:$0xff] %v364
              $region45: #{forward.6} parent=39 // loop_footer
                %s219 = sadd.s32 1, %s215
              $region46: #{forward.6} parent=39 // loop_footer_branch
                %214 = sbr.rel target = $region42
              $region47: #{forward.6} parent=39 // loop_exit
                _
            $region40: #{forward.6} parent=35 // pred_fallthru
              _
            // Predicated region
            $region48: #{forward.6} parent=35 // pred_check
              _
            $region49: #{forward.6} parent=35 // pred_check_branch
              %367 = sbr.rel target = $region51
            $region50: #{forward.6} parent=35 // pred_region
              _
            $region51: #{forward.6} parent=35 // pred_fallthru
              _
          $region36: #{forward.6} parent=31 // pred_fallthru
            _
          %368 = vnop
        $region32: #{forward.6} parent=27 // pred_fallthru
          _
        // Predicated region
        $region52: #{forward.6} parent=27 // pred_check
          %p369 = pneg %p115
        $region53: #{forward.6} parent=27 // pred_check_branch
          %371 = sbr.rel (%p369) target = $region55
        $region54: #{forward.6} parent=27 // pred_region
          %s372 = sand.u32 %s105, 1
          %s373 = sand.u32 %s105, 1
          %s374 = smul.addr %s373, 32
          %s375 = scalar_lea.vmem [#allocation3], %s374
          %s376 = smul.u32 4, %s19
          %s377 = smul.addr %s18, 64
          %s378 = sadd.s32 %s376, %s377
          %s379 = smul.addr %s378, 4
          %s380 = scalar_lea.vmem %s3, %s379
          // Predicated region
          $region56: #{forward.6} parent=54 // pred_check
            _
          $region57: #{forward.6} parent=54 // pred_check_branch
            %382 = sbr.rel (0) target = $region59
          $region58: #{forward.6} parent=54 // pred_region
            // Predicated region
            $region60: #{forward.6} parent=58 // pred_check
              _
            $region61: #{forward.6} parent=58 // pred_check_branch
              %384 = sbr.rel (0) target = $region63
            $region62: #{forward.6} parent=58 // pred_region
              loop: start=0, step=1, limit=1
              $region64: #{forward.6} parent=62 // loop_pre_header
                _
              $region65: #{forward.6} parent=62 // loop_header
                %s386 = sphi 0, %s390
                %p387 = scmp.ge.s32.totalorder %s386, 1
                %s391 = sphi %s380, %s380
                %s392 = sphi %s375, %s375
              $region66: #{forward.6} parent=62 // loop_header_branch
                %389 = sbr.rel (%p387) target = $region70
              $region67: #{forward.6} parent=62 // loop_body
                %v393 = vld [vmem:[%s391] sm:$0xff]
                %394 = vst [vmem:[%s392] sm:$0xff] %v393
                %v395 = vld [vmem:[%s391 + $0x8] sm:$0xff]
                %396 = vst [vmem:[%s392 + $0x8] sm:$0xff] %v395
                %v397 = vld [vmem:[%s391 + $0x80] sm:$0xff]
                %398 = vst [vmem:[%s392 + $0x10] sm:$0xff] %v397
                %v399 = vld [vmem:[%s391 + $0x88] sm:$0xff]
                %400 = vst [vmem:[%s392 + $0x18] sm:$0xff] %v399
              $region68: #{forward.6} parent=62 // loop_footer
                %s390 = sadd.s32 1, %s386
              $region69: #{forward.6} parent=62 // loop_footer_branch
                %385 = sbr.rel target = $region65
              $region70: #{forward.6} parent=62 // loop_exit
                _
            $region63: #{forward.6} parent=58 // pred_fallthru
              _
            // Predicated region
            $region71: #{forward.6} parent=58 // pred_check
              _
            $region72: #{forward.6} parent=58 // pred_check_branch
              %402 = sbr.rel target = $region74
            $region73: #{forward.6} parent=58 // pred_region
              _
            $region74: #{forward.6} parent=58 // pred_fallthru
              _
          $region59: #{forward.6} parent=54 // pred_fallthru
            _
          %403 = vnop
        $region55: #{forward.6} parent=27 // pred_fallthru
          _
      $region28: #{forward.6} parent=5 // pred_fallthru
        _
      %p404 = scmp.le.s32.totalorder 1, %s11
      %p405 = scmp.lt.s32.totalorder %s11, 17
      %p406 = pnand %p404, %p405
      %p407 = pneg %p406
      // Predicated region
      $region75: #{forward.6} parent=5 // pred_check
        _
      $region76: #{forward.6} parent=5 // pred_check_branch
        %409 = sbr.rel (%p406) target = $region78
      $region77: #{forward.6} parent=5 // pred_region
        %s410 = ssub.s32 %s11, 1
        %s411 = sand.u32 %s38, 1
        %s412 = sand.u32 %s38, 1
        %s413 = smul.addr %s412, 576
        %s414 = scalar_lea.vmem [#allocation2], %s413
        // Predicated region
        $region79: #{forward.6} parent=77 // pred_check
          %p415 = pneg %p51
        $region80: #{forward.6} parent=77 // pred_check_branch
          %417 = sbr.rel (%p415) target = $region82
        $region81: #{forward.6} parent=77 // pred_region
          _
        $region82: #{forward.6} parent=77 // pred_fallthru
          _
        %s418 = sand.u32 %s108, 1
        %s419 = sand.u32 %s108, 1
        %s420 = smul.addr %s419, 32
        %s421 = scalar_lea.vmem [#allocation3], %s420
        // Predicated region
        $region83: #{forward.6} parent=77 // pred_check
          %p422 = pneg %p121
        $region84: #{forward.6} parent=77 // pred_check_branch
          %424 = sbr.rel (%p422) target = $region86
        $region85: #{forward.6} parent=77 // pred_region
          _
        $region86: #{forward.6} parent=77 // pred_fallthru
          _
        %s425 = sand.u32 %s38, 1
        %s426 = sand.u32 %s38, 1
        %s427 = smul.addr %s426, 576
        %s428 = scalar_lea.vmem [#allocation2], %s427
        %p429 = pneg %p51
        %p430 = pneg %p48
        %p431 = pneg %p72
        %p432 = pneg %p69
        %p433 = pneg %p93
        %p434 = pneg %p90
        %s435 = sand.u32 %s108, 1
        %s436 = sand.u32 %s108, 1
        %s437 = smul.addr %s436, 32
        %s438 = scalar_lea.vmem [#allocation3], %s437
        %p439 = pneg %p121
        %p440 = pneg %p118
        %p441 = pneg %p142
        %p442 = pneg %p139
        %p443 = pneg %p170
        %p444 = pneg %p167
        %s445 = sand.u32 %s157, 1
        %s446 = sand.u32 %s157, 1
        %s447 = smul.addr %s446, 32
        %s448 = scalar_lea.vmem [#allocation4], %s447
        %s449 = smul.u32 4, %s21
        %s450 = smul.u32 4, %s21
        %s451 = smul.u32 4, %s21
        %v453 = vld [vmem:[%s1] sm:$0xff]
        %v454 = vld [vmem:[%s1 + $0x8] sm:$0xf]
        %v455 = vld [vmem:[%s1 + $0xc] sm:$0xff]
        %v456 = vld [vmem:[%s1 + $0x14] sm:$0xf]
        %v457 = vld [vmem:[%s414] sm:$0xff]
        %v458 = vld [vmem:[%s414 + $0x8] sm:$0xff]
        %v459 = vld [vmem:[%s414 + $0x10] sm:$0xff]
        %v460 = vld [vmem:[%s414 + $0x18] sm:$0xff]
        %v461 = vld [vmem:[%s414 + $0x20] sm:$0xff]
        %v462 = vld [vmem:[%s414 + $0x28] sm:$0xff]
        %v463 = vld [vmem:[%s414 + $0x30] sm:$0xff]
        %v464 = vld [vmem:[%s414 + $0x38] sm:$0xff]
        %v465 = vld [vmem:[%s414 + $0x40] sm:$0xff]
        %v466 = vld [vmem:[%s414 + $0x48] sm:$0xff]
        %v467 = vld [vmem:[%s414 + $0x50] sm:$0xff]
        %v468 = vld [vmem:[%s414 + $0x58] sm:$0xff]
        %v469 = vld [vmem:[%s414 + $0x60] sm:$0xff]
        %v470 = vld [vmem:[%s414 + $0x68] sm:$0xff]
        %v471 = vld [vmem:[%s414 + $0x70] sm:$0xff]
        %v472 = vld [vmem:[%s414 + $0x78] sm:$0xff]
        %v473 = vld [vmem:[%s414 + $0x80] sm:$0xff]
        %v474 = vld [vmem:[%s414 + $0x88] sm:$0xff]
        %v475 = vld [vmem:[%s414 + $0x90] sm:$0xff]
        %v476 = vld [vmem:[%s414 + $0x98] sm:$0xff]
        %v477 = vld [vmem:[%s414 + $0xa0] sm:$0xff]
        %v478 = vld [vmem:[%s414 + $0xa8] sm:$0xff]
        %v479 = vld [vmem:[%s414 + $0xb0] sm:$0xff]
        %v480 = vld [vmem:[%s414 + $0xb8] sm:$0xff]
        %v481 = vld [vmem:[%s414 + $0xc0] sm:$0xff]
        %v482 = vld [vmem:[%s414 + $0xc8] sm:$0xff]
        %v483 = vld [vmem:[%s414 + $0xd0] sm:$0xff]
        %v484 = vld [vmem:[%s414 + $0xd8] sm:$0xff]
        %v485 = vld [vmem:[%s414 + $0xe0] sm:$0xff]
        %v486 = vld [vmem:[%s414 + $0xe8] sm:$0xff]
        %v487 = vld [vmem:[%s414 + $0xf0] sm:$0xff]
        %v488 = vld [vmem:[%s414 + $0xf8] sm:$0xff]
        %v489 = vld [vmem:[%s414 + $0x100] sm:$0xff]
        %v490 = vld [vmem:[%s414 + $0x108] sm:$0xff]
        %v491 = vld [vmem:[%s414 + $0x110] sm:$0xff]
        %v492 = vld [vmem:[%s414 + $0x118] sm:$0xff]
        %v493 = vld [vmem:[%s414 + $0x120] sm:$0xff]
        %v494 = vld [vmem:[%s414 + $0x128] sm:$0xff]
        %v495 = vld [vmem:[%s414 + $0x130] sm:$0xff]
        %v496 = vld [vmem:[%s414 + $0x138] sm:$0xff]
        %v497 = vld [vmem:[%s414 + $0x140] sm:$0xff]
        %v498 = vld [vmem:[%s414 + $0x148] sm:$0xff]
        %v499 = vld [vmem:[%s414 + $0x150] sm:$0xff]
        %v500 = vld [vmem:[%s414 + $0x158] sm:$0xff]
        %v501 = vld [vmem:[%s414 + $0x160] sm:$0xff]
        %v502 = vld [vmem:[%s414 + $0x168] sm:$0xff]
        %v503 = vld [vmem:[%s414 + $0x170] sm:$0xff]
        %v504 = vld [vmem:[%s414 + $0x178] sm:$0xff]
        %v505 = vld [vmem:[%s414 + $0x180] sm:$0xff]
        %v506 = vld [vmem:[%s414 + $0x188] sm:$0xff]
        %v507 = vld [vmem:[%s414 + $0x190] sm:$0xff]
        %v508 = vld [vmem:[%s414 + $0x198] sm:$0xff]
        %v509 = vld [vmem:[%s414 + $0x1a0] sm:$0xff]
        %v510 = vld [vmem:[%s414 + $0x1a8] sm:$0xff]
        %v511 = vld [vmem:[%s414 + $0x1b0] sm:$0xff]
        %v512 = vld [vmem:[%s414 + $0x1b8] sm:$0xff]
        %v513 = vld [vmem:[%s414 + $0x1c0] sm:$0xff]
        %v514 = vld [vmem:[%s414 + $0x1c8] sm:$0xff]
        %v515 = vld [vmem:[%s414 + $0x1d0] sm:$0xff]
        %v516 = vld [vmem:[%s414 + $0x1d8] sm:$0xff]
        %v517 = vld [vmem:[%s414 + $0x1e0] sm:$0xff]
        %v518 = vld [vmem:[%s414 + $0x1e8] sm:$0xff]
        %v519 = vld [vmem:[%s414 + $0x1f0] sm:$0xff]
        %v520 = vld [vmem:[%s414 + $0x1f8] sm:$0xff]
        %v521 = vld [vmem:[%s414 + $0x200] sm:$0xff]
        %v522 = vld [vmem:[%s414 + $0x208] sm:$0xff]
        %v523 = vld [vmem:[%s414 + $0x210] sm:$0xff]
        %v524 = vld [vmem:[%s414 + $0x218] sm:$0xff]
        %v525 = vld [vmem:[%s414 + $0x220] sm:$0xff]
        %v526 = vld [vmem:[%s414 + $0x228] sm:$0xff]
        %v527 = vld [vmem:[%s414 + $0x230] sm:$0xff]
        %v528 = vld [vmem:[%s414 + $0x238] sm:$0xff]
        %v529 = vld [vmem:[%s2] sm:$0xff]
        %v530 = vld [vmem:[%s2 + $0x8] sm:$0xff]
        %532 = vset.pattern.permute.xlu0 0
        %533 = vperm.xlu0 %532, %v529
        %v534 = vpop.permute.xlu0 %533
        %537 = vset.pattern.permute.xlu0 0
        %538 = vperm.xlu0 %537, %v530
        %v539 = vpop.permute.xlu0 %538
        %v545 = vunpack.c.l.b16 %v453
        %v546 = vunpack.c.h.b16 %v453
        %v547 = vunpack.c.l.b16 %v454
        %v548 = vunpack.c.l.b16 %v455
        %v549 = vunpack.c.h.b16 %v455
        %v550 = vunpack.c.l.b16 %v456
        %v551 = vpack.c.b16 %v548, %v545
        %v552 = vpack.c.b16 %v549, %v546
        %v553 = vpack.c.b16 %v550, %v547
        %v628 = vunpack.c.l.b16 %v457
        %v629 = vunpack.c.h.b16 %v457
        %v630 = vunpack.c.l.b16 %v458
        %v631 = vunpack.c.h.b16 %v458
        %v632 = vunpack.c.l.b16 %v459
        %v633 = vunpack.c.h.b16 %v459
        %v634 = vunpack.c.l.b16 %v460
        %v635 = vunpack.c.h.b16 %v460
        %v636 = vunpack.c.l.b16 %v461
        %v637 = vunpack.c.h.b16 %v461
        %v638 = vunpack.c.l.b16 %v462
        %v639 = vunpack.c.h.b16 %v462
        %v640 = vunpack.c.l.b16 %v463
        %v641 = vunpack.c.h.b16 %v463
        %v642 = vunpack.c.l.b16 %v464
        %v643 = vunpack.c.h.b16 %v464
        %v644 = vunpack.c.l.b16 %v465
        %v645 = vunpack.c.h.b16 %v465
        %v646 = vunpack.c.l.b16 %v466
        %v647 = vunpack.c.h.b16 %v466
        %v648 = vunpack.c.l.b16 %v467
        %v649 = vunpack.c.h.b16 %v467
        %v650 = vunpack.c.l.b16 %v468
        %v651 = vunpack.c.h.b16 %v468
        %v652 = vunpack.c.l.b16 %v469
        %v653 = vunpack.c.h.b16 %v469
        %v654 = vunpack.c.l.b16 %v470
        %v655 = vunpack.c.h.b16 %v470
        %v656 = vunpack.c.l.b16 %v471
        %v657 = vunpack.c.h.b16 %v471
        %v658 = vunpack.c.l.b16 %v472
        %v659 = vunpack.c.h.b16 %v472
        %v660 = vunpack.c.l.b16 %v473
        %v661 = vunpack.c.h.b16 %v473
        %v662 = vunpack.c.l.b16 %v474
        %v663 = vunpack.c.h.b16 %v474
        %v664 = vunpack.c.l.b16 %v475
        %v665 = vunpack.c.h.b16 %v475
        %v666 = vunpack.c.l.b16 %v476
        %v667 = vunpack.c.h.b16 %v476
        %v668 = vunpack.c.l.b16 %v477
        %v669 = vunpack.c.h.b16 %v477
        %v670 = vunpack.c.l.b16 %v478
        %v671 = vunpack.c.h.b16 %v478
        %v672 = vunpack.c.l.b16 %v479
        %v673 = vunpack.c.h.b16 %v479
        %v674 = vunpack.c.l.b16 %v480
        %v675 = vunpack.c.h.b16 %v480
        %v676 = vunpack.c.l.b16 %v481
        %v677 = vunpack.c.h.b16 %v481
        %v678 = vunpack.c.l.b16 %v482
        %v679 = vunpack.c.h.b16 %v482
        %v680 = vunpack.c.l.b16 %v483
        %v681 = vunpack.c.h.b16 %v483
        %v682 = vunpack.c.l.b16 %v484
        %v683 = vunpack.c.h.b16 %v484
        %v684 = vunpack.c.l.b16 %v485
        %v685 = vunpack.c.h.b16 %v485
        %v686 = vunpack.c.l.b16 %v486
        %v687 = vunpack.c.h.b16 %v486
        %v688 = vunpack.c.l.b16 %v487
        %v689 = vunpack.c.h.b16 %v487
        %v690 = vunpack.c.l.b16 %v488
        %v691 = vunpack.c.h.b16 %v488
        %v692 = vunpack.c.l.b16 %v489
        %v693 = vunpack.c.h.b16 %v489
        %v694 = vunpack.c.l.b16 %v490
        %v695 = vunpack.c.h.b16 %v490
        %v696 = vunpack.c.l.b16 %v491
        %v697 = vunpack.c.h.b16 %v491
        %v698 = vunpack.c.l.b16 %v492
        %v699 = vunpack.c.h.b16 %v492
        %v700 = vunpack.c.l.b16 %v493
        %v701 = vunpack.c.h.b16 %v493
        %v702 = vunpack.c.l.b16 %v494
        %v703 = vunpack.c.h.b16 %v494
        %v704 = vunpack.c.l.b16 %v495
        %v705 = vunpack.c.h.b16 %v495
        %v706 = vunpack.c.l.b16 %v496
        %v707 = vunpack.c.h.b16 %v496
        %v708 = vunpack.c.l.b16 %v497
        %v709 = vunpack.c.h.b16 %v497
        %v710 = vunpack.c.l.b16 %v498
        %v711 = vunpack.c.h.b16 %v498
        %v712 = vunpack.c.l.b16 %v499
        %v713 = vunpack.c.h.b16 %v499
        %v714 = vunpack.c.l.b16 %v500
        %v715 = vunpack.c.h.b16 %v500
        %v716 = vunpack.c.l.b16 %v501
        %v717 = vunpack.c.h.b16 %v501
        %v718 = vunpack.c.l.b16 %v502
        %v719 = vunpack.c.h.b16 %v502
        %v720 = vunpack.c.l.b16 %v503
        %v721 = vunpack.c.h.b16 %v503
        %v722 = vunpack.c.l.b16 %v504
        %v723 = vunpack.c.h.b16 %v504
        %v724 = vunpack.c.l.b16 %v505
        %v725 = vunpack.c.h.b16 %v505
        %v726 = vunpack.c.l.b16 %v506
        %v727 = vunpack.c.h.b16 %v506
        %v728 = vunpack.c.l.b16 %v507
        %v729 = vunpack.c.h.b16 %v507
        %v730 = vunpack.c.l.b16 %v508
        %v731 = vunpack.c.h.b16 %v508
        %v732 = vunpack.c.l.b16 %v509
        %v733 = vunpack.c.h.b16 %v509
        %v734 = vunpack.c.l.b16 %v510
        %v735 = vunpack.c.h.b16 %v510
        %v736 = vunpack.c.l.b16 %v511
        %v737 = vunpack.c.h.b16 %v511
        %v738 = vunpack.c.l.b16 %v512
        %v739 = vunpack.c.h.b16 %v512
        %v740 = vunpack.c.l.b16 %v513
        %v741 = vunpack.c.h.b16 %v513
        %v742 = vunpack.c.l.b16 %v514
        %v743 = vunpack.c.h.b16 %v514
        %v744 = vunpack.c.l.b16 %v515
        %v745 = vunpack.c.h.b16 %v515
        %v746 = vunpack.c.l.b16 %v516
        %v747 = vunpack.c.h.b16 %v516
        %v748 = vunpack.c.l.b16 %v517
        %v749 = vunpack.c.h.b16 %v517
        %v750 = vunpack.c.l.b16 %v518
        %v751 = vunpack.c.h.b16 %v518
        %v752 = vunpack.c.l.b16 %v519
        %v753 = vunpack.c.h.b16 %v519
        %v754 = vunpack.c.l.b16 %v520
        %v755 = vunpack.c.h.b16 %v520
        %v756 = vunpack.c.l.b16 %v521
        %v757 = vunpack.c.h.b16 %v521
        %v758 = vunpack.c.l.b16 %v522
        %v759 = vunpack.c.h.b16 %v522
        %v760 = vunpack.c.l.b16 %v523
        %v761 = vunpack.c.h.b16 %v523
        %v762 = vunpack.c.l.b16 %v524
        %v763 = vunpack.c.h.b16 %v524
        %v764 = vunpack.c.l.b16 %v525
        %v765 = vunpack.c.h.b16 %v525
        %v766 = vunpack.c.l.b16 %v526
        %v767 = vunpack.c.h.b16 %v526
        %v768 = vunpack.c.l.b16 %v527
        %v769 = vunpack.c.h.b16 %v527
        %v770 = vunpack.c.l.b16 %v528
        %v771 = vunpack.c.h.b16 %v528
        %v772 = vpack.c.b16 %v632, %v628
        %v773 = vpack.c.b16 %v633, %v629
        %v774 = vpack.c.b16 %v634, %v630
        %v775 = vpack.c.b16 %v635, %v631
        %v776 = vpack.c.b16 %v640, %v636
        %v777 = vpack.c.b16 %v641, %v637
        %v778 = vpack.c.b16 %v642, %v638
        %v779 = vpack.c.b16 %v643, %v639
        %v780 = vpack.c.b16 %v648, %v644
        %v781 = vpack.c.b16 %v649, %v645
        %v782 = vpack.c.b16 %v650, %v646
        %v783 = vpack.c.b16 %v651, %v647
        %v784 = vpack.c.b16 %v656, %v652
        %v785 = vpack.c.b16 %v657, %v653
        %v786 = vpack.c.b16 %v658, %v654
        %v787 = vpack.c.b16 %v659, %v655
        %v788 = vpack.c.b16 %v664, %v660
        %v789 = vpack.c.b16 %v665, %v661
        %v790 = vpack.c.b16 %v666, %v662
        %v791 = vpack.c.b16 %v667, %v663
        %v792 = vpack.c.b16 %v672, %v668
        %v793 = vpack.c.b16 %v673, %v669
        %v794 = vpack.c.b16 %v674, %v670
        %v795 = vpack.c.b16 %v675, %v671
        %v796 = vpack.c.b16 %v680, %v676
        %v797 = vpack.c.b16 %v681, %v677
        %v798 = vpack.c.b16 %v682, %v678
        %v799 = vpack.c.b16 %v683, %v679
        %v800 = vpack.c.b16 %v688, %v684
        %v801 = vpack.c.b16 %v689, %v685
        %v802 = vpack.c.b16 %v690, %v686
        %v803 = vpack.c.b16 %v691, %v687
        %v804 = vpack.c.b16 %v696, %v692
        %v805 = vpack.c.b16 %v697, %v693
        %v806 = vpack.c.b16 %v698, %v694
        %v807 = vpack.c.b16 %v699, %v695
        %v808 = vpack.c.b16 %v704, %v700
        %v809 = vpack.c.b16 %v705, %v701
        %v810 = vpack.c.b16 %v706, %v702
        %v811 = vpack.c.b16 %v707, %v703
        %v812 = vpack.c.b16 %v712, %v708
        %v813 = vpack.c.b16 %v713, %v709
        %v814 = vpack.c.b16 %v714, %v710
        %v815 = vpack.c.b16 %v715, %v711
        %v816 = vpack.c.b16 %v720, %v716
        %v817 = vpack.c.b16 %v721, %v717
        %v818 = vpack.c.b16 %v722, %v718
        %v819 = vpack.c.b16 %v723, %v719
        %v820 = vpack.c.b16 %v728, %v724
        %v821 = vpack.c.b16 %v729, %v725
        %v822 = vpack.c.b16 %v730, %v726
        %v823 = vpack.c.b16 %v731, %v727
        %v824 = vpack.c.b16 %v736, %v732
        %v825 = vpack.c.b16 %v737, %v733
        %v826 = vpack.c.b16 %v738, %v734
        %v827 = vpack.c.b16 %v739, %v735
        %v828 = vpack.c.b16 %v744, %v740
        %v829 = vpack.c.b16 %v745, %v741
        %v830 = vpack.c.b16 %v746, %v742
        %v831 = vpack.c.b16 %v747, %v743
        %v832 = vpack.c.b16 %v752, %v748
        %v833 = vpack.c.b16 %v753, %v749
        %v834 = vpack.c.b16 %v754, %v750
        %v835 = vpack.c.b16 %v755, %v751
        %v836 = vpack.c.b16 %v760, %v756
        %v837 = vpack.c.b16 %v761, %v757
        %v838 = vpack.c.b16 %v762, %v758
        %v839 = vpack.c.b16 %v763, %v759
        %v840 = vpack.c.b16 %v768, %v764
        %v841 = vpack.c.b16 %v769, %v765
        %v842 = vpack.c.b16 %v770, %v766
        %v843 = vpack.c.b16 %v771, %v767
        %vm916 = vcmask 261120
        %v918 = vsel %vm916, %v553, 0
        %920 = vmatpush.bf16.msra.mxu0 %v800
        %921 = vmatpush.bf16.msra.mxu0 %v796
        %922 = vmatpush.bf16.msra.mxu0 %v792
        %923 = vmatpush.bf16.msra.mxu0 %v788
        %924 = vmatpush.bf16.msra.mxu0 %v784
        %925 = vmatpush.bf16.msra.mxu0 %v780
        %926 = vmatpush.bf16.msra.mxu0 %v776
        %927 = vmatpush.bf16.msra.mxu0 %v772
        %928 = vmatmul.bf16.gmra.mxu0 %v551
        %v929 = vpop.f32.mrf.mxu0
        %v930 = vadd.f32 %v534, %v929
        %v931 = vpop.f32.mrf.mxu0
        %v932 = vadd.f32 %v539, %v931
        %933 = vdwg.mxu0
        %934 = vmatpush.bf16.msra.mxu0 %v832
        %935 = vmatpush.bf16.msra.mxu0 %v828
        %936 = vmatpush.bf16.msra.mxu0 %v824
        %937 = vmatpush.bf16.msra.mxu0 %v820
        %938 = vmatpush.bf16.msra.mxu0 %v816
        %939 = vmatpush.bf16.msra.mxu0 %v812
        %940 = vmatpush.bf16.msra.mxu0 %v808
        %941 = vmatpush.bf16.msra.mxu0 %v804
        %942 = vmatmul.bf16.gmra.mxu0 %v552
        %v943 = vpop.f32.mrf.mxu0
        %v944 = vadd.f32 %v930, %v943
        %v945 = vpop.f32.mrf.mxu0
        %v946 = vadd.f32 %v932, %v945
        %947 = vdwg.mxu0
        %948 = vmatpush.bf16.msra.mxu0 0
        %949 = vmatpush.bf16.msra.mxu0 0
        %950 = vmatpush.bf16.msra.mxu0 0
        %951 = vmatpush.bf16.msra.mxu0 0
        %952 = vmatpush.bf16.msra.mxu0 0
        %953 = vmatpush.bf16.msra.mxu0 0
        %954 = vmatpush.bf16.msra.mxu0 %v840
        %955 = vmatpush.bf16.msra.mxu0 %v836
        %956 = vmatmul.bf16.gmra.mxu0 %v918
        %v957 = vpop.f32.mrf.mxu0
        %v958 = vadd.f32 %v944, %v957
        %v959 = vpop.f32.mrf.mxu0
        %v960 = vadd.f32 %v946, %v959
        %961 = vdwg.mxu0
        %962 = vmatpush.bf16.msra.mxu0 %v801
        %963 = vmatpush.bf16.msra.mxu0 %v797
        %964 = vmatpush.bf16.msra.mxu0 %v793
        %965 = vmatpush.bf16.msra.mxu0 %v789
        %966 = vmatpush.bf16.msra.mxu0 %v785
        %967 = vmatpush.bf16.msra.mxu0 %v781
        %968 = vmatpush.bf16.msra.mxu0 %v777
        %969 = vmatpush.bf16.msra.mxu0 %v773
        %970 = vmatmul.bf16.gmra.mxu0 %v551
        %v971 = vpop.f32.mrf.mxu0
        %v972 = vadd.f32 %v534, %v971
        %v973 = vpop.f32.mrf.mxu0
        %v974 = vadd.f32 %v539, %v973
        %975 = vdwg.mxu0
        %976 = vmatpush.bf16.msra.mxu0 %v833
        %977 = vmatpush.bf16.msra.mxu0 %v829
        %978 = vmatpush.bf16.msra.mxu0 %v825
        %979 = vmatpush.bf16.msra.mxu0 %v821
        %980 = vmatpush.bf16.msra.mxu0 %v817
        %981 = vmatpush.bf16.msra.mxu0 %v813
        %982 = vmatpush.bf16.msra.mxu0 %v809
        %983 = vmatpush.bf16.msra.mxu0 %v805
        %984 = vmatmul.bf16.gmra.mxu0 %v552
        %v985 = vpop.f32.mrf.mxu0
        %v986 = vadd.f32 %v972, %v985
        %v987 = vpop.f32.mrf.mxu0
        %v988 = vadd.f32 %v974, %v987
        %989 = vdwg.mxu0
        %990 = vmatpush.bf16.msra.mxu0 0
        %991 = vmatpush.bf16.msra.mxu0 0
        %992 = vmatpush.bf16.msra.mxu0 0
        %993 = vmatpush.bf16.msra.mxu0 0
        %994 = vmatpush.bf16.msra.mxu0 0
        %995 = vmatpush.bf16.msra.mxu0 0
        %996 = vmatpush.bf16.msra.mxu0 %v841
        %997 = vmatpush.bf16.msra.mxu0 %v837
        %998 = vmatmul.bf16.gmra.mxu0 %v918
        %v999 = vpop.f32.mrf.mxu0
        %v1000 = vadd.f32 %v986, %v999
        %v1001 = vpop.f32.mrf.mxu0
        %v1002 = vadd.f32 %v988, %v1001
        %1003 = vdwg.mxu0
        %1004 = vmatpush.bf16.msra.mxu0 %v802
        %1005 = vmatpush.bf16.msra.mxu0 %v798
        %1006 = vmatpush.bf16.msra.mxu0 %v794
        %1007 = vmatpush.bf16.msra.mxu0 %v790
        %1008 = vmatpush.bf16.msra.mxu0 %v786
        %1009 = vmatpush.bf16.msra.mxu0 %v782
        %1010 = vmatpush.bf16.msra.mxu0 %v778
        %1011 = vmatpush.bf16.msra.mxu0 %v774
        %1012 = vmatmul.bf16.gmra.mxu0 %v551
        %v1013 = vpop.f32.mrf.mxu0
        %v1014 = vadd.f32 %v534, %v1013
        %v1015 = vpop.f32.mrf.mxu0
        %v1016 = vadd.f32 %v539, %v1015
        %1017 = vdwg.mxu0
        %1018 = vmatpush.bf16.msra.mxu0 %v834
        %1019 = vmatpush.bf16.msra.mxu0 %v830
        %1020 = vmatpush.bf16.msra.mxu0 %v826
        %1021 = vmatpush.bf16.msra.mxu0 %v822
        %1022 = vmatpush.bf16.msra.mxu0 %v818
        %1023 = vmatpush.bf16.msra.mxu0 %v814
        %1024 = vmatpush.bf16.msra.mxu0 %v810
        %1025 = vmatpush.bf16.msra.mxu0 %v806
        %1026 = vmatmul.bf16.gmra.mxu0 %v552
        %v1027 = vpop.f32.mrf.mxu0
        %v1028 = vadd.f32 %v1014, %v1027
        %v1029 = vpop.f32.mrf.mxu0
        %v1030 = vadd.f32 %v1016, %v1029
        %1031 = vdwg.mxu0
        %1032 = vmatpush.bf16.msra.mxu0 0
        %1033 = vmatpush.bf16.msra.mxu0 0
        %1034 = vmatpush.bf16.msra.mxu0 0
        %1035 = vmatpush.bf16.msra.mxu0 0
        %1036 = vmatpush.bf16.msra.mxu0 0
        %1037 = vmatpush.bf16.msra.mxu0 0
        %1038 = vmatpush.bf16.msra.mxu0 %v842
        %1039 = vmatpush.bf16.msra.mxu0 %v838
        %1040 = vmatmul.bf16.gmra.mxu0 %v918
        %v1041 = vpop.f32.mrf.mxu0
        %v1042 = vadd.f32 %v1028, %v1041
        %v1043 = vpop.f32.mrf.mxu0
        %v1044 = vadd.f32 %v1030, %v1043
        %1045 = vdwg.mxu0
        %1046 = vmatpush.bf16.msra.mxu0 %v803
        %1047 = vmatpush.bf16.msra.mxu0 %v799
        %1048 = vmatpush.bf16.msra.mxu0 %v795
        %1049 = vmatpush.bf16.msra.mxu0 %v791
        %1050 = vmatpush.bf16.msra.mxu0 %v787
        %1051 = vmatpush.bf16.msra.mxu0 %v783
        %1052 = vmatpush.bf16.msra.mxu0 %v779
        %1053 = vmatpush.bf16.msra.mxu0 %v775
        %1054 = vmatmul.bf16.gmra.mxu0 %v551
        %v1055 = vpop.f32.mrf.mxu0
        %v1056 = vadd.f32 %v534, %v1055
        %v1057 = vpop.f32.mrf.mxu0
        %v1058 = vadd.f32 %v539, %v1057
        %1059 = vdwg.mxu0
        %1060 = vmatpush.bf16.msra.mxu0 %v835
        %1061 = vmatpush.bf16.msra.mxu0 %v831
        %1062 = vmatpush.bf16.msra.mxu0 %v827
        %1063 = vmatpush.bf16.msra.mxu0 %v823
        %1064 = vmatpush.bf16.msra.mxu0 %v819
        %1065 = vmatpush.bf16.msra.mxu0 %v815
        %1066 = vmatpush.bf16.msra.mxu0 %v811
        %1067 = vmatpush.bf16.msra.mxu0 %v807
        %1068 = vmatmul.bf16.gmra.mxu0 %v552
        %v1069 = vpop.f32.mrf.mxu0
        %v1070 = vadd.f32 %v1056, %v1069
        %v1071 = vpop.f32.mrf.mxu0
        %v1072 = vadd.f32 %v1058, %v1071
        %1073 = vdwg.mxu0
        %1074 = vmatpush.bf16.msra.mxu0 0
        %1075 = vmatpush.bf16.msra.mxu0 0
        %1076 = vmatpush.bf16.msra.mxu0 0
        %1077 = vmatpush.bf16.msra.mxu0 0
        %1078 = vmatpush.bf16.msra.mxu0 0
        %1079 = vmatpush.bf16.msra.mxu0 0
        %1080 = vmatpush.bf16.msra.mxu0 %v843
        %1081 = vmatpush.bf16.msra.mxu0 %v839
        %1082 = vmatmul.bf16.gmra.mxu0 %v918
        %v1083 = vpop.f32.mrf.mxu0
        %v1084 = vadd.f32 %v1070, %v1083
        %v1085 = vpop.f32.mrf.mxu0
        %v1086 = vadd.f32 %v1072, %v1085
        %1087 = vdwg.mxu0
        %v1088 = vxor.u32 %v958, 2147483648
        %v1089 = vxor.u32 %v1000, 2147483648
        %v1090 = vxor.u32 %v1042, 2147483648
        %v1091 = vxor.u32 %v1084, 2147483648
        %v1092 = vxor.u32 %v960, 2147483648
        %v1093 = vxor.u32 %v1002, 2147483648
        %v1094 = vxor.u32 %v1044, 2147483648
        %v1095 = vxor.u32 %v1086, 2147483648
        %v1096 = vmul.f32 %v1088, 1.442695
        %v1097 = vpow.pop %v1096
        %v1098 = vmul.f32 %v1089, 1.442695
        %v1099 = vpow.pop %v1098
        %v1100 = vmul.f32 %v1090, 1.442695
        %v1101 = vpow.pop %v1100
        %v1102 = vmul.f32 %v1091, 1.442695
        %v1103 = vpow.pop %v1102
        %v1104 = vmul.f32 %v1092, 1.442695
        %v1105 = vpow.pop %v1104
        %v1106 = vmul.f32 %v1093, 1.442695
        %v1107 = vpow.pop %v1106
        %v1108 = vmul.f32 %v1094, 1.442695
        %v1109 = vpow.pop %v1108
        %v1110 = vmul.f32 %v1095, 1.442695
        %v1111 = vpow.pop %v1110
        %v1112 = vadd.f32 %v1097, 1.0
        %v1113 = vadd.f32 %v1099, 1.0
        %v1114 = vadd.f32 %v1101, 1.0
        %v1115 = vadd.f32 %v1103, 1.0
        %v1116 = vadd.f32 %v1105, 1.0
        %v1117 = vadd.f32 %v1107, 1.0
        %v1118 = vadd.f32 %v1109, 1.0
        %v1119 = vadd.f32 %v1111, 1.0
        %v1120 = vrcp.pop %v1112
        %v1121 = vmul.f32 %v1112, %v1120
        %v1122 = vsub.f32 1.0, %v1121
        %v1123 = vmul.f32 %v1120, %v1122
        %v1124 = vadd.f32 %v1120, %v1123
        %vm1125 = vweird.f32 %v1112
        %vm1126 = vweird.f32 %v1120
        %vm1127 = vmor %vm1125, %vm1126
        %v1128 = vsel %vm1127, %v1120, %v1124
        %v1129 = vand.u32 2147483647, %v1112
        %vm1130 = vcmp.eq.f32.partialorder %v1129, 8.507059e+37
        %v1131 = vand.u32 %v1112, 2147483648
        %v1132 = vor.u32 1.1754944e-38, %v1131
        %v1133 = vsel %vm1130, %v1132, %v1128
        %v1134 = vmul.f32 1.0, %v1133
        %v1135 = vrcp.pop %v1113
        %v1136 = vmul.f32 %v1113, %v1135
        %v1137 = vsub.f32 1.0, %v1136
        %v1138 = vmul.f32 %v1135, %v1137
        %v1139 = vadd.f32 %v1135, %v1138
        %vm1140 = vweird.f32 %v1113
        %vm1141 = vweird.f32 %v1135
        %vm1142 = vmor %vm1140, %vm1141
        %v1143 = vsel %vm1142, %v1135, %v1139
        %v1144 = vand.u32 2147483647, %v1113
        %vm1145 = vcmp.eq.f32.partialorder %v1144, 8.507059e+37
        %v1146 = vand.u32 %v1113, 2147483648
        %v1147 = vor.u32 1.1754944e-38, %v1146
        %v1148 = vsel %vm1145, %v1147, %v1143
        %v1149 = vmul.f32 1.0, %v1148
        %v1150 = vrcp.pop %v1114
        %v1151 = vmul.f32 %v1114, %v1150
        %v1152 = vsub.f32 1.0, %v1151
        %v1153 = vmul.f32 %v1150, %v1152
        %v1154 = vadd.f32 %v1150, %v1153
        %vm1155 = vweird.f32 %v1114
        %vm1156 = vweird.f32 %v1150
        %vm1157 = vmor %vm1155, %vm1156
        %v1158 = vsel %vm1157, %v1150, %v1154
        %v1159 = vand.u32 2147483647, %v1114
        %vm1160 = vcmp.eq.f32.partialorder %v1159, 8.507059e+37
        %v1161 = vand.u32 %v1114, 2147483648
        %v1162 = vor.u32 1.1754944e-38, %v1161
        %v1163 = vsel %vm1160, %v1162, %v1158
        %v1164 = vmul.f32 1.0, %v1163
        %v1165 = vrcp.pop %v1115
        %v1166 = vmul.f32 %v1115, %v1165
        %v1167 = vsub.f32 1.0, %v1166
        %v1168 = vmul.f32 %v1165, %v1167
        %v1169 = vadd.f32 %v1165, %v1168
        %vm1170 = vweird.f32 %v1115
        %vm1171 = vweird.f32 %v1165
        %vm1172 = vmor %vm1170, %vm1171
        %v1173 = vsel %vm1172, %v1165, %v1169
        %v1174 = vand.u32 2147483647, %v1115
        %vm1175 = vcmp.eq.f32.partialorder %v1174, 8.507059e+37
        %v1176 = vand.u32 %v1115, 2147483648
        %v1177 = vor.u32 1.1754944e-38, %v1176
        %v1178 = vsel %vm1175, %v1177, %v1173
        %v1179 = vmul.f32 1.0, %v1178
        %v1180 = vrcp.pop %v1116
        %v1181 = vmul.f32 %v1116, %v1180
        %v1182 = vsub.f32 1.0, %v1181
        %v1183 = vmul.f32 %v1180, %v1182
        %v1184 = vadd.f32 %v1180, %v1183
        %vm1185 = vweird.f32 %v1116
        %vm1186 = vweird.f32 %v1180
        %vm1187 = vmor %vm1185, %vm1186
        %v1188 = vsel %vm1187, %v1180, %v1184
        %v1189 = vand.u32 2147483647, %v1116
        %vm1190 = vcmp.eq.f32.partialorder %v1189, 8.507059e+37
        %v1191 = vand.u32 %v1116, 2147483648
        %v1192 = vor.u32 1.1754944e-38, %v1191
        %v1193 = vsel %vm1190, %v1192, %v1188
        %v1194 = vmul.f32 1.0, %v1193
        %v1195 = vrcp.pop %v1117
        %v1196 = vmul.f32 %v1117, %v1195
        %v1197 = vsub.f32 1.0, %v1196
        %v1198 = vmul.f32 %v1195, %v1197
        %v1199 = vadd.f32 %v1195, %v1198
        %vm1200 = vweird.f32 %v1117
        %vm1201 = vweird.f32 %v1195
        %vm1202 = vmor %vm1200, %vm1201
        %v1203 = vsel %vm1202, %v1195, %v1199
        %v1204 = vand.u32 2147483647, %v1117
        %vm1205 = vcmp.eq.f32.partialorder %v1204, 8.507059e+37
        %v1206 = vand.u32 %v1117, 2147483648
        %v1207 = vor.u32 1.1754944e-38, %v1206
        %v1208 = vsel %vm1205, %v1207, %v1203
        %v1209 = vmul.f32 1.0, %v1208
        %v1210 = vrcp.pop %v1118
        %v1211 = vmul.f32 %v1118, %v1210
        %v1212 = vsub.f32 1.0, %v1211
        %v1213 = vmul.f32 %v1210, %v1212
        %v1214 = vadd.f32 %v1210, %v1213
        %vm1215 = vweird.f32 %v1118
        %vm1216 = vweird.f32 %v1210
        %vm1217 = vmor %vm1215, %vm1216
        %v1218 = vsel %vm1217, %v1210, %v1214
        %v1219 = vand.u32 2147483647, %v1118
        %vm1220 = vcmp.eq.f32.partialorder %v1219, 8.507059e+37
        %v1221 = vand.u32 %v1118, 2147483648
        %v1222 = vor.u32 1.1754944e-38, %v1221
        %v1223 = vsel %vm1220, %v1222, %v1218
        %v1224 = vmul.f32 1.0, %v1223
        %v1225 = vrcp.pop %v1119
        %v1226 = vmul.f32 %v1119, %v1225
        %v1227 = vsub.f32 1.0, %v1226
        %v1228 = vmul.f32 %v1225, %v1227
        %v1229 = vadd.f32 %v1225, %v1228
        %vm1230 = vweird.f32 %v1119
        %vm1231 = vweird.f32 %v1225
        %vm1232 = vmor %vm1230, %vm1231
        %v1233 = vsel %vm1232, %v1225, %v1229
        %v1234 = vand.u32 2147483647, %v1119
        %vm1235 = vcmp.eq.f32.partialorder %v1234, 8.507059e+37
        %v1236 = vand.u32 %v1119, 2147483648
        %v1237 = vor.u32 1.1754944e-38, %v1236
        %v1238 = vsel %vm1235, %v1237, %v1233
        %v1239 = vmul.f32 1.0, %v1238
        %v1240 = vmul.f32 %v958, %v1134
        %v1241 = vmul.f32 %v1000, %v1149
        %v1242 = vmul.f32 %v1042, %v1164
        %v1243 = vmul.f32 %v1084, %v1179
        %v1244 = vmul.f32 %v960, %v1194
        %v1245 = vmul.f32 %v1002, %v1209
        %v1246 = vmul.f32 %v1044, %v1224
        %v1247 = vmul.f32 %v1086, %v1239
        %v1248 = vld [vmem:[%s4] sm:$0xf]
        %v1249 = vld [vmem:[%s4 + $0x4] sm:$0xf]
        %v1250 = vld [vmem:[%s421] sm:$0xff]
        %v1251 = vld [vmem:[%s421 + $0x8] sm:$0xff]
        %v1252 = vld [vmem:[%s421 + $0x10] sm:$0xff]
        %v1253 = vld [vmem:[%s421 + $0x18] sm:$0xff]
        %v1256 = vunpack.c.l.b16 %v1248
        %v1257 = vunpack.c.l.b16 %v1249
        %v1258 = vpack.c.b16 %v1257, %v1256
        %v1263 = vunpack.c.l.b16 %v1250
        %v1264 = vunpack.c.h.b16 %v1250
        %v1265 = vunpack.c.l.b16 %v1251
        %v1266 = vunpack.c.h.b16 %v1251
        %v1267 = vunpack.c.l.b16 %v1252
        %v1268 = vunpack.c.h.b16 %v1252
        %v1269 = vunpack.c.l.b16 %v1253
        %v1270 = vunpack.c.h.b16 %v1253
        %v1271 = vpack.c.b16 %v1267, %v1263
        %v1272 = vpack.c.b16 %v1268, %v1264
        %v1273 = vpack.c.b16 %v1269, %v1265
        %v1274 = vpack.c.b16 %v1270, %v1266
        %vm1279 = vcmask 130048
        %v1281 = vsel %vm1279, %v1258, 0
        %1283 = vmatpush.bf16.msra.mxu0 0
        %1284 = vmatpush.bf16.msra.mxu0 0
        %1285 = vmatpush.bf16.msra.mxu0 0
        %1286 = vmatpush.bf16.msra.mxu0 0
        %1287 = vmatpush.bf16.msra.mxu0 0
        %1288 = vmatpush.bf16.msra.mxu0 0
        %1289 = vmatpush.bf16.msra.mxu0 0
        %1290 = vmatpush.bf16.msra.mxu0 %v1271
        %1291 = vmatmul.bf16.gmra.mxu0 %v1281
        %v1292 = vpop.f32.mrf.mxu0
        %v1293 = vadd.f32 0.0, %v1292
        %v1294 = vpop.f32.mrf.mxu0
        %v1295 = vadd.f32 0.0, %v1294
        %1296 = vdwg.mxu0
        %1297 = vmatpush.bf16.msra.mxu0 0
        %1298 = vmatpush.bf16.msra.mxu0 0
        %1299 = vmatpush.bf16.msra.mxu0 0
        %1300 = vmatpush.bf16.msra.mxu0 0
        %1301 = vmatpush.bf16.msra.mxu0 0
        %1302 = vmatpush.bf16.msra.mxu0 0
        %1303 = vmatpush.bf16.msra.mxu0 0
        %1304 = vmatpush.bf16.msra.mxu0 %v1272
        %1305 = vmatmul.bf16.gmra.mxu0 %v1281
        %v1306 = vpop.f32.mrf.mxu0
        %v1307 = vadd.f32 0.0, %v1306
        %v1308 = vpop.f32.mrf.mxu0
        %v1309 = vadd.f32 0.0, %v1308
        %1310 = vdwg.mxu0
        %1311 = vmatpush.bf16.msra.mxu0 0
        %1312 = vmatpush.bf16.msra.mxu0 0
        %1313 = vmatpush.bf16.msra.mxu0 0
        %1314 = vmatpush.bf16.msra.mxu0 0
        %1315 = vmatpush.bf16.msra.mxu0 0
        %1316 = vmatpush.bf16.msra.mxu0 0
        %1317 = vmatpush.bf16.msra.mxu0 0
        %1318 = vmatpush.bf16.msra.mxu0 %v1273
        %1319 = vmatmul.bf16.gmra.mxu0 %v1281
        %v1320 = vpop.f32.mrf.mxu0
        %v1321 = vadd.f32 0.0, %v1320
        %v1322 = vpop.f32.mrf.mxu0
        %v1323 = vadd.f32 0.0, %v1322
        %1324 = vdwg.mxu0
        %1325 = vmatpush.bf16.msra.mxu0 0
        %1326 = vmatpush.bf16.msra.mxu0 0
        %1327 = vmatpush.bf16.msra.mxu0 0
        %1328 = vmatpush.bf16.msra.mxu0 0
        %1329 = vmatpush.bf16.msra.mxu0 0
        %1330 = vmatpush.bf16.msra.mxu0 0
        %1331 = vmatpush.bf16.msra.mxu0 0
        %1332 = vmatpush.bf16.msra.mxu0 %v1274
        %1333 = vmatmul.bf16.gmra.mxu0 %v1281
        %v1334 = vpop.f32.mrf.mxu0
        %v1335 = vadd.f32 0.0, %v1334
        %v1336 = vpop.f32.mrf.mxu0
        %v1337 = vadd.f32 0.0, %v1336
        %1338 = vdwg.mxu0
        %v1339 = vadd.f32 %v1240, %v1293
        %v1340 = vadd.f32 %v1241, %v1307
        %v1341 = vadd.f32 %v1242, %v1321
        %v1342 = vadd.f32 %v1243, %v1335
        %v1343 = vadd.f32 %v1244, %v1295
        %v1344 = vadd.f32 %v1245, %v1309
        %v1345 = vadd.f32 %v1246, %v1323
        %v1346 = vadd.f32 %v1247, %v1337
        %v1347 = vpack.c.bf16 %v1340, %v1339
        %v1348 = vpack.c.bf16 %v1342, %v1341
        %v1349 = vpack.c.bf16 %v1344, %v1343
        %v1350 = vpack.c.bf16 %v1346, %v1345
        %1351 = vst [vmem:[%s448] sm:$0xff] %v1347
        %1352 = vst [vmem:[%s448 + $0x8] sm:$0xff] %v1348
        %1353 = vst [vmem:[%s448 + $0x10] sm:$0xff] %v1349
        %1354 = vst [vmem:[%s448 + $0x18] sm:$0xff] %v1350
        %s1355 = sand.u32 %s157, 1
        %s1356 = sand.u32 %s157, 1
        %s1357 = smul.addr %s1356, 32
        %s1358 = scalar_lea.vmem [#allocation4], %s1357
        // Predicated region
        $region87: #{forward.6} parent=77 // pred_check
          %p1359 = pneg %p167
        $region88: #{forward.6} parent=77 // pred_check_branch
          %1361 = sbr.rel (%p1359) target = $region90
        $region89: #{forward.6} parent=77 // pred_region
          %s1362 = smul.u32 4, %s21
          %s1363 = smul.addr %s20, 64
          %s1364 = sadd.s32 %s1362, %s1363
          %s1365 = smul.addr %s1364, 4
          %s1366 = scalar_lea.vmem %s5, %s1365
          // Predicated region
          $region91: #{forward.6} parent=89 // pred_check
            _
          $region92: #{forward.6} parent=89 // pred_check_branch
            %1368 = sbr.rel (0) target = $region94
          $region93: #{forward.6} parent=89 // pred_region
            // Predicated region
            $region95: #{forward.6} parent=93 // pred_check
              _
            $region96: #{forward.6} parent=93 // pred_check_branch
              %1370 = sbr.rel (0) target = $region98
            $region97: #{forward.6} parent=93 // pred_region
              loop: start=0, step=1, limit=1
              $region99: #{forward.6} parent=97 // loop_pre_header
                _
              $region100: #{forward.6} parent=97 // loop_header
                %s1372 = sphi 0, %s1376
                %p1373 = scmp.ge.s32.totalorder %s1372, 1
                %s1377 = sphi %s1358, %s1358
                %s1378 = sphi %s1366, %s1366
              $region101: #{forward.6} parent=97 // loop_header_branch
                %1375 = sbr.rel (%p1373) target = $region105
              $region102: #{forward.6} parent=97 // loop_body
                %v1379 = vld [vmem:[%s1377] sm:$0xff]
                %1380 = vst [vmem:[%s1378] sm:$0xff] %v1379
                %v1381 = vld [vmem:[%s1377 + $0x8] sm:$0xff]
                %1382 = vst [vmem:[%s1378 + $0x8] sm:$0xff] %v1381
                %v1383 = vld [vmem:[%s1377 + $0x10] sm:$0xff]
                %1384 = vst [vmem:[%s1378 + $0x80] sm:$0xff] %v1383
                %v1385 = vld [vmem:[%s1377 + $0x18] sm:$0xff]
                %1386 = vst [vmem:[%s1378 + $0x88] sm:$0xff] %v1385
              $region103: #{forward.6} parent=97 // loop_footer
                %s1376 = sadd.s32 1, %s1372
              $region104: #{forward.6} parent=97 // loop_footer_branch
                %1371 = sbr.rel target = $region100
              $region105: #{forward.6} parent=97 // loop_exit
                _
            $region98: #{forward.6} parent=93 // pred_fallthru
              _
            // Predicated region
            $region106: #{forward.6} parent=93 // pred_check
              _
            $region107: #{forward.6} parent=93 // pred_check_branch
              %1388 = sbr.rel target = $region109
            $region108: #{forward.6} parent=93 // pred_region
              _
            $region109: #{forward.6} parent=93 // pred_fallthru
              _
          $region94: #{forward.6} parent=89 // pred_fallthru
            _
          %1389 = vnop
        $region90: #{forward.6} parent=77 // pred_fallthru
          _
      $region78: #{forward.6} parent=5 // pred_fallthru
        _
      %p1390 = scmp.le.s32.totalorder 2, %s11
      // Predicated region
      $region110: #{forward.6} parent=5 // pred_check
        %p1391 = pneg %p1390
      $region111: #{forward.6} parent=5 // pred_check_branch
        %1393 = sbr.rel (%p1391) target = $region113
      $region112: #{forward.6} parent=5 // pred_region
        %s1394 = ssub.s32 %s11, 2
        // Predicated region
        $region114: #{forward.6} parent=112 // pred_check
          %p1395 = pneg %p173
        $region115: #{forward.6} parent=112 // pred_check_branch
          %1397 = sbr.rel (%p1395) target = $region117
        $region116: #{forward.6} parent=112 // pred_region
          %s1398 = sand.u32 %s158, 1
          %s1399 = sand.u32 %s158, 1
          %s1400 = smul.addr %s1399, 32
          %s1401 = scalar_lea.vmem [#allocation4], %s1400
        $region117: #{forward.6} parent=112 // pred_fallthru
          _
      $region113: #{forward.6} parent=5 // pred_fallthru
        _
    $region6: #{forward.6} parent=1 // loop_footer
      %s15 = sadd.s32 1, %s11
    $region7: #{forward.6} parent=1 // loop_footer_branch
      %10 = sbr.rel target = $region3
    $region8: #{forward.6} parent=1 // loop_exit
      _

// kernel: forward.7
$region0: #{forward.7}
  #allocation0 [shape = 'u32[]', space=smem, size = 0x4, offset = 0x4, fixed_abs, tag = 'smem constant byte address 0x4 - core index']
  #allocation1 [shape = 'u32[72,128]{1,0:T(1,128)}', space=vmem, size = 0x9000, scoped, tag = 'internal scratch']
  %s0 = inlined_call_operand.vmem [shape: bf16[2,144,4096], index: 0, kind: input, shape index: {}]
  %s1 = inlined_call_operand.vmem [shape: bf16[3,144], index: 1, kind: input, shape index: {}]
  %s2 = inlined_call_operand.vmem [shape: f32[3,1], index: 2, kind: input, shape index: {}]
  %s3 = inlined_call_operand.vmem [shape: f32[2,3,4096], index: 3, kind: output, shape index: {}]
  %s4 = sld [smem:[#allocation0]]
  $region68: #{forward.7} parent=0
    _
  %s6 = ssub.s32 1, %s4
  %s7 = scalar_select 0, %s6, %s4
  $region1: #{forward.7} parent=0
    #allocation2 [shape = 'u8[294912]{0}', space=vmem, size = 0x48000, scoped, tag = 'input window, operand 0']
    loop: start=0, step=1, limit=18
    $region2: #{forward.7} parent=1 // loop_pre_header
      _
    $region3: #{forward.7} parent=1 // loop_header
      %s9 = sphi 0, %s13
      %p10 = scmp.ge.s32.totalorder %s9, 18
      %s16 = sphi 0, %s28
      %s17 = sphi 0, %s24
      %s18 = sphi 0, %s16
      %s19 = sphi 0, %s17
      %s20 = sphi 0, %s18
      %s21 = sphi 0, %s19
      %s33 = sphi 0, %s35
      %s36 = sphi 0, %s33
      %s37 = sphi 0, %s36
      %s53 = sphi 0, %s37
      %s57 = sphi 0, %s57
      %s59 = sphi 0, %s57
      %s60 = sphi 0, %s59
      %s74 = sphi 0, %s60
      %s78 = sphi 0, %s78
      %s80 = sphi 0, %s78
      %s81 = sphi 0, %s80
      %s95 = sphi 0, %s81
      %s103 = sphi 0, %s105
      %s106 = sphi 0, %s103
      %s107 = sphi 0, %s106
      %s123 = sphi 0, %s107
    $region4: #{forward.7} parent=1 // loop_header_branch
      %12 = sbr.rel (%p10) target = $region8
    $region5: #{forward.7} parent=1 // loop_body
      %s14 = ssub.s32 %s9, 1
      %s15 = ssub.s32 %s9, 2
      %s22 = sadd.s32 1, %s17
      %p23 = scmp.ge.s32.totalorder %s22, 8
      %s24 = scalar_select %p23, 0, %s22
      %s25 = sadd.s32 1, %s16
      %s26 = scalar_select %p23, %s25, %s16
      %p27 = scmp.ge.s32.totalorder %s26, 2
      %s28 = scalar_select %p27, 0, %s26
      %s29 = ssub.s32 %s16, %s28
      %s30 = ssub.s32 %s17, %s24
      %s31 = sor.u32 %s29, %s30
      %p32 = scmp.eq.s32.totalorder %s31, 0
      %s34 = sadd.s32 %s33, 1
      %s35 = scalar_select %p32, %s33, %s34
      %p38 = pneg %p32
      %p39 = scmp.eq.s32.totalorder %s9, 15
      %p40 = por %p38, %p39
      %p41 = scmp.ne.s32.totalorder %s33, %s36
      %p42 = scmp.eq.s32.totalorder %s9, 0
      %p43 = por %p41, %p42
      %p44 = scmp.ne.s32.totalorder %s33, %s36
      %p45 = scmp.eq.s32.totalorder %s14, 15
      %p46 = por %p44, %p45
      %p47 = scmp.ne.s32.totalorder %s36, %s37
      %p48 = scmp.eq.s32.totalorder %s14, 0
      %p49 = por %p47, %p48
      %p50 = scmp.ne.s32.totalorder %s36, %s37
      %p51 = scmp.eq.s32.totalorder %s15, 15
      %p52 = por %p50, %p51
      %p54 = scmp.ne.s32.totalorder %s37, %s53
      %p55 = scmp.eq.s32.totalorder %s15, 0
      %p56 = por %p54, %p55
      %s58 = sadd.s32 %s57, 1
      %p61 = scmp.eq.s32.totalorder %s9, 15
      %p62 = scmp.ne.s32.totalorder %s57, %s59
      %p63 = scmp.eq.s32.totalorder %s9, 0
      %p64 = por %p62, %p63
      %p65 = scmp.ne.s32.totalorder %s57, %s59
      %p66 = scmp.eq.s32.totalorder %s14, 15
      %p67 = por %p65, %p66
      %p68 = scmp.ne.s32.totalorder %s59, %s60
      %p69 = scmp.eq.s32.totalorder %s14, 0
      %p70 = por %p68, %p69
      %p71 = scmp.ne.s32.totalorder %s59, %s60
      %p72 = scmp.eq.s32.totalorder %s15, 15
      %p73 = por %p71, %p72
      %p75 = scmp.ne.s32.totalorder %s60, %s74
      %p76 = scmp.eq.s32.totalorder %s15, 0
      %p77 = por %p75, %p76
      %s79 = sadd.s32 %s78, 1
      %p82 = scmp.eq.s32.totalorder %s9, 15
      %p83 = scmp.ne.s32.totalorder %s78, %s80
      %p84 = scmp.eq.s32.totalorder %s9, 0
      %p85 = por %p83, %p84
      %p86 = scmp.ne.s32.totalorder %s78, %s80
      %p87 = scmp.eq.s32.totalorder %s14, 15
      %p88 = por %p86, %p87
      %p89 = scmp.ne.s32.totalorder %s80, %s81
      %p90 = scmp.eq.s32.totalorder %s14, 0
      %p91 = por %p89, %p90
      %p92 = scmp.ne.s32.totalorder %s80, %s81
      %p93 = scmp.eq.s32.totalorder %s15, 15
      %p94 = por %p92, %p93
      %p96 = scmp.ne.s32.totalorder %s81, %s95
      %p97 = scmp.eq.s32.totalorder %s15, 0
      %p98 = por %p96, %p97
      %s99 = ssub.s32 %s16, %s28
      %s100 = ssub.s32 %s17, %s24
      %s101 = sor.u32 %s99, %s100
      %p102 = scmp.eq.s32.totalorder %s101, 0
      %s104 = sadd.s32 %s103, 1
      %s105 = scalar_select %p102, %s103, %s104
      %p108 = pneg %p102
      %p109 = scmp.eq.s32.totalorder %s9, 15
      %p110 = por %p108, %p109
      %p111 = scmp.ne.s32.totalorder %s103, %s106
      %p112 = scmp.eq.s32.totalorder %s9, 0
      %p113 = por %p111, %p112
      %p114 = scmp.ne.s32.totalorder %s103, %s106
      %p115 = scmp.eq.s32.totalorder %s14, 15
      %p116 = por %p114, %p115
      %p117 = scmp.ne.s32.totalorder %s106, %s107
      %p118 = scmp.eq.s32.totalorder %s14, 0
      %p119 = por %p117, %p118
      %p120 = scmp.ne.s32.totalorder %s106, %s107
      %p121 = scmp.eq.s32.totalorder %s15, 15
      %p122 = por %p120, %p121
      %p124 = scmp.ne.s32.totalorder %s107, %s123
      %p125 = scmp.eq.s32.totalorder %s15, 0
      %p126 = por %p124, %p125
      %p127 = scmp.le.s32.totalorder 1, %s9
      %p128 = scmp.lt.s32.totalorder %s9, 17
      %p129 = pnand %p127, %p128
      %p130 = pneg %p129
      // Predicated region
      $region9: #{forward.7} parent=5 // pred_check
        _
      $region10: #{forward.7} parent=5 // pred_check_branch
        %132 = sbr.rel (%p129) target = $region12
      $region11: #{forward.7} parent=5 // pred_region
        %s133 = ssub.s32 %s9, 1
        // Predicated region
        $region13: #{forward.7} parent=11 // pred_check
          %p134 = pneg %p70
        $region14: #{forward.7} parent=11 // pred_check_branch
          %136 = sbr.rel (%p134) target = $region16
        $region15: #{forward.7} parent=11 // pred_region
          _
        $region16: #{forward.7} parent=11 // pred_fallthru
          _
        // Predicated region
        $region17: #{forward.7} parent=11 // pred_check
          %p137 = pneg %p91
        $region18: #{forward.7} parent=11 // pred_check_branch
          %139 = sbr.rel (%p137) target = $region20
        $region19: #{forward.7} parent=11 // pred_region
          _
        $region20: #{forward.7} parent=11 // pred_fallthru
          _
      $region12: #{forward.7} parent=5 // pred_fallthru
        _
      %p140 = scmp.lt.s32.totalorder %s9, 16
      // Predicated region
      $region21: #{forward.7} parent=5 // pred_check
        %p141 = pneg %p140
      $region22: #{forward.7} parent=5 // pred_check_branch
        %143 = sbr.rel (%p141) target = $region24
      $region23: #{forward.7} parent=5 // pred_region
        // Predicated region
        $region25: #{forward.7} parent=23 // pred_check
          %p144 = pneg %p43
        $region26: #{forward.7} parent=23 // pred_check_branch
          %146 = sbr.rel (%p144) target = $region28
        $region27: #{forward.7} parent=23 // pred_region
          %s147 = sand.u32 %s33, 1
          %s148 = sand.u32 %s33, 1
          %s149 = smul.addr %s148, 288
          %s150 = scalar_lea.vmem [#allocation2], %s149
          %s151 = smul.u32 4, %s17
          %s152 = smul.addr %s16, 576
          %s153 = sadd.s32 %s151, %s152
          %s154 = smul.addr %s153, 4
          %s155 = scalar_lea.vmem %s0, %s154
          // Predicated region
          $region29: #{forward.7} parent=27 // pred_check
            _
          $region30: #{forward.7} parent=27 // pred_check_branch
            %157 = sbr.rel (0) target = $region32
          $region31: #{forward.7} parent=27 // pred_region
            // Predicated region
            $region33: #{forward.7} parent=31 // pred_check
              _
            $region34: #{forward.7} parent=31 // pred_check_branch
              %159 = sbr.rel (0) target = $region36
            $region35: #{forward.7} parent=31 // pred_region
              loop: start=0, step=1, limit=1
              $region37: #{forward.7} parent=35 // loop_pre_header
                _
              $region38: #{forward.7} parent=35 // loop_header
                %s161 = sphi 0, %s165
                %p162 = scmp.ge.s32.totalorder %s161, 1
                %s166 = sphi %s155, %s155
                %s167 = sphi %s150, %s150
              $region39: #{forward.7} parent=35 // loop_header_branch
                %164 = sbr.rel (%p162) target = $region43
              $region40: #{forward.7} parent=35 // loop_body
                %v168 = vld [vmem:[%s166] sm:$0xff]
                %169 = vst [vmem:[%s167] sm:$0xff] %v168
                %v170 = vld [vmem:[%s166 + $0x8] sm:$0xff]
                %171 = vst [vmem:[%s167 + $0x8] sm:$0xff] %v170
                %v172 = vld [vmem:[%s166 + $0x80] sm:$0xff]
                %173 = vst [vmem:[%s167 + $0x10] sm:$0xff] %v172
                %v174 = vld [vmem:[%s166 + $0x88] sm:$0xff]
                %175 = vst [vmem:[%s167 + $0x18] sm:$0xff] %v174
                %v176 = vld [vmem:[%s166 + $0x100] sm:$0xff]
                %177 = vst [vmem:[%s167 + $0x20] sm:$0xff] %v176
                %v178 = vld [vmem:[%s166 + $0x108] sm:$0xff]
                %179 = vst [vmem:[%s167 + $0x28] sm:$0xff] %v178
                %v180 = vld [vmem:[%s166 + $0x180] sm:$0xff]
                %181 = vst [vmem:[%s167 + $0x30] sm:$0xff] %v180
                %v182 = vld [vmem:[%s166 + $0x188] sm:$0xff]
                %183 = vst [vmem:[%s167 + $0x38] sm:$0xff] %v182
                %v184 = vld [vmem:[%s166 + $0x200] sm:$0xff]
                %185 = vst [vmem:[%s167 + $0x40] sm:$0xff] %v184
                %v186 = vld [vmem:[%s166 + $0x208] sm:$0xff]
                %187 = vst [vmem:[%s167 + $0x48] sm:$0xff] %v186
                %v188 = vld [vmem:[%s166 + $0x280] sm:$0xff]
                %189 = vst [vmem:[%s167 + $0x50] sm:$0xff] %v188
                %v190 = vld [vmem:[%s166 + $0x288] sm:$0xff]
                %191 = vst [vmem:[%s167 + $0x58] sm:$0xff] %v190
                %v192 = vld [vmem:[%s166 + $0x300] sm:$0xff]
                %193 = vst [vmem:[%s167 + $0x60] sm:$0xff] %v192
                %v194 = vld [vmem:[%s166 + $0x308] sm:$0xff]
                %195 = vst [vmem:[%s167 + $0x68] sm:$0xff] %v194
                %v196 = vld [vmem:[%s166 + $0x380] sm:$0xff]
                %197 = vst [vmem:[%s167 + $0x70] sm:$0xff] %v196
                %v198 = vld [vmem:[%s166 + $0x388] sm:$0xff]
                %199 = vst [vmem:[%s167 + $0x78] sm:$0xff] %v198
                %v200 = vld [vmem:[%s166 + $0x400] sm:$0xff]
                %201 = vst [vmem:[%s167 + $0x80] sm:$0xff] %v200
                %v202 = vld [vmem:[%s166 + $0x408] sm:$0xff]
                %203 = vst [vmem:[%s167 + $0x88] sm:$0xff] %v202
                %v204 = vld [vmem:[%s166 + $0x480] sm:$0xff]
                %205 = vst [vmem:[%s167 + $0x90] sm:$0xff] %v204
                %v206 = vld [vmem:[%s166 + $0x488] sm:$0xff]
                %207 = vst [vmem:[%s167 + $0x98] sm:$0xff] %v206
                %v208 = vld [vmem:[%s166 + $0x500] sm:$0xff]
                %209 = vst [vmem:[%s167 + $0xa0] sm:$0xff] %v208
                %v210 = vld [vmem:[%s166 + $0x508] sm:$0xff]
                %211 = vst [vmem:[%s167 + $0xa8] sm:$0xff] %v210
                %v212 = vld [vmem:[%s166 + $0x580] sm:$0xff]
                %213 = vst [vmem:[%s167 + $0xb0] sm:$0xff] %v212
                %v214 = vld [vmem:[%s166 + $0x588] sm:$0xff]
                %215 = vst [vmem:[%s167 + $0xb8] sm:$0xff] %v214
                %v216 = vld [vmem:[%s166 + $0x600] sm:$0xff]
                %217 = vst [vmem:[%s167 + $0xc0] sm:$0xff] %v216
                %v218 = vld [vmem:[%s166 + $0x608] sm:$0xff]
                %219 = vst [vmem:[%s167 + $0xc8] sm:$0xff] %v218
                %v220 = vld [vmem:[%s166 + $0x680] sm:$0xff]
                %221 = vst [vmem:[%s167 + $0xd0] sm:$0xff] %v220
                %v222 = vld [vmem:[%s166 + $0x688] sm:$0xff]
                %223 = vst [vmem:[%s167 + $0xd8] sm:$0xff] %v222
                %v224 = vld [vmem:[%s166 + $0x700] sm:$0xff]
                %225 = vst [vmem:[%s167 + $0xe0] sm:$0xff] %v224
                %v226 = vld [vmem:[%s166 + $0x708] sm:$0xff]
                %227 = vst [vmem:[%s167 + $0xe8] sm:$0xff] %v226
                %v228 = vld [vmem:[%s166 + $0x780] sm:$0xff]
                %229 = vst [vmem:[%s167 + $0xf0] sm:$0xff] %v228
                %v230 = vld [vmem:[%s166 + $0x788] sm:$0xff]
                %231 = vst [vmem:[%s167 + $0xf8] sm:$0xff] %v230
                %v232 = vld [vmem:[%s166 + $0x800] sm:$0xff]
                %233 = vst [vmem:[%s167 + $0x100] sm:$0xff] %v232
                %v234 = vld [vmem:[%s166 + $0x808] sm:$0xff]
                %235 = vst [vmem:[%s167 + $0x108] sm:$0xff] %v234
                %v236 = vld [vmem:[%s166 + $0x880] sm:$0xff]
                %237 = vst [vmem:[%s167 + $0x110] sm:$0xff] %v236
                %v238 = vld [vmem:[%s166 + $0x888] sm:$0xff]
                %239 = vst [vmem:[%s167 + $0x118] sm:$0xff] %v238
              $region41: #{forward.7} parent=35 // loop_footer
                %s165 = sadd.s32 1, %s161
              $region42: #{forward.7} parent=35 // loop_footer_branch
                %160 = sbr.rel target = $region38
              $region43: #{forward.7} parent=35 // loop_exit
                _
            $region36: #{forward.7} parent=31 // pred_fallthru
              _
            // Predicated region
            $region44: #{forward.7} parent=31 // pred_check
              _
            $region45: #{forward.7} parent=31 // pred_check_branch
              %241 = sbr.rel target = $region47
            $region46: #{forward.7} parent=31 // pred_region
              _
            $region47: #{forward.7} parent=31 // pred_fallthru
              _
          $region32: #{forward.7} parent=27 // pred_fallthru
            _
          %242 = vnop
        $region28: #{forward.7} parent=23 // pred_fallthru
          _
      $region24: #{forward.7} parent=5 // pred_fallthru
        _
      %p243 = scmp.le.s32.totalorder 1, %s9
      %p244 = scmp.lt.s32.totalorder %s9, 17
      %p245 = pnand %p243, %p244
      %p246 = pneg %p245
      // Predicated region
      $region48: #{forward.7} parent=5 // pred_check
        _
      $region49: #{forward.7} parent=5 // pred_check_branch
        %248 = sbr.rel (%p245) target = $region51
      $region50: #{forward.7} parent=5 // pred_region
        %s249 = ssub.s32 %s9, 1
        %s250 = sand.u32 %s36, 1
        %s251 = sand.u32 %s36, 1
        %s252 = smul.addr %s251, 288
        %s253 = scalar_lea.vmem [#allocation2], %s252
        // Predicated region
        $region52: #{forward.7} parent=50 // pred_check
          %p254 = pneg %p49
        $region53: #{forward.7} parent=50 // pred_check_branch
          %256 = sbr.rel (%p254) target = $region55
        $region54: #{forward.7} parent=50 // pred_region
          _
        $region55: #{forward.7} parent=50 // pred_fallthru
          _
        %s257 = sand.u32 %s36, 1
        %s258 = sand.u32 %s36, 1
        %s259 = smul.addr %s258, 288
        %s260 = scalar_lea.vmem [#allocation2], %s259
        %p261 = pneg %p49
        %p262 = pneg %p46
        %p263 = pneg %p70
        %p264 = pneg %p67
        %p265 = pneg %p91
        %p266 = pneg %p88
        %p267 = pneg %p119
        %p268 = pneg %p116
        %s269 = smul.u32 4, %s19
        %p270 = scmp.lt.s32.totalorder %s18, 1
        %s271 = scalar_select %p270, %s18, 1
        %p272 = scmp.lt.s32.totalorder %s269, 31
        %s273 = scalar_select %p272, %s269, 31
        %s274 = smul.addr %s271, 32
        %s275 = sadd.s32 %s273, %s274
        %s276 = smul.addr %s275, 4
        %s277 = scalar_lea.vmem %s3, %s276
        %s278 = smul.u32 4, %s19
        %s279 = smul.u32 4, %s19
        %p280 = scmp.lt.s32.totalorder %s18, 1
        %s281 = scalar_select %p280, %s18, 1
        %p282 = scmp.lt.s32.totalorder %s279, 31
        %s283 = scalar_select %p282, %s279, 31
        %s284 = smul.addr %s281, 32
        %s285 = sadd.s32 %s283, %s284
        %s286 = smul.addr %s285, 4
        %s287 = scalar_lea.vmem %s3, %s286
        %s288 = smul.u32 4, %s19
        %v290 = vld [vmem:[%s1] sm:$0xf]
        %v291 = vld [vmem:[%s253] sm:$0xff]
        %v292 = vld [vmem:[%s253 + $0x8] sm:$0xff]
        %v293 = vld [vmem:[%s253 + $0x10] sm:$0xff]
        %v294 = vld [vmem:[%s253 + $0x18] sm:$0xff]
        %v295 = vld [vmem:[%s253 + $0x20] sm:$0xff]
        %v296 = vld [vmem:[%s253 + $0x28] sm:$0xff]
        %v297 = vld [vmem:[%s253 + $0x30] sm:$0xff]
        %v298 = vld [vmem:[%s253 + $0x38] sm:$0xff]
        %v299 = vld [vmem:[%s253 + $0x40] sm:$0xff]
        %v300 = vld [vmem:[%s253 + $0x48] sm:$0xff]
        %v301 = vld [vmem:[%s253 + $0x50] sm:$0xff]
        %v302 = vld [vmem:[%s253 + $0x58] sm:$0xff]
        %v303 = vld [vmem:[%s253 + $0x60] sm:$0xff]
        %v304 = vld [vmem:[%s253 + $0x68] sm:$0xff]
        %v305 = vld [vmem:[%s253 + $0x70] sm:$0xff]
        %v306 = vld [vmem:[%s253 + $0x78] sm:$0xff]
        %v307 = vld [vmem:[%s253 + $0x80] sm:$0xff]
        %v308 = vld [vmem:[%s253 + $0x88] sm:$0xff]
        %v309 = vld [vmem:[%s253 + $0x90] sm:$0xff]
        %v310 = vld [vmem:[%s253 + $0x98] sm:$0xff]
        %v311 = vld [vmem:[%s253 + $0xa0] sm:$0xff]
        %v312 = vld [vmem:[%s253 + $0xa8] sm:$0xff]
        %v313 = vld [vmem:[%s253 + $0xb0] sm:$0xff]
        %v314 = vld [vmem:[%s253 + $0xb8] sm:$0xff]
        %v315 = vld [vmem:[%s253 + $0xc0] sm:$0xff]
        %v316 = vld [vmem:[%s253 + $0xc8] sm:$0xff]
        %v317 = vld [vmem:[%s253 + $0xd0] sm:$0xff]
        %v318 = vld [vmem:[%s253 + $0xd8] sm:$0xff]
        %v319 = vld [vmem:[%s253 + $0xe0] sm:$0xff]
        %v320 = vld [vmem:[%s253 + $0xe8] sm:$0xff]
        %v321 = vld [vmem:[%s253 + $0xf0] sm:$0xff]
        %v322 = vld [vmem:[%s253 + $0xf8] sm:$0xff]
        %v323 = vld [vmem:[%s253 + $0x100] sm:$0xff]
        %v324 = vld [vmem:[%s253 + $0x108] sm:$0xff]
        %v325 = vld [vmem:[%s253 + $0x110] sm:$0xff]
        %v326 = vld [vmem:[%s253 + $0x118] sm:$0xff]
        %v327 = vld [vmem:[%s2] sm:$0x7]
        %329 = vset.pattern.permute.xlu0 0
        %330 = vperm.xlu0 %329, %v327
        %v331 = vpop.permute.xlu0 %330
        %334 = vst [vmem:[#allocation1] ss:$4 sm:$0xff] %v290
        %v335 = vld.sshfl [vmem:[#allocation1] sm:$0xff pattern:$0x73625140]
        %v336 = vld.sshfl [vmem:[#allocation1 + $0x8] sm:$0xff pattern:$0x73625140]
        %v374 = vunpack.c.l.b16 %v291
        %v375 = vunpack.c.h.b16 %v291
        %v376 = vunpack.c.l.b16 %v292
        %v377 = vunpack.c.h.b16 %v292
        %v378 = vunpack.c.l.b16 %v293
        %v379 = vunpack.c.h.b16 %v293
        %v380 = vunpack.c.l.b16 %v294
        %v381 = vunpack.c.h.b16 %v294
        %v382 = vunpack.c.l.b16 %v295
        %v383 = vunpack.c.h.b16 %v295
        %v384 = vunpack.c.l.b16 %v296
        %v385 = vunpack.c.h.b16 %v296
        %v386 = vunpack.c.l.b16 %v297
        %v387 = vunpack.c.h.b16 %v297
        %v388 = vunpack.c.l.b16 %v298
        %v389 = vunpack.c.h.b16 %v298
        %v390 = vunpack.c.l.b16 %v299
        %v391 = vunpack.c.h.b16 %v299
        %v392 = vunpack.c.l.b16 %v300
        %v393 = vunpack.c.h.b16 %v300
        %v394 = vunpack.c.l.b16 %v301
        %v395 = vunpack.c.h.b16 %v301
        %v396 = vunpack.c.l.b16 %v302
        %v397 = vunpack.c.h.b16 %v302
        %v398 = vunpack.c.l.b16 %v303
        %v399 = vunpack.c.h.b16 %v303
        %v400 = vunpack.c.l.b16 %v304
        %v401 = vunpack.c.h.b16 %v304
        %v402 = vunpack.c.l.b16 %v305
        %v403 = vunpack.c.h.b16 %v305
        %v404 = vunpack.c.l.b16 %v306
        %v405 = vunpack.c.h.b16 %v306
        %v406 = vunpack.c.l.b16 %v307
        %v407 = vunpack.c.h.b16 %v307
        %v408 = vunpack.c.l.b16 %v308
        %v409 = vunpack.c.h.b16 %v308
        %v410 = vunpack.c.l.b16 %v309
        %v411 = vunpack.c.h.b16 %v309
        %v412 = vunpack.c.l.b16 %v310
        %v413 = vunpack.c.h.b16 %v310
        %v414 = vunpack.c.l.b16 %v311
        %v415 = vunpack.c.h.b16 %v311
        %v416 = vunpack.c.l.b16 %v312
        %v417 = vunpack.c.h.b16 %v312
        %v418 = vunpack.c.l.b16 %v313
        %v419 = vunpack.c.h.b16 %v313
        %v420 = vunpack.c.l.b16 %v314
        %v421 = vunpack.c.h.b16 %v314
        %v422 = vunpack.c.l.b16 %v315
        %v423 = vunpack.c.h.b16 %v315
        %v424 = vunpack.c.l.b16 %v316
        %v425 = vunpack.c.h.b16 %v316
        %v426 = vunpack.c.l.b16 %v317
        %v427 = vunpack.c.h.b16 %v317
        %v428 = vunpack.c.l.b16 %v318
        %v429 = vunpack.c.h.b16 %v318
        %v430 = vunpack.c.l.b16 %v319
        %v431 = vunpack.c.h.b16 %v319
        %v432 = vunpack.c.l.b16 %v320
        %v433 = vunpack.c.h.b16 %v320
        %v434 = vunpack.c.l.b16 %v321
        %v435 = vunpack.c.h.b16 %v321
        %v436 = vunpack.c.l.b16 %v322
        %v437 = vunpack.c.h.b16 %v322
        %v438 = vunpack.c.l.b16 %v323
        %v439 = vunpack.c.h.b16 %v323
        %v440 = vunpack.c.l.b16 %v324
        %v441 = vunpack.c.h.b16 %v324
        %v442 = vunpack.c.l.b16 %v325
        %v443 = vunpack.c.h.b16 %v325
        %v444 = vunpack.c.l.b16 %v326
        %v445 = vunpack.c.h.b16 %v326
        %v446 = vpack.c.b16 %v378, %v374
        %v447 = vpack.c.b16 %v379, %v375
        %v448 = vpack.c.b16 %v380, %v376
        %v449 = vpack.c.b16 %v381, %v377
        %v450 = vpack.c.b16 %v386, %v382
        %v451 = vpack.c.b16 %v387, %v383
        %v452 = vpack.c.b16 %v388, %v384
        %v453 = vpack.c.b16 %v389, %v385
        %v454 = vpack.c.b16 %v394, %v390
        %v455 = vpack.c.b16 %v395, %v391
        %v456 = vpack.c.b16 %v396, %v392
        %v457 = vpack.c.b16 %v397, %v393
        %v458 = vpack.c.b16 %v402, %v398
        %v459 = vpack.c.b16 %v403, %v399
        %v460 = vpack.c.b16 %v404, %v400
        %v461 = vpack.c.b16 %v405, %v401
        %v462 = vpack.c.b16 %v410, %v406
        %v463 = vpack.c.b16 %v411, %v407
        %v464 = vpack.c.b16 %v412, %v408
        %v465 = vpack.c.b16 %v413, %v409
        %v466 = vpack.c.b16 %v418, %v414
        %v467 = vpack.c.b16 %v419, %v415
        %v468 = vpack.c.b16 %v420, %v416
        %v469 = vpack.c.b16 %v421, %v417
        %v470 = vpack.c.b16 %v426, %v422
        %v471 = vpack.c.b16 %v427, %v423
        %v472 = vpack.c.b16 %v428, %v424
        %v473 = vpack.c.b16 %v429, %v425
        %v474 = vpack.c.b16 %v434, %v430
        %v475 = vpack.c.b16 %v435, %v431
        %v476 = vpack.c.b16 %v436, %v432
        %v477 = vpack.c.b16 %v437, %v433
        %v478 = vpack.c.b16 %v442, %v438
        %v479 = vpack.c.b16 %v443, %v439
        %v480 = vpack.c.b16 %v444, %v440
        %v481 = vpack.c.b16 %v445, %v441
        %vm518 = vcmask 130048
        %v519 = vsel %vm518, %v336, 0
        %521 = vmatpush.bf16.msra.mxu0 %v474
        %522 = vmatpush.bf16.msra.mxu0 %v470
        %523 = vmatpush.bf16.msra.mxu0 %v466
        %524 = vmatpush.bf16.msra.mxu0 %v462
        %525 = vmatpush.bf16.msra.mxu0 %v458
        %526 = vmatpush.bf16.msra.mxu0 %v454
        %527 = vmatpush.bf16.msra.mxu0 %v450
        %528 = vmatpush.bf16.msra.mxu0 %v446
        %529 = vmatmul.bf16.gmra.mxu0 %v335
        %v530 = vpop.f32.mrf.mxu0
        %v531 = vadd.f32 %v331, %v530
        %v532 = vpop.f32.mrf.mxu0
        %533 = vdwg.mxu0
        %534 = vmatpush.bf16.msra.mxu0 0
        %535 = vmatpush.bf16.msra.mxu0 0
        %536 = vmatpush.bf16.msra.mxu0 0
        %537 = vmatpush.bf16.msra.mxu0 0
        %538 = vmatpush.bf16.msra.mxu0 0
        %539 = vmatpush.bf16.msra.mxu0 0
        %540 = vmatpush.bf16.msra.mxu0 0
        %541 = vmatpush.bf16.msra.mxu0 %v478
        %542 = vmatmul.bf16.gmra.mxu0 %v519
        %v543 = vpop.f32.mrf.mxu0
        %v544 = vadd.f32 %v531, %v543
        %v545 = vpop.f32.mrf.mxu0
        %546 = vdwg.mxu0
        %547 = vmatpush.bf16.msra.mxu0 %v475
        %548 = vmatpush.bf16.msra.mxu0 %v471
        %549 = vmatpush.bf16.msra.mxu0 %v467
        %550 = vmatpush.bf16.msra.mxu0 %v463
        %551 = vmatpush.bf16.msra.mxu0 %v459
        %552 = vmatpush.bf16.msra.mxu0 %v455
        %553 = vmatpush.bf16.msra.mxu0 %v451
        %554 = vmatpush.bf16.msra.mxu0 %v447
        %555 = vmatmul.bf16.gmra.mxu0 %v335
        %v556 = vpop.f32.mrf.mxu0
        %v557 = vadd.f32 %v331, %v556
        %v558 = vpop.f32.mrf.mxu0
        %559 = vdwg.mxu0
        %560 = vmatpush.bf16.msra.mxu0 0
        %561 = vmatpush.bf16.msra.mxu0 0
        %562 = vmatpush.bf16.msra.mxu0 0
        %563 = vmatpush.bf16.msra.mxu0 0
        %564 = vmatpush.bf16.msra.mxu0 0
        %565 = vmatpush.bf16.msra.mxu0 0
        %566 = vmatpush.bf16.msra.mxu0 0
        %567 = vmatpush.bf16.msra.mxu0 %v479
        %568 = vmatmul.bf16.gmra.mxu0 %v519
        %v569 = vpop.f32.mrf.mxu0
        %v570 = vadd.f32 %v557, %v569
        %v571 = vpop.f32.mrf.mxu0
        %572 = vdwg.mxu0
        %573 = vmatpush.bf16.msra.mxu0 %v476
        %574 = vmatpush.bf16.msra.mxu0 %v472
        %575 = vmatpush.bf16.msra.mxu0 %v468
        %576 = vmatpush.bf16.msra.mxu0 %v464
        %577 = vmatpush.bf16.msra.mxu0 %v460
        %578 = vmatpush.bf16.msra.mxu0 %v456
        %579 = vmatpush.bf16.msra.mxu0 %v452
        %580 = vmatpush.bf16.msra.mxu0 %v448
        %581 = vmatmul.bf16.gmra.mxu0 %v335
        %v582 = vpop.f32.mrf.mxu0
        %v583 = vadd.f32 %v331, %v582
        %v584 = vpop.f32.mrf.mxu0
        %585 = vdwg.mxu0
        %586 = vmatpush.bf16.msra.mxu0 0
        %587 = vmatpush.bf16.msra.mxu0 0
        %588 = vmatpush.bf16.msra.mxu0 0
        %589 = vmatpush.bf16.msra.mxu0 0
        %590 = vmatpush.bf16.msra.mxu0 0
        %591 = vmatpush.bf16.msra.mxu0 0
        %592 = vmatpush.bf16.msra.mxu0 0
        %593 = vmatpush.bf16.msra.mxu0 %v480
        %594 = vmatmul.bf16.gmra.mxu0 %v519
        %v595 = vpop.f32.mrf.mxu0
        %v596 = vadd.f32 %v583, %v595
        %v597 = vpop.f32.mrf.mxu0
        %598 = vdwg.mxu0
        %599 = vmatpush.bf16.msra.mxu0 %v477
        %600 = vmatpush.bf16.msra.mxu0 %v473
        %601 = vmatpush.bf16.msra.mxu0 %v469
        %602 = vmatpush.bf16.msra.mxu0 %v465
        %603 = vmatpush.bf16.msra.mxu0 %v461
        %604 = vmatpush.bf16.msra.mxu0 %v457
        %605 = vmatpush.bf16.msra.mxu0 %v453
        %606 = vmatpush.bf16.msra.mxu0 %v449
        %607 = vmatmul.bf16.gmra.mxu0 %v335
        %v608 = vpop.f32.mrf.mxu0
        %v609 = vadd.f32 %v331, %v608
        %v610 = vpop.f32.mrf.mxu0
        %611 = vdwg.mxu0
        %612 = vmatpush.bf16.msra.mxu0 0
        %613 = vmatpush.bf16.msra.mxu0 0
        %614 = vmatpush.bf16.msra.mxu0 0
        %615 = vmatpush.bf16.msra.mxu0 0
        %616 = vmatpush.bf16.msra.mxu0 0
        %617 = vmatpush.bf16.msra.mxu0 0
        %618 = vmatpush.bf16.msra.mxu0 0
        %619 = vmatpush.bf16.msra.mxu0 %v481
        %620 = vmatmul.bf16.gmra.mxu0 %v519
        %v621 = vpop.f32.mrf.mxu0
        %v622 = vadd.f32 %v609, %v621
        %v623 = vpop.f32.mrf.mxu0
        %624 = vdwg.mxu0
        %v625 = vmax.f32 %v544, -1.0
        %v626 = vmax.f32 %v570, -1.0
        %v627 = vmax.f32 %v596, -1.0
        %v628 = vmax.f32 %v622, -1.0
        %v629 = vmin.f32 %v625, 1.0
        %v630 = vmin.f32 %v626, 1.0
        %v631 = vmin.f32 %v627, 1.0
        %v632 = vmin.f32 %v628, 1.0
        %v637 = vrot.slane %v630, 4
        %v638 = vrot.slane %v632, 4
        %vm639 = vcmask 1043456
        %v640 = vsel %vm639, %v629, %v637
        %v641 = vsel %vm639, %v631, %v638
        %644 = vst [vmem:[%s287] sm:$0x77] %v640
        %645 = vst [vmem:[%s287 + $0x8] sm:$0x77] %v641
        %s646 = smul.u32 4, %s19
        %p647 = scmp.lt.s32.totalorder %s18, 1
        %s648 = scalar_select %p647, %s18, 1
        %p649 = scmp.lt.s32.totalorder %s646, 31
        %s650 = scalar_select %p649, %s646, 31
        %s651 = smul.addr %s648, 32
        %s652 = sadd.s32 %s650, %s651
        %s653 = smul.addr %s652, 4
        %s654 = scalar_lea.vmem %s3, %s653
        // Predicated region
        $region56: #{forward.7} parent=50 // pred_check
          %p655 = pneg %p116
        $region57: #{forward.7} parent=50 // pred_check_branch
          %657 = sbr.rel (%p655) target = $region59
        $region58: #{forward.7} parent=50 // pred_region
          %s658 = smul.u32 4, %s19
        $region59: #{forward.7} parent=50 // pred_fallthru
          _
      $region51: #{forward.7} parent=5 // pred_fallthru
        _
      %p659 = scmp.le.s32.totalorder 2, %s9
      // Predicated region
      $region60: #{forward.7} parent=5 // pred_check
        %p660 = pneg %p659
      $region61: #{forward.7} parent=5 // pred_check_branch
        %662 = sbr.rel (%p660) target = $region63
      $region62: #{forward.7} parent=5 // pred_region
        %s663 = ssub.s32 %s9, 2
        // Predicated region
        $region64: #{forward.7} parent=62 // pred_check
          %p664 = pneg %p122
        $region65: #{forward.7} parent=62 // pred_check_branch
          %666 = sbr.rel (%p664) target = $region67
        $region66: #{forward.7} parent=62 // pred_region
          %s667 = smul.u32 4, %s21
          %p668 = scmp.lt.s32.totalorder %s20, 1
          %s669 = scalar_select %p668, %s20, 1
          %p670 = scmp.lt.s32.totalorder %s667, 31
          %s671 = scalar_select %p670, %s667, 31
          %s672 = smul.addr %s669, 32
          %s673 = sadd.s32 %s671, %s672
          %s674 = smul.addr %s673, 4
          %s675 = scalar_lea.vmem %s3, %s674
        $region67: #{forward.7} parent=62 // pred_fallthru
          _
      $region63: #{forward.7} parent=5 // pred_fallthru
        _
    $region6: #{forward.7} parent=1 // loop_footer
      %s13 = sadd.s32 1, %s9
    $region7: #{forward.7} parent=1 // loop_footer_branch
      %8 = sbr.rel target = $region3
    $region8: #{forward.7} parent=1 // loop_exit
      _

</llo_original>
